<compile_context>
chip_gen: v7x
topology: tpu7x:2x2x1
jax: 0.10.0
libtpu: 0.0.40
codegen_flags: <defaults>
</compile_context>

<pallas_src>
import functools

import numpy as np
import jax
import jax.numpy as jnp
from jax import lax
from jax.experimental import pallas as pl
from jax.experimental.pallas import tpu as pltpu


MATMUL_DTYPE = jnp.bfloat16   # MXU operand dtype (accumulation stays f32)


# ----------------------------------------------------------------------------
# Host-side glue (numpy in the PyTorch code): sinusoid table
# ----------------------------------------------------------------------------
def get_sinusoid_encoding_table(n_position, d_hid, padding_idx=None):
    position = np.arange(n_position, dtype=np.float64)[:, None]
    hid = np.arange(d_hid, dtype=np.float64)[None, :]
    angle = position / np.power(10000.0, 2.0 * (hid // 2) / d_hid)
    table = np.zeros((n_position, d_hid), dtype=np.float64)
    table[:, 0::2] = np.sin(angle[:, 0::2])
    table[:, 1::2] = np.cos(angle[:, 1::2])
    if padding_idx is not None:
        table[padding_idx] = 0.0
    return jnp.asarray(table, dtype=jnp.float32)


def _layer_norm(x, g, b, eps=1e-5):
    mu = jnp.mean(x, axis=-1, keepdims=True)
    xc = x - mu
    var = jnp.mean(xc * xc, axis=-1, keepdims=True)
    return xc * lax.rsqrt(var + eps) * g + b          # rsqrt -> EUP


# ----------------------------------------------------------------------------
# Fused encoder kernel (embedding + all layers, single invocation, no grid)
# ----------------------------------------------------------------------------
def _encoder_kernel(n_head, d_k, d_v,
                    x_ref, pos_ref, bias_ref, npm_ref,
                    emb_w_ref, emb_b_ref,
                    wqkv_ref, bqkv_ref, wfc_ref, bfc_ref,
                    ln1g_ref, ln1b_ref, w1_ref, b1_ref, w2_ref, b2_ref,
                    ln2g_ref, ln2b_ref,
                    out_ref):
    B = bias_ref.shape[0]
    S = bias_ref.shape[2]
    L = wqkv_ref.shape[0]
    Hdk = n_head * d_k
    Hdv = n_head * d_v
    inv_temp = 1.0 / (float(d_k) ** 0.5)
    mm = wqkv_ref.dtype                               # bf16 matmul operands

    key_bias = bias_ref[...]                          # (B, 1, S) additive -1e30
    npm = npm_ref[...]                                # (B*S, 1) non-pad rows

    # --- embedding: src_word_emb(X) + position_enc(X_pos), batch folded -------
    x = (jnp.dot(x_ref[...].astype(mm), emb_w_ref[...],
                 preferred_element_type=jnp.float32)
         + emb_b_ref[...] + pos_ref[...])             # (B*S, D) f32

    def layer(l, x):
        # --- fused, lane-dense QKV projection: one (B*S,D)@(D,3*H*dk) matmul --
        qkv = (jnp.dot(x.astype(mm), wqkv_ref[l],
                       preferred_element_type=jnp.float32)
               + bqkv_ref[l])                         # (B*S, 2*Hdk + Hdv) f32
        qkv = qkv.reshape(B, S, 2 * Hdk + Hdv)

        # --- per-head scaled dot-product attention (batched over B) -----------
        ctx_heads = []
        for h in range(n_head):                       # H is small and static
            q_h = qkv[:, :, h * d_k:(h + 1) * d_k].astype(mm)           # (B,S,dk)
            k_h = qkv[:, :, Hdk + h * d_k:Hdk + (h + 1) * d_k].astype(mm)
            v_h = qkv[:, :, 2 * Hdk + h * d_v:2 * Hdk + (h + 1) * d_v].astype(mm)
            s = jnp.einsum('bqe,bke->bqk', q_h, k_h,
                           preferred_element_type=jnp.float32) * inv_temp
            s = s + key_bias                                            # (B,S,S)
            m = jnp.max(s, axis=-1, keepdims=True)
            e = jnp.exp(s - m)
            denom = jnp.sum(e, axis=-1, keepdims=True)
            ctx = jnp.einsum('bqk,bkv->bqv', e.astype(mm), v_h,
                             preferred_element_type=jnp.float32)        # (B,S,dv)
            # normalize the (narrow) context, not the (S-wide) attention matrix
            ctx_heads.append(ctx * pl.reciprocal(denom, approx=True))
        ctx = jnp.concatenate(ctx_heads, axis=-1).reshape(B * S, Hdv)

        # --- lane-dense output projection: (B*S,H*dv)@(H*dv,D) ----------------
        attn_o = (jnp.dot(ctx.astype(mm), wfc_ref[l],
                          preferred_element_type=jnp.float32) + bfc_ref[l])
        o = _layer_norm(attn_o + x, ln1g_ref[l], ln1b_ref[l]) * npm

        # --- position-wise feed-forward (Conv1d kernel-size 1 == linear) ------
        h1 = jnp.maximum(
            jnp.dot(o.astype(mm), w1_ref[l],
                    preferred_element_type=jnp.float32) + b1_ref[l], 0.0)
        h2 = (jnp.dot(h1.astype(mm), w2_ref[l],
                      preferred_element_type=jnp.float32) + b2_ref[l])
        return _layer_norm(h2 + o, ln2g_ref[l], ln2b_ref[l]) * npm

    x = lax.fori_loop(0, L, layer, x, unroll=True)
    out_ref[...] = x                                  # (B*S, D)


# ----------------------------------------------------------------------------
# One-time parameter packing (outside the jitted forward):
#   * stack layers along a leading L axis (dynamically indexable in-kernel)
#   * concatenate Wq|Wk|Wv along the output dim (fused QKV matmul)
#   * cast matmul weights to bf16; biases / LayerNorm params stay f32
# ----------------------------------------------------------------------------
def pack_params(params, matmul_dtype=MATMUL_DTYPE):
    def stack(name):
        return jnp.stack([lp[name] for lp in params["layers"]], axis=0)

    w_qkv = jnp.concatenate([stack("wq"), stack("wk"), stack("wv")], axis=-1)
    b_qkv = jnp.concatenate([stack("bq"), stack("bk"), stack("bv")], axis=-1)
    return dict(
        emb_w=params["emb_w"].astype(matmul_dtype),
        emb_b=params["emb_b"],
        w_qkv=w_qkv.astype(matmul_dtype), b_qkv=b_qkv,
        w_fc=stack("wfc").astype(matmul_dtype), b_fc=stack("bfc"),
        ln1_g=stack("ln1_g"), ln1_b=stack("ln1_b"),
        w1=stack("w1").astype(matmul_dtype), b1=stack("b1"),
        w2=stack("w2").astype(matmul_dtype), b2=stack("b2"),
        ln2_g=stack("ln2_g"), ln2_b=stack("ln2_b"),
    )


# ----------------------------------------------------------------------------
# Wrapper: O(B*S) mask prep, flatten batch into rows, single fused pallas_call
# ----------------------------------------------------------------------------
@functools.partial(jax.jit, static_argnames=("n_head", "d_k", "d_v"))
def encoder_forward(packed, X, X_pos, pos_table, *, n_head, d_k, d_v):
    B, S, F = X.shape
    D = packed["emb_w"].shape[1]

    # same semantics as get_attn_key_pad_mask / get_non_pad_mask: a position is
    # padding iff its feature row is all-zero.
    pad = jnp.all(X == 0.0, axis=2)                                     # (B,S)
    attn_bias = jnp.where(pad, -1e30, 0.0).astype(jnp.float32)[:, None, :]
    non_pad = jnp.where(pad, 0.0, 1.0).astype(jnp.float32).reshape(B * S, 1)

    pos_emb = pos_table[X_pos].reshape(B * S, D)     # embedding gather (XLA glue)
    Xf = X.reshape(B * S, F)

    inputs = [Xf, pos_emb, attn_bias, non_pad,
              packed["emb_w"], packed["emb_b"],
              packed["w_qkv"], packed["b_qkv"],
              packed["w_fc"], packed["b_fc"],
              packed["ln1_g"], packed["ln1_b"],
              packed["w1"], packed["b1"],
              packed["w2"], packed["b2"],
              packed["ln2_g"], packed["ln2_b"]]

    vmem = pl.BlockSpec(memory_space=pltpu.MemorySpace.VMEM)
    out = pl.pallas_call(
        functools.partial(_encoder_kernel, n_head, d_k, d_v),
        out_shape=jax.ShapeDtypeStruct((B * S, D), jnp.float32),
        in_specs=[vmem] * len(inputs),
        out_specs=vmem,
    )(*inputs)
    return out.reshape(B, S, D)


# ----------------------------------------------------------------------------
# Pure-JAX reference (mirrors the PyTorch forward).  `matmul_dtype` lets the
# same function serve as (a) the exact f32 semantic reference and (b) a
# precision-matched reference using the kernel's bf16 MXU operands.
# ----------------------------------------------------------------------------
def reference_forward(params, X, X_pos, pos_table, *, n_head, d_k, d_v,
                      matmul_dtype=jnp.float32):
    B, S, _ = X.shape

    def ein(spec, a, b):
        return jnp.einsum(spec, a.astype(matmul_dtype), b.astype(matmul_dtype),
                          preferred_element_type=jnp.float32)

    pad = jnp.all(X == 0.0, axis=2)
    npm = jnp.where(pad, 0.0, 1.0).astype(jnp.float32)[..., None]       # (B,S,1)
    key_bias = jnp.where(pad, -1e30, 0.0)[:, None, None, :]             # (B,1,1,S)

    x = (ein('bsf,fd->bsd', X, params["emb_w"]) + params["emb_b"]
         + pos_table[X_pos])
    for lp in params["layers"]:
        q = (ein('bsd,de->bse', x, lp["wq"]) + lp["bq"]).reshape(B, S, n_head, d_k)
        k = (ein('bsd,de->bse', x, lp["wk"]) + lp["bk"]).reshape(B, S, n_head, d_k)
        v = (ein('bsd,de->bse', x, lp["wv"]) + lp["bv"]).reshape(B, S, n_head, d_v)
        sc = ein('bqhe,bkhe->bhqk', q, k) / (d_k ** 0.5) + key_bias
        m = jnp.max(sc, axis=-1, keepdims=True)
        e = jnp.exp(sc - m)
        denom = jnp.sum(e, axis=-1)                                     # (B,H,S)
        ctx = ein('bhqk,bkhv->bqhv', e, v)                              # (B,S,H,dv)
        ctx = ctx / jnp.transpose(denom, (0, 2, 1))[..., None]
        ctx = ctx.reshape(B, S, n_head * d_v)
        o = ein('bsv,vd->bsd', ctx, lp["wfc"]) + lp["bfc"]
        o = _layer_norm(o + x, lp["ln1_g"], lp["ln1_b"]) * npm
        h1 = jax.nn.relu(ein('bsd,di->bsi', o, lp["w1"]) + lp["b1"])
        h2 = ein('bsi,id->bsd', h1, lp["w2"]) + lp["b2"]
        x = _layer_norm(h2 + o, lp["ln2_g"], lp["ln2_b"]) * npm
    return x


# ----------------------------------------------------------------------------
# Deterministic synthetic parameters
# ----------------------------------------------------------------------------
def init_params(key, n_src_features, n_layers, n_head, d_k, d_v, d_model, d_inner):
    def nrm(k, shape, scale):
        return scale * jax.random.normal(k, shape, jnp.float32)

    keys = iter(jax.random.split(key, 2 + n_layers * 12))
    params = {
        "emb_w": nrm(next(keys), (n_src_features, d_model), 0.1),
        "emb_b": nrm(next(keys), (1, d_model), 0.02),
        "layers": [],
    }
    for _ in range(n_layers):
        lp = {
            "wq": nrm(next(keys), (d_model, n_head * d_k), (2.0 / (d_model + d_k)) ** 0.5),
            "bq": nrm(next(keys), (1, n_head * d_k), 0.02),
            "wk": nrm(next(keys), (d_model, n_head * d_k), (2.0 / (d_model + d_k)) ** 0.5),
            "bk": nrm(next(keys), (1, n_head * d_k), 0.02),
            "wv": nrm(next(keys), (d_model, n_head * d_v), (2.0 / (d_model + d_v)) ** 0.5),
            "bv": nrm(next(keys), (1, n_head * d_v), 0.02),
            "wfc": nrm(next(keys), (n_head * d_v, d_model), 0.1),
            "bfc": nrm(next(keys), (1, d_model), 0.02),
            "ln1_g": jnp.ones((1, d_model), jnp.float32),
            "ln1_b": jnp.zeros((1, d_model), jnp.float32),
            "w1": nrm(next(keys), (d_model, d_inner), 0.1),
            "b1": nrm(next(keys), (1, d_inner), 0.02),
            "w2": nrm(next(keys), (d_inner, d_model), 0.1),
            "b2": nrm(next(keys), (1, d_model), 0.02),
            "ln2_g": jnp.ones((1, d_model), jnp.float32),
            "ln2_b": jnp.zeros((1, d_model), jnp.float32),
        }
        params["layers"].append(lp)
    return params


# ----------------------------------------------------------------------------
# Main
# ----------------------------------------------------------------------------
if __name__ == "__main__":
    B, S = 2, 8
    n_src_features = 8
    len_max_seq = 16
    d_model = 32
    n_layers = 2
    n_head = 4
    d_k = d_v = 8
    d_inner = 64

    key = jax.random.PRNGKey(0)
    kx, kp = jax.random.split(key)

    X = jax.random.normal(kx, (B, S, n_src_features), jnp.float32)
    # make the last two timesteps of batch 0 padding (all-zero feature rows)
    X = X.at[0, S - 2:, :].set(0.0)

    pad = jnp.all(X == 0.0, axis=2)
    X_pos = jnp.where(pad, 0,
                      jnp.arange(1, S + 1, dtype=jnp.int32)[None, :]).astype(jnp.int32)
    pos_table = get_sinusoid_encoding_table(len_max_seq + 1, d_model, padding_idx=0)

    params = init_params(kp, n_src_features, n_layers, n_head, d_k, d_v,
                         d_model, d_inner)
    packed = pack_params(params, matmul_dtype=MATMUL_DTYPE)   # packed once, outside jit

    enc = encoder_forward(packed, X, X_pos, pos_table,
                          n_head=n_head, d_k=d_k, d_v=d_v)
    enc = jax.block_until_ready(enc)

    assert enc.shape == (B, S, d_model)
    assert bool(jnp.isfinite(enc).all())

    # (1) tight check vs a precision-matched reference (same bf16 MXU operands,
    #     f32 accumulation); residual error = approx EUP reciprocal + MXU
    #     accumulation order.
    ref_matched = reference_forward(params, X, X_pos, pos_table,
                                    n_head=n_head, d_k=d_k, d_v=d_v,
                                    matmul_dtype=MATMUL_DTYPE)
    ref_matched = jax.block_until_ready(ref_matched)
    err_matched = float(jnp.max(jnp.abs(enc - ref_matched)))
    assert err_matched < 5e-2, f"mismatch vs precision-matched ref: {err_matched}"

    # (2) coarse sanity check vs the exact f32 reference (bounds the bf16
    #     precision gap; values are O(1) after LayerNorm).
    with jax.default_matmul_precision("highest"):
        ref_f32 = reference_forward(params, X, X_pos, pos_table,
                                    n_head=n_head, d_k=d_k, d_v=d_v,
                                    matmul_dtype=jnp.float32)
    ref_f32 = jax.block_until_ready(ref_f32)
    err_f32 = float(jnp.max(jnp.abs(enc - ref_f32)))
    assert err_f32 < 3e-1, f"mismatch vs f32 reference: {err_f32}"

    print("KERNEL_OK")
</pallas_src>

<mosaic_0001>
module attributes {stable_mosaic.version = 11 : i64} {
  func.func @_encoder_kernel(%arg0: memref<16x8xf32, #tpu.memory_space<vmem>>, %arg1: memref<16x32xf32, #tpu.memory_space<vmem>>, %arg2: memref<2x1x8xf32, #tpu.memory_space<vmem>>, %arg3: memref<16x1xf32, #tpu.memory_space<vmem>>, %arg4: memref<8x32xbf16, #tpu.memory_space<vmem>>, %arg5: memref<1x32xf32, #tpu.memory_space<vmem>>, %arg6: memref<2x32x96xbf16, #tpu.memory_space<vmem>>, %arg7: memref<2x1x96xf32, #tpu.memory_space<vmem>>, %arg8: memref<2x32x32xbf16, #tpu.memory_space<vmem>>, %arg9: memref<2x1x32xf32, #tpu.memory_space<vmem>>, %arg10: memref<2x1x32xf32, #tpu.memory_space<vmem>>, %arg11: memref<2x1x32xf32, #tpu.memory_space<vmem>>, %arg12: memref<2x32x64xbf16, #tpu.memory_space<vmem>>, %arg13: memref<2x1x64xf32, #tpu.memory_space<vmem>>, %arg14: memref<2x64x32xbf16, #tpu.memory_space<vmem>>, %arg15: memref<2x1x32xf32, #tpu.memory_space<vmem>>, %arg16: memref<2x1x32xf32, #tpu.memory_space<vmem>>, %arg17: memref<2x1x32xf32, #tpu.memory_space<vmem>>, %arg18: memref<16x32xf32, #tpu.memory_space<vmem>>) attributes {dimension_semantics = [], scalar_prefetch = 0 : i64, scratch_operands = 0 : i64, tpu.core_type = #tpu.core_type<tc>} {
    %c0 = arith.constant 0 : index
    %c0_0 = arith.constant 0 : index
    %c0_1 = arith.constant 0 : index
    %0 = vector.load %arg2[%c0, %c0_0, %c0_1] : memref<2x1x8xf32, #tpu.memory_space<vmem>>, vector<2x1x8xf32>
    %c0_2 = arith.constant 0 : index
    %c0_3 = arith.constant 0 : index
    %1 = vector.load %arg3[%c0_2, %c0_3] : memref<16x1xf32, #tpu.memory_space<vmem>>, vector<16x1xf32>
    %c0_4 = arith.constant 0 : index
    %c0_5 = arith.constant 0 : index
    %2 = vector.load %arg0[%c0_4, %c0_5] : memref<16x8xf32, #tpu.memory_space<vmem>>, vector<16x8xf32>
    %3 = arith.truncf %2 : vector<16x8xf32> to vector<16x8xbf16>
    %c0_6 = arith.constant 0 : index
    %c0_7 = arith.constant 0 : index
    %4 = vector.load %arg4[%c0_6, %c0_7] : memref<8x32xbf16, #tpu.memory_space<vmem>>, vector<8x32xbf16>
    %cst = arith.constant dense<0.000000e+00> : vector<16x32xf32>
    %5 = tpu.matmul %3, %4, %cst {dimension_numbers = #tpu.dot_dimension_numbers<[1], [0], [0], [1], [0, 0, 1, 1], [], []>} : vector<16x8xbf16>, vector<8x32xbf16>, vector<16x32xf32> -> vector<16x32xf32>
    %c0_8 = arith.constant 0 : index
    %c0_9 = arith.constant 0 : index
    %6 = vector.load %arg5[%c0_8, %c0_9] : memref<1x32xf32, #tpu.memory_space<vmem>>, vector<1x32xf32>
    %7 = vector.broadcast %6 : vector<1x32xf32> to vector<16x32xf32>
    %8 = arith.addf %5, %7 : vector<16x32xf32>
    %c0_10 = arith.constant 0 : index
    %c0_11 = arith.constant 0 : index
    %9 = vector.load %arg1[%c0_10, %c0_11] : memref<16x32xf32, #tpu.memory_space<vmem>>, vector<16x32xf32>
    %10 = arith.addf %8, %9 : vector<16x32xf32>
    %c0_i32 = arith.constant 0 : i32
    %11 = arith.truncf %10 : vector<16x32xf32> to vector<16x32xbf16>
    %12 = arith.index_cast %c0_i32 : i32 to index
    %c0_12 = arith.constant 0 : index
    %c0_13 = arith.constant 0 : index
    %13 = vector.load %arg6[%12, %c0_12, %c0_13] : memref<2x32x96xbf16, #tpu.memory_space<vmem>>, vector<1x32x96xbf16>
    %14 = vector.shape_cast %13 : vector<1x32x96xbf16> to vector<32x96xbf16>
    %cst_14 = arith.constant dense<0.000000e+00> : vector<16x96xf32>
    %15 = tpu.matmul %11, %14, %cst_14 {dimension_numbers = #tpu.dot_dimension_numbers<[1], [0], [0], [1], [0, 0, 1, 1], [], []>} : vector<16x32xbf16>, vector<32x96xbf16>, vector<16x96xf32> -> vector<16x96xf32>
    %16 = arith.index_cast %c0_i32 : i32 to index
    %c0_15 = arith.constant 0 : index
    %c0_16 = arith.constant 0 : index
    %17 = vector.load %arg7[%16, %c0_15, %c0_16] : memref<2x1x96xf32, #tpu.memory_space<vmem>>, vector<1x1x96xf32>
    %18 = vector.shape_cast %17 : vector<1x1x96xf32> to vector<1x96xf32>
    %19 = vector.broadcast %18 : vector<1x96xf32> to vector<16x96xf32>
    %20 = arith.addf %15, %19 : vector<16x96xf32>
    %21 = vector.shape_cast %20 : vector<16x96xf32> to vector<2x8x96xf32>
    %22 = vector.extract_strided_slice %21 {offsets = [0, 0, 0], sizes = [2, 8, 8], strides = [1, 1, 1]} : vector<2x8x96xf32> to vector<2x8x8xf32>
    %23 = arith.truncf %22 : vector<2x8x8xf32> to vector<2x8x8xbf16>
    %24 = vector.extract_strided_slice %21 {offsets = [0, 0, 32], sizes = [2, 8, 8], strides = [1, 1, 1]} : vector<2x8x96xf32> to vector<2x8x8xf32>
    %25 = arith.truncf %24 : vector<2x8x8xf32> to vector<2x8x8xbf16>
    %26 = vector.extract_strided_slice %21 {offsets = [0, 0, 64], sizes = [2, 8, 8], strides = [1, 1, 1]} : vector<2x8x96xf32> to vector<2x8x8xf32>
    %27 = arith.truncf %26 : vector<2x8x8xf32> to vector<2x8x8xbf16>
    "tpu.trace_start"() <{level = 10 : i32, message = "bqe,bke->bqk"}> : () -> ()
    %cst_17 = arith.constant dense<0.000000e+00> : vector<2x8x8xf32>
    %28 = tpu.matmul %23, %25, %cst_17 {dimension_numbers = #tpu.dot_dimension_numbers<[2], [2], [1], [1], [0, 0, 0, 1, 1, 1], [0], [0]>} : vector<2x8x8xbf16>, vector<2x8x8xbf16>, vector<2x8x8xf32> -> vector<2x8x8xf32>
    "tpu.trace_stop"() : () -> ()
    %cst_18 = arith.constant 0.353553385 : f32
    %29 = vector.broadcast %cst_18 : f32 to vector<2x8x8xf32>
    %30 = arith.mulf %28, %29 : vector<2x8x8xf32>
    %31 = vector.broadcast %0 : vector<2x1x8xf32> to vector<2x8x8xf32>
    %32 = arith.addf %30, %31 : vector<2x8x8xf32>
    %cst_19 = arith.constant dense<0xFF800000> : vector<2x8xf32>
    %33 = vector.multi_reduction <maximumf>, %32, %cst_19 [2] : vector<2x8x8xf32> to vector<2x8xf32>
    %34 = vector.shape_cast %33 : vector<2x8xf32> to vector<2x8x1xf32>
    %35 = vector.broadcast %34 : vector<2x8x1xf32> to vector<2x8x8xf32>
    %36 = arith.subf %32, %35 : vector<2x8x8xf32>
    %37 = math.exp %36 : vector<2x8x8xf32>
    %cst_20 = arith.constant dense<0.000000e+00> : vector<2x8xf32>
    %38 = vector.multi_reduction <add>, %37, %cst_20 [2] : vector<2x8x8xf32> to vector<2x8xf32>
    %39 = vector.shape_cast %38 : vector<2x8xf32> to vector<2x8x1xf32>
    %40 = arith.truncf %37 : vector<2x8x8xf32> to vector<2x8x8xbf16>
    "tpu.trace_start"() <{level = 10 : i32, message = "bqk,bkv->bqv"}> : () -> ()
    %cst_21 = arith.constant dense<0.000000e+00> : vector<2x8x8xf32>
    %41 = tpu.matmul %40, %27, %cst_21 {dimension_numbers = #tpu.dot_dimension_numbers<[2], [1], [1], [2], [0, 0, 0, 1, 1, 2], [0], [0]>} : vector<2x8x8xbf16>, vector<2x8x8xbf16>, vector<2x8x8xf32> -> vector<2x8x8xf32>
    "tpu.trace_stop"() : () -> ()
    %42 = tpu.reciprocal %39 {approx = true} : vector<2x8x1xf32> -> vector<2x8x1xf32>
    %43 = vector.broadcast %42 : vector<2x8x1xf32> to vector<2x8x8xf32>
    %44 = arith.mulf %41, %43 : vector<2x8x8xf32>
    %45 = vector.extract_strided_slice %21 {offsets = [0, 0, 8], sizes = [2, 8, 8], strides = [1, 1, 1]} : vector<2x8x96xf32> to vector<2x8x8xf32>
    %46 = arith.truncf %45 : vector<2x8x8xf32> to vector<2x8x8xbf16>
    %47 = vector.extract_strided_slice %21 {offsets = [0, 0, 40], sizes = [2, 8, 8], strides = [1, 1, 1]} : vector<2x8x96xf32> to vector<2x8x8xf32>
    %48 = arith.truncf %47 : vector<2x8x8xf32> to vector<2x8x8xbf16>
    %49 = vector.extract_strided_slice %21 {offsets = [0, 0, 72], sizes = [2, 8, 8], strides = [1, 1, 1]} : vector<2x8x96xf32> to vector<2x8x8xf32>
    %50 = arith.truncf %49 : vector<2x8x8xf32> to vector<2x8x8xbf16>
    "tpu.trace_start"() <{level = 10 : i32, message = "bqe,bke->bqk"}> : () -> ()
    %cst_22 = arith.constant dense<0.000000e+00> : vector<2x8x8xf32>
    %51 = tpu.matmul %46, %48, %cst_22 {dimension_numbers = #tpu.dot_dimension_numbers<[2], [2], [1], [1], [0, 0, 0, 1, 1, 1], [0], [0]>} : vector<2x8x8xbf16>, vector<2x8x8xbf16>, vector<2x8x8xf32> -> vector<2x8x8xf32>
    "tpu.trace_stop"() : () -> ()
    %cst_23 = arith.constant 0.353553385 : f32
    %52 = vector.broadcast %cst_23 : f32 to vector<2x8x8xf32>
    %53 = arith.mulf %51, %52 : vector<2x8x8xf32>
    %54 = vector.broadcast %0 : vector<2x1x8xf32> to vector<2x8x8xf32>
    %55 = arith.addf %53, %54 : vector<2x8x8xf32>
    %cst_24 = arith.constant dense<0xFF800000> : vector<2x8xf32>
    %56 = vector.multi_reduction <maximumf>, %55, %cst_24 [2] : vector<2x8x8xf32> to vector<2x8xf32>
    %57 = vector.shape_cast %56 : vector<2x8xf32> to vector<2x8x1xf32>
    %58 = vector.broadcast %57 : vector<2x8x1xf32> to vector<2x8x8xf32>
    %59 = arith.subf %55, %58 : vector<2x8x8xf32>
    %60 = math.exp %59 : vector<2x8x8xf32>
    %cst_25 = arith.constant dense<0.000000e+00> : vector<2x8xf32>
    %61 = vector.multi_reduction <add>, %60, %cst_25 [2] : vector<2x8x8xf32> to vector<2x8xf32>
    %62 = vector.shape_cast %61 : vector<2x8xf32> to vector<2x8x1xf32>
    %63 = arith.truncf %60 : vector<2x8x8xf32> to vector<2x8x8xbf16>
    "tpu.trace_start"() <{level = 10 : i32, message = "bqk,bkv->bqv"}> : () -> ()
    %cst_26 = arith.constant dense<0.000000e+00> : vector<2x8x8xf32>
    %64 = tpu.matmul %63, %50, %cst_26 {dimension_numbers = #tpu.dot_dimension_numbers<[2], [1], [1], [2], [0, 0, 0, 1, 1, 2], [0], [0]>} : vector<2x8x8xbf16>, vector<2x8x8xbf16>, vector<2x8x8xf32> -> vector<2x8x8xf32>
    "tpu.trace_stop"() : () -> ()
    %65 = tpu.reciprocal %62 {approx = true} : vector<2x8x1xf32> -> vector<2x8x1xf32>
    %66 = vector.broadcast %65 : vector<2x8x1xf32> to vector<2x8x8xf32>
    %67 = arith.mulf %64, %66 : vector<2x8x8xf32>
    %68 = vector.extract_strided_slice %21 {offsets = [0, 0, 16], sizes = [2, 8, 8], strides = [1, 1, 1]} : vector<2x8x96xf32> to vector<2x8x8xf32>
    %69 = arith.truncf %68 : vector<2x8x8xf32> to vector<2x8x8xbf16>
    %70 = vector.extract_strided_slice %21 {offsets = [0, 0, 48], sizes = [2, 8, 8], strides = [1, 1, 1]} : vector<2x8x96xf32> to vector<2x8x8xf32>
    %71 = arith.truncf %70 : vector<2x8x8xf32> to vector<2x8x8xbf16>
    %72 = vector.extract_strided_slice %21 {offsets = [0, 0, 80], sizes = [2, 8, 8], strides = [1, 1, 1]} : vector<2x8x96xf32> to vector<2x8x8xf32>
    %73 = arith.truncf %72 : vector<2x8x8xf32> to vector<2x8x8xbf16>
    "tpu.trace_start"() <{level = 10 : i32, message = "bqe,bke->bqk"}> : () -> ()
    %cst_27 = arith.constant dense<0.000000e+00> : vector<2x8x8xf32>
    %74 = tpu.matmul %69, %71, %cst_27 {dimension_numbers = #tpu.dot_dimension_numbers<[2], [2], [1], [1], [0, 0, 0, 1, 1, 1], [0], [0]>} : vector<2x8x8xbf16>, vector<2x8x8xbf16>, vector<2x8x8xf32> -> vector<2x8x8xf32>
    "tpu.trace_stop"() : () -> ()
    %cst_28 = arith.constant 0.353553385 : f32
    %75 = vector.broadcast %cst_28 : f32 to vector<2x8x8xf32>
    %76 = arith.mulf %74, %75 : vector<2x8x8xf32>
    %77 = vector.broadcast %0 : vector<2x1x8xf32> to vector<2x8x8xf32>
    %78 = arith.addf %76, %77 : vector<2x8x8xf32>
    %cst_29 = arith.constant dense<0xFF800000> : vector<2x8xf32>
    %79 = vector.multi_reduction <maximumf>, %78, %cst_29 [2] : vector<2x8x8xf32> to vector<2x8xf32>
    %80 = vector.shape_cast %79 : vector<2x8xf32> to vector<2x8x1xf32>
    %81 = vector.broadcast %80 : vector<2x8x1xf32> to vector<2x8x8xf32>
    %82 = arith.subf %78, %81 : vector<2x8x8xf32>
    %83 = math.exp %82 : vector<2x8x8xf32>
    %cst_30 = arith.constant dense<0.000000e+00> : vector<2x8xf32>
    %84 = vector.multi_reduction <add>, %83, %cst_30 [2] : vector<2x8x8xf32> to vector<2x8xf32>
    %85 = vector.shape_cast %84 : vector<2x8xf32> to vector<2x8x1xf32>
    %86 = arith.truncf %83 : vector<2x8x8xf32> to vector<2x8x8xbf16>
    "tpu.trace_start"() <{level = 10 : i32, message = "bqk,bkv->bqv"}> : () -> ()
    %cst_31 = arith.constant dense<0.000000e+00> : vector<2x8x8xf32>
    %87 = tpu.matmul %86, %73, %cst_31 {dimension_numbers = #tpu.dot_dimension_numbers<[2], [1], [1], [2], [0, 0, 0, 1, 1, 2], [0], [0]>} : vector<2x8x8xbf16>, vector<2x8x8xbf16>, vector<2x8x8xf32> -> vector<2x8x8xf32>
    "tpu.trace_stop"() : () -> ()
    %88 = tpu.reciprocal %85 {approx = true} : vector<2x8x1xf32> -> vector<2x8x1xf32>
    %89 = vector.broadcast %88 : vector<2x8x1xf32> to vector<2x8x8xf32>
    %90 = arith.mulf %87, %89 : vector<2x8x8xf32>
    %91 = vector.extract_strided_slice %21 {offsets = [0, 0, 24], sizes = [2, 8, 8], strides = [1, 1, 1]} : vector<2x8x96xf32> to vector<2x8x8xf32>
    %92 = arith.truncf %91 : vector<2x8x8xf32> to vector<2x8x8xbf16>
    %93 = vector.extract_strided_slice %21 {offsets = [0, 0, 56], sizes = [2, 8, 8], strides = [1, 1, 1]} : vector<2x8x96xf32> to vector<2x8x8xf32>
    %94 = arith.truncf %93 : vector<2x8x8xf32> to vector<2x8x8xbf16>
    %95 = vector.extract_strided_slice %21 {offsets = [0, 0, 88], sizes = [2, 8, 8], strides = [1, 1, 1]} : vector<2x8x96xf32> to vector<2x8x8xf32>
    %96 = arith.truncf %95 : vector<2x8x8xf32> to vector<2x8x8xbf16>
    "tpu.trace_start"() <{level = 10 : i32, message = "bqe,bke->bqk"}> : () -> ()
    %cst_32 = arith.constant dense<0.000000e+00> : vector<2x8x8xf32>
    %97 = tpu.matmul %92, %94, %cst_32 {dimension_numbers = #tpu.dot_dimension_numbers<[2], [2], [1], [1], [0, 0, 0, 1, 1, 1], [0], [0]>} : vector<2x8x8xbf16>, vector<2x8x8xbf16>, vector<2x8x8xf32> -> vector<2x8x8xf32>
    "tpu.trace_stop"() : () -> ()
    %cst_33 = arith.constant 0.353553385 : f32
    %98 = vector.broadcast %cst_33 : f32 to vector<2x8x8xf32>
    %99 = arith.mulf %97, %98 : vector<2x8x8xf32>
    %100 = vector.broadcast %0 : vector<2x1x8xf32> to vector<2x8x8xf32>
    %101 = arith.addf %99, %100 : vector<2x8x8xf32>
    %cst_34 = arith.constant dense<0xFF800000> : vector<2x8xf32>
    %102 = vector.multi_reduction <maximumf>, %101, %cst_34 [2] : vector<2x8x8xf32> to vector<2x8xf32>
    %103 = vector.shape_cast %102 : vector<2x8xf32> to vector<2x8x1xf32>
    %104 = vector.broadcast %103 : vector<2x8x1xf32> to vector<2x8x8xf32>
    %105 = arith.subf %101, %104 : vector<2x8x8xf32>
    %106 = math.exp %105 : vector<2x8x8xf32>
    %cst_35 = arith.constant dense<0.000000e+00> : vector<2x8xf32>
    %107 = vector.multi_reduction <add>, %106, %cst_35 [2] : vector<2x8x8xf32> to vector<2x8xf32>
    %108 = vector.shape_cast %107 : vector<2x8xf32> to vector<2x8x1xf32>
    %109 = arith.truncf %106 : vector<2x8x8xf32> to vector<2x8x8xbf16>
    "tpu.trace_start"() <{level = 10 : i32, message = "bqk,bkv->bqv"}> : () -> ()
    %cst_36 = arith.constant dense<0.000000e+00> : vector<2x8x8xf32>
    %110 = tpu.matmul %109, %96, %cst_36 {dimension_numbers = #tpu.dot_dimension_numbers<[2], [1], [1], [2], [0, 0, 0, 1, 1, 2], [0], [0]>} : vector<2x8x8xbf16>, vector<2x8x8xbf16>, vector<2x8x8xf32> -> vector<2x8x8xf32>
    "tpu.trace_stop"() : () -> ()
    %111 = tpu.reciprocal %108 {approx = true} : vector<2x8x1xf32> -> vector<2x8x1xf32>
    %112 = vector.broadcast %111 : vector<2x8x1xf32> to vector<2x8x8xf32>
    %113 = arith.mulf %110, %112 : vector<2x8x8xf32>
    %114 = tpu.concatenate %44, %67, %90, %113 in 2 : vector<2x8x8xf32>, vector<2x8x8xf32>, vector<2x8x8xf32>, vector<2x8x8xf32> -> vector<2x8x32xf32>
    %115 = vector.shape_cast %114 : vector<2x8x32xf32> to vector<16x32xf32>
    %116 = arith.truncf %115 : vector<16x32xf32> to vector<16x32xbf16>
    %117 = arith.index_cast %c0_i32 : i32 to index
    %c0_37 = arith.constant 0 : index
    %c0_38 = arith.constant 0 : index
    %118 = vector.load %arg8[%117, %c0_37, %c0_38] : memref<2x32x32xbf16, #tpu.memory_space<vmem>>, vector<1x32x32xbf16>
    %119 = vector.shape_cast %118 : vector<1x32x32xbf16> to vector<32x32xbf16>
    %cst_39 = arith.constant dense<0.000000e+00> : vector<16x32xf32>
    %120 = tpu.matmul %116, %119, %cst_39 {dimension_numbers = #tpu.dot_dimension_numbers<[1], [0], [0], [1], [0, 0, 1, 1], [], []>} : vector<16x32xbf16>, vector<32x32xbf16>, vector<16x32xf32> -> vector<16x32xf32>
    %121 = arith.index_cast %c0_i32 : i32 to index
    %c0_40 = arith.constant 0 : index
    %c0_41 = arith.constant 0 : index
    %122 = vector.load %arg9[%121, %c0_40, %c0_41] : memref<2x1x32xf32, #tpu.memory_space<vmem>>, vector<1x1x32xf32>
    %123 = vector.shape_cast %122 : vector<1x1x32xf32> to vector<1x32xf32>
    %124 = vector.broadcast %123 : vector<1x32xf32> to vector<16x32xf32>
    %125 = arith.addf %120, %124 : vector<16x32xf32>
    %126 = arith.addf %125, %10 : vector<16x32xf32>
    %127 = arith.index_cast %c0_i32 : i32 to index
    %c0_42 = arith.constant 0 : index
    %c0_43 = arith.constant 0 : index
    %128 = vector.load %arg10[%127, %c0_42, %c0_43] : memref<2x1x32xf32, #tpu.memory_space<vmem>>, vector<1x1x32xf32>
    %129 = vector.shape_cast %128 : vector<1x1x32xf32> to vector<1x32xf32>
    %130 = arith.index_cast %c0_i32 : i32 to index
    %c0_44 = arith.constant 0 : index
    %c0_45 = arith.constant 0 : index
    %131 = vector.load %arg11[%130, %c0_44, %c0_45] : memref<2x1x32xf32, #tpu.memory_space<vmem>>, vector<1x1x32xf32>
    %132 = vector.shape_cast %131 : vector<1x1x32xf32> to vector<1x32xf32>
    %cst_46 = arith.constant dense<0.000000e+00> : vector<16xf32>
    %133 = vector.multi_reduction <add>, %126, %cst_46 [1] : vector<16x32xf32> to vector<16xf32>
    %134 = vector.shape_cast %133 : vector<16xf32> to vector<16x1xf32>
    %cst_47 = arith.constant 3.200000e+01 : f32
    %135 = vector.broadcast %cst_47 : f32 to vector<16x1xf32>
    %136 = arith.divf %134, %135 : vector<16x1xf32>
    %137 = vector.broadcast %136 : vector<16x1xf32> to vector<16x32xf32>
    %138 = arith.subf %126, %137 : vector<16x32xf32>
    %139 = arith.mulf %138, %138 : vector<16x32xf32>
    %cst_48 = arith.constant dense<0.000000e+00> : vector<16xf32>
    %140 = vector.multi_reduction <add>, %139, %cst_48 [1] : vector<16x32xf32> to vector<16xf32>
    %141 = vector.shape_cast %140 : vector<16xf32> to vector<16x1xf32>
    %cst_49 = arith.constant 3.200000e+01 : f32
    %142 = vector.broadcast %cst_49 : f32 to vector<16x1xf32>
    %143 = arith.divf %141, %142 : vector<16x1xf32>
    %cst_50 = arith.constant 9.99999974E-6 : f32
    %144 = vector.broadcast %cst_50 : f32 to vector<16x1xf32>
    %145 = arith.addf %143, %144 : vector<16x1xf32>
    %146 = math.rsqrt %145 : vector<16x1xf32>
    %147 = vector.broadcast %146 : vector<16x1xf32> to vector<16x32xf32>
    %148 = arith.mulf %138, %147 : vector<16x32xf32>
    %149 = vector.broadcast %129 : vector<1x32xf32> to vector<16x32xf32>
    %150 = arith.mulf %148, %149 : vector<16x32xf32>
    %151 = vector.broadcast %132 : vector<1x32xf32> to vector<16x32xf32>
    %152 = arith.addf %150, %151 : vector<16x32xf32>
    %153 = vector.broadcast %1 : vector<16x1xf32> to vector<16x32xf32>
    %154 = arith.mulf %152, %153 : vector<16x32xf32>
    %155 = arith.truncf %154 : vector<16x32xf32> to vector<16x32xbf16>
    %156 = arith.index_cast %c0_i32 : i32 to index
    %c0_51 = arith.constant 0 : index
    %c0_52 = arith.constant 0 : index
    %157 = vector.load %arg12[%156, %c0_51, %c0_52] : memref<2x32x64xbf16, #tpu.memory_space<vmem>>, vector<1x32x64xbf16>
    %158 = vector.shape_cast %157 : vector<1x32x64xbf16> to vector<32x64xbf16>
    %cst_53 = arith.constant dense<0.000000e+00> : vector<16x64xf32>
    %159 = tpu.matmul %155, %158, %cst_53 {dimension_numbers = #tpu.dot_dimension_numbers<[1], [0], [0], [1], [0, 0, 1, 1], [], []>} : vector<16x32xbf16>, vector<32x64xbf16>, vector<16x64xf32> -> vector<16x64xf32>
    %160 = arith.index_cast %c0_i32 : i32 to index
    %c0_54 = arith.constant 0 : index
    %c0_55 = arith.constant 0 : index
    %161 = vector.load %arg13[%160, %c0_54, %c0_55] : memref<2x1x64xf32, #tpu.memory_space<vmem>>, vector<1x1x64xf32>
    %162 = vector.shape_cast %161 : vector<1x1x64xf32> to vector<1x64xf32>
    %163 = vector.broadcast %162 : vector<1x64xf32> to vector<16x64xf32>
    %164 = arith.addf %159, %163 : vector<16x64xf32>
    %cst_56 = arith.constant 0.000000e+00 : f32
    %165 = vector.broadcast %cst_56 : f32 to vector<16x64xf32>
    %166 = arith.maximumf %164, %165 : vector<16x64xf32>
    %167 = arith.truncf %166 : vector<16x64xf32> to vector<16x64xbf16>
    %168 = arith.index_cast %c0_i32 : i32 to index
    %c0_57 = arith.constant 0 : index
    %c0_58 = arith.constant 0 : index
    %169 = vector.load %arg14[%168, %c0_57, %c0_58] : memref<2x64x32xbf16, #tpu.memory_space<vmem>>, vector<1x64x32xbf16>
    %170 = vector.shape_cast %169 : vector<1x64x32xbf16> to vector<64x32xbf16>
    %cst_59 = arith.constant dense<0.000000e+00> : vector<16x32xf32>
    %171 = tpu.matmul %167, %170, %cst_59 {dimension_numbers = #tpu.dot_dimension_numbers<[1], [0], [0], [1], [0, 0, 1, 1], [], []>} : vector<16x64xbf16>, vector<64x32xbf16>, vector<16x32xf32> -> vector<16x32xf32>
    %172 = arith.index_cast %c0_i32 : i32 to index
    %c0_60 = arith.constant 0 : index
    %c0_61 = arith.constant 0 : index
    %173 = vector.load %arg15[%172, %c0_60, %c0_61] : memref<2x1x32xf32, #tpu.memory_space<vmem>>, vector<1x1x32xf32>
    %174 = vector.shape_cast %173 : vector<1x1x32xf32> to vector<1x32xf32>
    %175 = vector.broadcast %174 : vector<1x32xf32> to vector<16x32xf32>
    %176 = arith.addf %171, %175 : vector<16x32xf32>
    %177 = arith.addf %176, %154 : vector<16x32xf32>
    %178 = arith.index_cast %c0_i32 : i32 to index
    %c0_62 = arith.constant 0 : index
    %c0_63 = arith.constant 0 : index
    %179 = vector.load %arg16[%178, %c0_62, %c0_63] : memref<2x1x32xf32, #tpu.memory_space<vmem>>, vector<1x1x32xf32>
    %180 = vector.shape_cast %179 : vector<1x1x32xf32> to vector<1x32xf32>
    %181 = arith.index_cast %c0_i32 : i32 to index
    %c0_64 = arith.constant 0 : index
    %c0_65 = arith.constant 0 : index
    %182 = vector.load %arg17[%181, %c0_64, %c0_65] : memref<2x1x32xf32, #tpu.memory_space<vmem>>, vector<1x1x32xf32>
    %183 = vector.shape_cast %182 : vector<1x1x32xf32> to vector<1x32xf32>
    %cst_66 = arith.constant dense<0.000000e+00> : vector<16xf32>
    %184 = vector.multi_reduction <add>, %177, %cst_66 [1] : vector<16x32xf32> to vector<16xf32>
    %185 = vector.shape_cast %184 : vector<16xf32> to vector<16x1xf32>
    %cst_67 = arith.constant 3.200000e+01 : f32
    %186 = vector.broadcast %cst_67 : f32 to vector<16x1xf32>
    %187 = arith.divf %185, %186 : vector<16x1xf32>
    %188 = vector.broadcast %187 : vector<16x1xf32> to vector<16x32xf32>
    %189 = arith.subf %177, %188 : vector<16x32xf32>
    %190 = arith.mulf %189, %189 : vector<16x32xf32>
    %cst_68 = arith.constant dense<0.000000e+00> : vector<16xf32>
    %191 = vector.multi_reduction <add>, %190, %cst_68 [1] : vector<16x32xf32> to vector<16xf32>
    %192 = vector.shape_cast %191 : vector<16xf32> to vector<16x1xf32>
    %cst_69 = arith.constant 3.200000e+01 : f32
    %193 = vector.broadcast %cst_69 : f32 to vector<16x1xf32>
    %194 = arith.divf %192, %193 : vector<16x1xf32>
    %cst_70 = arith.constant 9.99999974E-6 : f32
    %195 = vector.broadcast %cst_70 : f32 to vector<16x1xf32>
    %196 = arith.addf %194, %195 : vector<16x1xf32>
    %197 = math.rsqrt %196 : vector<16x1xf32>
    %198 = vector.broadcast %197 : vector<16x1xf32> to vector<16x32xf32>
    %199 = arith.mulf %189, %198 : vector<16x32xf32>
    %200 = vector.broadcast %180 : vector<1x32xf32> to vector<16x32xf32>
    %201 = arith.mulf %199, %200 : vector<16x32xf32>
    %202 = vector.broadcast %183 : vector<1x32xf32> to vector<16x32xf32>
    %203 = arith.addf %201, %202 : vector<16x32xf32>
    %204 = vector.broadcast %1 : vector<16x1xf32> to vector<16x32xf32>
    %205 = arith.mulf %203, %204 : vector<16x32xf32>
    %c1_i32 = arith.constant 1 : i32
    %206 = arith.truncf %205 : vector<16x32xf32> to vector<16x32xbf16>
    %207 = arith.index_cast %c1_i32 : i32 to index
    %c0_71 = arith.constant 0 : index
    %c0_72 = arith.constant 0 : index
    %208 = vector.load %arg6[%207, %c0_71, %c0_72] : memref<2x32x96xbf16, #tpu.memory_space<vmem>>, vector<1x32x96xbf16>
    %209 = vector.shape_cast %208 : vector<1x32x96xbf16> to vector<32x96xbf16>
    %cst_73 = arith.constant dense<0.000000e+00> : vector<16x96xf32>
    %210 = tpu.matmul %206, %209, %cst_73 {dimension_numbers = #tpu.dot_dimension_numbers<[1], [0], [0], [1], [0, 0, 1, 1], [], []>} : vector<16x32xbf16>, vector<32x96xbf16>, vector<16x96xf32> -> vector<16x96xf32>
    %211 = arith.index_cast %c1_i32 : i32 to index
    %c0_74 = arith.constant 0 : index
    %c0_75 = arith.constant 0 : index
    %212 = vector.load %arg7[%211, %c0_74, %c0_75] : memref<2x1x96xf32, #tpu.memory_space<vmem>>, vector<1x1x96xf32>
    %213 = vector.shape_cast %212 : vector<1x1x96xf32> to vector<1x96xf32>
    %214 = vector.broadcast %213 : vector<1x96xf32> to vector<16x96xf32>
    %215 = arith.addf %210, %214 : vector<16x96xf32>
    %216 = vector.shape_cast %215 : vector<16x96xf32> to vector<2x8x96xf32>
    %217 = vector.extract_strided_slice %216 {offsets = [0, 0, 0], sizes = [2, 8, 8], strides = [1, 1, 1]} : vector<2x8x96xf32> to vector<2x8x8xf32>
    %218 = arith.truncf %217 : vector<2x8x8xf32> to vector<2x8x8xbf16>
    %219 = vector.extract_strided_slice %216 {offsets = [0, 0, 32], sizes = [2, 8, 8], strides = [1, 1, 1]} : vector<2x8x96xf32> to vector<2x8x8xf32>
    %220 = arith.truncf %219 : vector<2x8x8xf32> to vector<2x8x8xbf16>
    %221 = vector.extract_strided_slice %216 {offsets = [0, 0, 64], sizes = [2, 8, 8], strides = [1, 1, 1]} : vector<2x8x96xf32> to vector<2x8x8xf32>
    %222 = arith.truncf %221 : vector<2x8x8xf32> to vector<2x8x8xbf16>
    "tpu.trace_start"() <{level = 10 : i32, message = "bqe,bke->bqk"}> : () -> ()
    %cst_76 = arith.constant dense<0.000000e+00> : vector<2x8x8xf32>
    %223 = tpu.matmul %218, %220, %cst_76 {dimension_numbers = #tpu.dot_dimension_numbers<[2], [2], [1], [1], [0, 0, 0, 1, 1, 1], [0], [0]>} : vector<2x8x8xbf16>, vector<2x8x8xbf16>, vector<2x8x8xf32> -> vector<2x8x8xf32>
    "tpu.trace_stop"() : () -> ()
    %cst_77 = arith.constant 0.353553385 : f32
    %224 = vector.broadcast %cst_77 : f32 to vector<2x8x8xf32>
    %225 = arith.mulf %223, %224 : vector<2x8x8xf32>
    %226 = vector.broadcast %0 : vector<2x1x8xf32> to vector<2x8x8xf32>
    %227 = arith.addf %225, %226 : vector<2x8x8xf32>
    %cst_78 = arith.constant dense<0xFF800000> : vector<2x8xf32>
    %228 = vector.multi_reduction <maximumf>, %227, %cst_78 [2] : vector<2x8x8xf32> to vector<2x8xf32>
    %229 = vector.shape_cast %228 : vector<2x8xf32> to vector<2x8x1xf32>
    %230 = vector.broadcast %229 : vector<2x8x1xf32> to vector<2x8x8xf32>
    %231 = arith.subf %227, %230 : vector<2x8x8xf32>
    %232 = math.exp %231 : vector<2x8x8xf32>
    %cst_79 = arith.constant dense<0.000000e+00> : vector<2x8xf32>
    %233 = vector.multi_reduction <add>, %232, %cst_79 [2] : vector<2x8x8xf32> to vector<2x8xf32>
    %234 = vector.shape_cast %233 : vector<2x8xf32> to vector<2x8x1xf32>
    %235 = arith.truncf %232 : vector<2x8x8xf32> to vector<2x8x8xbf16>
    "tpu.trace_start"() <{level = 10 : i32, message = "bqk,bkv->bqv"}> : () -> ()
    %cst_80 = arith.constant dense<0.000000e+00> : vector<2x8x8xf32>
    %236 = tpu.matmul %235, %222, %cst_80 {dimension_numbers = #tpu.dot_dimension_numbers<[2], [1], [1], [2], [0, 0, 0, 1, 1, 2], [0], [0]>} : vector<2x8x8xbf16>, vector<2x8x8xbf16>, vector<2x8x8xf32> -> vector<2x8x8xf32>
    "tpu.trace_stop"() : () -> ()
    %237 = tpu.reciprocal %234 {approx = true} : vector<2x8x1xf32> -> vector<2x8x1xf32>
    %238 = vector.broadcast %237 : vector<2x8x1xf32> to vector<2x8x8xf32>
    %239 = arith.mulf %236, %238 : vector<2x8x8xf32>
    %240 = vector.extract_strided_slice %216 {offsets = [0, 0, 8], sizes = [2, 8, 8], strides = [1, 1, 1]} : vector<2x8x96xf32> to vector<2x8x8xf32>
    %241 = arith.truncf %240 : vector<2x8x8xf32> to vector<2x8x8xbf16>
    %242 = vector.extract_strided_slice %216 {offsets = [0, 0, 40], sizes = [2, 8, 8], strides = [1, 1, 1]} : vector<2x8x96xf32> to vector<2x8x8xf32>
    %243 = arith.truncf %242 : vector<2x8x8xf32> to vector<2x8x8xbf16>
    %244 = vector.extract_strided_slice %216 {offsets = [0, 0, 72], sizes = [2, 8, 8], strides = [1, 1, 1]} : vector<2x8x96xf32> to vector<2x8x8xf32>
    %245 = arith.truncf %244 : vector<2x8x8xf32> to vector<2x8x8xbf16>
    "tpu.trace_start"() <{level = 10 : i32, message = "bqe,bke->bqk"}> : () -> ()
    %cst_81 = arith.constant dense<0.000000e+00> : vector<2x8x8xf32>
    %246 = tpu.matmul %241, %243, %cst_81 {dimension_numbers = #tpu.dot_dimension_numbers<[2], [2], [1], [1], [0, 0, 0, 1, 1, 1], [0], [0]>} : vector<2x8x8xbf16>, vector<2x8x8xbf16>, vector<2x8x8xf32> -> vector<2x8x8xf32>
    "tpu.trace_stop"() : () -> ()
    %cst_82 = arith.constant 0.353553385 : f32
    %247 = vector.broadcast %cst_82 : f32 to vector<2x8x8xf32>
    %248 = arith.mulf %246, %247 : vector<2x8x8xf32>
    %249 = vector.broadcast %0 : vector<2x1x8xf32> to vector<2x8x8xf32>
    %250 = arith.addf %248, %249 : vector<2x8x8xf32>
    %cst_83 = arith.constant dense<0xFF800000> : vector<2x8xf32>
    %251 = vector.multi_reduction <maximumf>, %250, %cst_83 [2] : vector<2x8x8xf32> to vector<2x8xf32>
    %252 = vector.shape_cast %251 : vector<2x8xf32> to vector<2x8x1xf32>
    %253 = vector.broadcast %252 : vector<2x8x1xf32> to vector<2x8x8xf32>
    %254 = arith.subf %250, %253 : vector<2x8x8xf32>
    %255 = math.exp %254 : vector<2x8x8xf32>
    %cst_84 = arith.constant dense<0.000000e+00> : vector<2x8xf32>
    %256 = vector.multi_reduction <add>, %255, %cst_84 [2] : vector<2x8x8xf32> to vector<2x8xf32>
    %257 = vector.shape_cast %256 : vector<2x8xf32> to vector<2x8x1xf32>
    %258 = arith.truncf %255 : vector<2x8x8xf32> to vector<2x8x8xbf16>
    "tpu.trace_start"() <{level = 10 : i32, message = "bqk,bkv->bqv"}> : () -> ()
    %cst_85 = arith.constant dense<0.000000e+00> : vector<2x8x8xf32>
    %259 = tpu.matmul %258, %245, %cst_85 {dimension_numbers = #tpu.dot_dimension_numbers<[2], [1], [1], [2], [0, 0, 0, 1, 1, 2], [0], [0]>} : vector<2x8x8xbf16>, vector<2x8x8xbf16>, vector<2x8x8xf32> -> vector<2x8x8xf32>
    "tpu.trace_stop"() : () -> ()
    %260 = tpu.reciprocal %257 {approx = true} : vector<2x8x1xf32> -> vector<2x8x1xf32>
    %261 = vector.broadcast %260 : vector<2x8x1xf32> to vector<2x8x8xf32>
    %262 = arith.mulf %259, %261 : vector<2x8x8xf32>
    %263 = vector.extract_strided_slice %216 {offsets = [0, 0, 16], sizes = [2, 8, 8], strides = [1, 1, 1]} : vector<2x8x96xf32> to vector<2x8x8xf32>
    %264 = arith.truncf %263 : vector<2x8x8xf32> to vector<2x8x8xbf16>
    %265 = vector.extract_strided_slice %216 {offsets = [0, 0, 48], sizes = [2, 8, 8], strides = [1, 1, 1]} : vector<2x8x96xf32> to vector<2x8x8xf32>
    %266 = arith.truncf %265 : vector<2x8x8xf32> to vector<2x8x8xbf16>
    %267 = vector.extract_strided_slice %216 {offsets = [0, 0, 80], sizes = [2, 8, 8], strides = [1, 1, 1]} : vector<2x8x96xf32> to vector<2x8x8xf32>
    %268 = arith.truncf %267 : vector<2x8x8xf32> to vector<2x8x8xbf16>
    "tpu.trace_start"() <{level = 10 : i32, message = "bqe,bke->bqk"}> : () -> ()
    %cst_86 = arith.constant dense<0.000000e+00> : vector<2x8x8xf32>
    %269 = tpu.matmul %264, %266, %cst_86 {dimension_numbers = #tpu.dot_dimension_numbers<[2], [2], [1], [1], [0, 0, 0, 1, 1, 1], [0], [0]>} : vector<2x8x8xbf16>, vector<2x8x8xbf16>, vector<2x8x8xf32> -> vector<2x8x8xf32>
    "tpu.trace_stop"() : () -> ()
    %cst_87 = arith.constant 0.353553385 : f32
    %270 = vector.broadcast %cst_87 : f32 to vector<2x8x8xf32>
    %271 = arith.mulf %269, %270 : vector<2x8x8xf32>
    %272 = vector.broadcast %0 : vector<2x1x8xf32> to vector<2x8x8xf32>
    %273 = arith.addf %271, %272 : vector<2x8x8xf32>
    %cst_88 = arith.constant dense<0xFF800000> : vector<2x8xf32>
    %274 = vector.multi_reduction <maximumf>, %273, %cst_88 [2] : vector<2x8x8xf32> to vector<2x8xf32>
    %275 = vector.shape_cast %274 : vector<2x8xf32> to vector<2x8x1xf32>
    %276 = vector.broadcast %275 : vector<2x8x1xf32> to vector<2x8x8xf32>
    %277 = arith.subf %273, %276 : vector<2x8x8xf32>
    %278 = math.exp %277 : vector<2x8x8xf32>
    %cst_89 = arith.constant dense<0.000000e+00> : vector<2x8xf32>
    %279 = vector.multi_reduction <add>, %278, %cst_89 [2] : vector<2x8x8xf32> to vector<2x8xf32>
    %280 = vector.shape_cast %279 : vector<2x8xf32> to vector<2x8x1xf32>
    %281 = arith.truncf %278 : vector<2x8x8xf32> to vector<2x8x8xbf16>
    "tpu.trace_start"() <{level = 10 : i32, message = "bqk,bkv->bqv"}> : () -> ()
    %cst_90 = arith.constant dense<0.000000e+00> : vector<2x8x8xf32>
    %282 = tpu.matmul %281, %268, %cst_90 {dimension_numbers = #tpu.dot_dimension_numbers<[2], [1], [1], [2], [0, 0, 0, 1, 1, 2], [0], [0]>} : vector<2x8x8xbf16>, vector<2x8x8xbf16>, vector<2x8x8xf32> -> vector<2x8x8xf32>
    "tpu.trace_stop"() : () -> ()
    %283 = tpu.reciprocal %280 {approx = true} : vector<2x8x1xf32> -> vector<2x8x1xf32>
    %284 = vector.broadcast %283 : vector<2x8x1xf32> to vector<2x8x8xf32>
    %285 = arith.mulf %282, %284 : vector<2x8x8xf32>
    %286 = vector.extract_strided_slice %216 {offsets = [0, 0, 24], sizes = [2, 8, 8], strides = [1, 1, 1]} : vector<2x8x96xf32> to vector<2x8x8xf32>
    %287 = arith.truncf %286 : vector<2x8x8xf32> to vector<2x8x8xbf16>
    %288 = vector.extract_strided_slice %216 {offsets = [0, 0, 56], sizes = [2, 8, 8], strides = [1, 1, 1]} : vector<2x8x96xf32> to vector<2x8x8xf32>
    %289 = arith.truncf %288 : vector<2x8x8xf32> to vector<2x8x8xbf16>
    %290 = vector.extract_strided_slice %216 {offsets = [0, 0, 88], sizes = [2, 8, 8], strides = [1, 1, 1]} : vector<2x8x96xf32> to vector<2x8x8xf32>
    %291 = arith.truncf %290 : vector<2x8x8xf32> to vector<2x8x8xbf16>
    "tpu.trace_start"() <{level = 10 : i32, message = "bqe,bke->bqk"}> : () -> ()
    %cst_91 = arith.constant dense<0.000000e+00> : vector<2x8x8xf32>
    %292 = tpu.matmul %287, %289, %cst_91 {dimension_numbers = #tpu.dot_dimension_numbers<[2], [2], [1], [1], [0, 0, 0, 1, 1, 1], [0], [0]>} : vector<2x8x8xbf16>, vector<2x8x8xbf16>, vector<2x8x8xf32> -> vector<2x8x8xf32>
    "tpu.trace_stop"() : () -> ()
    %cst_92 = arith.constant 0.353553385 : f32
    %293 = vector.broadcast %cst_92 : f32 to vector<2x8x8xf32>
    %294 = arith.mulf %292, %293 : vector<2x8x8xf32>
    %295 = vector.broadcast %0 : vector<2x1x8xf32> to vector<2x8x8xf32>
    %296 = arith.addf %294, %295 : vector<2x8x8xf32>
    %cst_93 = arith.constant dense<0xFF800000> : vector<2x8xf32>
    %297 = vector.multi_reduction <maximumf>, %296, %cst_93 [2] : vector<2x8x8xf32> to vector<2x8xf32>
    %298 = vector.shape_cast %297 : vector<2x8xf32> to vector<2x8x1xf32>
    %299 = vector.broadcast %298 : vector<2x8x1xf32> to vector<2x8x8xf32>
    %300 = arith.subf %296, %299 : vector<2x8x8xf32>
    %301 = math.exp %300 : vector<2x8x8xf32>
    %cst_94 = arith.constant dense<0.000000e+00> : vector<2x8xf32>
    %302 = vector.multi_reduction <add>, %301, %cst_94 [2] : vector<2x8x8xf32> to vector<2x8xf32>
    %303 = vector.shape_cast %302 : vector<2x8xf32> to vector<2x8x1xf32>
    %304 = arith.truncf %301 : vector<2x8x8xf32> to vector<2x8x8xbf16>
    "tpu.trace_start"() <{level = 10 : i32, message = "bqk,bkv->bqv"}> : () -> ()
    %cst_95 = arith.constant dense<0.000000e+00> : vector<2x8x8xf32>
    %305 = tpu.matmul %304, %291, %cst_95 {dimension_numbers = #tpu.dot_dimension_numbers<[2], [1], [1], [2], [0, 0, 0, 1, 1, 2], [0], [0]>} : vector<2x8x8xbf16>, vector<2x8x8xbf16>, vector<2x8x8xf32> -> vector<2x8x8xf32>
    "tpu.trace_stop"() : () -> ()
    %306 = tpu.reciprocal %303 {approx = true} : vector<2x8x1xf32> -> vector<2x8x1xf32>
    %307 = vector.broadcast %306 : vector<2x8x1xf32> to vector<2x8x8xf32>
    %308 = arith.mulf %305, %307 : vector<2x8x8xf32>
    %309 = tpu.concatenate %239, %262, %285, %308 in 2 : vector<2x8x8xf32>, vector<2x8x8xf32>, vector<2x8x8xf32>, vector<2x8x8xf32> -> vector<2x8x32xf32>
    %310 = vector.shape_cast %309 : vector<2x8x32xf32> to vector<16x32xf32>
    %311 = arith.truncf %310 : vector<16x32xf32> to vector<16x32xbf16>
    %312 = arith.index_cast %c1_i32 : i32 to index
    %c0_96 = arith.constant 0 : index
    %c0_97 = arith.constant 0 : index
    %313 = vector.load %arg8[%312, %c0_96, %c0_97] : memref<2x32x32xbf16, #tpu.memory_space<vmem>>, vector<1x32x32xbf16>
    %314 = vector.shape_cast %313 : vector<1x32x32xbf16> to vector<32x32xbf16>
    %cst_98 = arith.constant dense<0.000000e+00> : vector<16x32xf32>
    %315 = tpu.matmul %311, %314, %cst_98 {dimension_numbers = #tpu.dot_dimension_numbers<[1], [0], [0], [1], [0, 0, 1, 1], [], []>} : vector<16x32xbf16>, vector<32x32xbf16>, vector<16x32xf32> -> vector<16x32xf32>
    %316 = arith.index_cast %c1_i32 : i32 to index
    %c0_99 = arith.constant 0 : index
    %c0_100 = arith.constant 0 : index
    %317 = vector.load %arg9[%316, %c0_99, %c0_100] : memref<2x1x32xf32, #tpu.memory_space<vmem>>, vector<1x1x32xf32>
    %318 = vector.shape_cast %317 : vector<1x1x32xf32> to vector<1x32xf32>
    %319 = vector.broadcast %318 : vector<1x32xf32> to vector<16x32xf32>
    %320 = arith.addf %315, %319 : vector<16x32xf32>
    %321 = arith.addf %320, %205 : vector<16x32xf32>
    %322 = arith.index_cast %c1_i32 : i32 to index
    %c0_101 = arith.constant 0 : index
    %c0_102 = arith.constant 0 : index
    %323 = vector.load %arg10[%322, %c0_101, %c0_102] : memref<2x1x32xf32, #tpu.memory_space<vmem>>, vector<1x1x32xf32>
    %324 = vector.shape_cast %323 : vector<1x1x32xf32> to vector<1x32xf32>
    %325 = arith.index_cast %c1_i32 : i32 to index
    %c0_103 = arith.constant 0 : index
    %c0_104 = arith.constant 0 : index
    %326 = vector.load %arg11[%325, %c0_103, %c0_104] : memref<2x1x32xf32, #tpu.memory_space<vmem>>, vector<1x1x32xf32>
    %327 = vector.shape_cast %326 : vector<1x1x32xf32> to vector<1x32xf32>
    %cst_105 = arith.constant dense<0.000000e+00> : vector<16xf32>
    %328 = vector.multi_reduction <add>, %321, %cst_105 [1] : vector<16x32xf32> to vector<16xf32>
    %329 = vector.shape_cast %328 : vector<16xf32> to vector<16x1xf32>
    %cst_106 = arith.constant 3.200000e+01 : f32
    %330 = vector.broadcast %cst_106 : f32 to vector<16x1xf32>
    %331 = arith.divf %329, %330 : vector<16x1xf32>
    %332 = vector.broadcast %331 : vector<16x1xf32> to vector<16x32xf32>
    %333 = arith.subf %321, %332 : vector<16x32xf32>
    %334 = arith.mulf %333, %333 : vector<16x32xf32>
    %cst_107 = arith.constant dense<0.000000e+00> : vector<16xf32>
    %335 = vector.multi_reduction <add>, %334, %cst_107 [1] : vector<16x32xf32> to vector<16xf32>
    %336 = vector.shape_cast %335 : vector<16xf32> to vector<16x1xf32>
    %cst_108 = arith.constant 3.200000e+01 : f32
    %337 = vector.broadcast %cst_108 : f32 to vector<16x1xf32>
    %338 = arith.divf %336, %337 : vector<16x1xf32>
    %cst_109 = arith.constant 9.99999974E-6 : f32
    %339 = vector.broadcast %cst_109 : f32 to vector<16x1xf32>
    %340 = arith.addf %338, %339 : vector<16x1xf32>
    %341 = math.rsqrt %340 : vector<16x1xf32>
    %342 = vector.broadcast %341 : vector<16x1xf32> to vector<16x32xf32>
    %343 = arith.mulf %333, %342 : vector<16x32xf32>
    %344 = vector.broadcast %324 : vector<1x32xf32> to vector<16x32xf32>
    %345 = arith.mulf %343, %344 : vector<16x32xf32>
    %346 = vector.broadcast %327 : vector<1x32xf32> to vector<16x32xf32>
    %347 = arith.addf %345, %346 : vector<16x32xf32>
    %348 = vector.broadcast %1 : vector<16x1xf32> to vector<16x32xf32>
    %349 = arith.mulf %347, %348 : vector<16x32xf32>
    %350 = arith.truncf %349 : vector<16x32xf32> to vector<16x32xbf16>
    %351 = arith.index_cast %c1_i32 : i32 to index
    %c0_110 = arith.constant 0 : index
    %c0_111 = arith.constant 0 : index
    %352 = vector.load %arg12[%351, %c0_110, %c0_111] : memref<2x32x64xbf16, #tpu.memory_space<vmem>>, vector<1x32x64xbf16>
    %353 = vector.shape_cast %352 : vector<1x32x64xbf16> to vector<32x64xbf16>
    %cst_112 = arith.constant dense<0.000000e+00> : vector<16x64xf32>
    %354 = tpu.matmul %350, %353, %cst_112 {dimension_numbers = #tpu.dot_dimension_numbers<[1], [0], [0], [1], [0, 0, 1, 1], [], []>} : vector<16x32xbf16>, vector<32x64xbf16>, vector<16x64xf32> -> vector<16x64xf32>
    %355 = arith.index_cast %c1_i32 : i32 to index
    %c0_113 = arith.constant 0 : index
    %c0_114 = arith.constant 0 : index
    %356 = vector.load %arg13[%355, %c0_113, %c0_114] : memref<2x1x64xf32, #tpu.memory_space<vmem>>, vector<1x1x64xf32>
    %357 = vector.shape_cast %356 : vector<1x1x64xf32> to vector<1x64xf32>
    %358 = vector.broadcast %357 : vector<1x64xf32> to vector<16x64xf32>
    %359 = arith.addf %354, %358 : vector<16x64xf32>
    %cst_115 = arith.constant 0.000000e+00 : f32
    %360 = vector.broadcast %cst_115 : f32 to vector<16x64xf32>
    %361 = arith.maximumf %359, %360 : vector<16x64xf32>
    %362 = arith.truncf %361 : vector<16x64xf32> to vector<16x64xbf16>
    %363 = arith.index_cast %c1_i32 : i32 to index
    %c0_116 = arith.constant 0 : index
    %c0_117 = arith.constant 0 : index
    %364 = vector.load %arg14[%363, %c0_116, %c0_117] : memref<2x64x32xbf16, #tpu.memory_space<vmem>>, vector<1x64x32xbf16>
    %365 = vector.shape_cast %364 : vector<1x64x32xbf16> to vector<64x32xbf16>
    %cst_118 = arith.constant dense<0.000000e+00> : vector<16x32xf32>
    %366 = tpu.matmul %362, %365, %cst_118 {dimension_numbers = #tpu.dot_dimension_numbers<[1], [0], [0], [1], [0, 0, 1, 1], [], []>} : vector<16x64xbf16>, vector<64x32xbf16>, vector<16x32xf32> -> vector<16x32xf32>
    %367 = arith.index_cast %c1_i32 : i32 to index
    %c0_119 = arith.constant 0 : index
    %c0_120 = arith.constant 0 : index
    %368 = vector.load %arg15[%367, %c0_119, %c0_120] : memref<2x1x32xf32, #tpu.memory_space<vmem>>, vector<1x1x32xf32>
    %369 = vector.shape_cast %368 : vector<1x1x32xf32> to vector<1x32xf32>
    %370 = vector.broadcast %369 : vector<1x32xf32> to vector<16x32xf32>
    %371 = arith.addf %366, %370 : vector<16x32xf32>
    %372 = arith.addf %371, %349 : vector<16x32xf32>
    %373 = arith.index_cast %c1_i32 : i32 to index
    %c0_121 = arith.constant 0 : index
    %c0_122 = arith.constant 0 : index
    %374 = vector.load %arg16[%373, %c0_121, %c0_122] : memref<2x1x32xf32, #tpu.memory_space<vmem>>, vector<1x1x32xf32>
    %375 = vector.shape_cast %374 : vector<1x1x32xf32> to vector<1x32xf32>
    %376 = arith.index_cast %c1_i32 : i32 to index
    %c0_123 = arith.constant 0 : index
    %c0_124 = arith.constant 0 : index
    %377 = vector.load %arg17[%376, %c0_123, %c0_124] : memref<2x1x32xf32, #tpu.memory_space<vmem>>, vector<1x1x32xf32>
    %378 = vector.shape_cast %377 : vector<1x1x32xf32> to vector<1x32xf32>
    %cst_125 = arith.constant dense<0.000000e+00> : vector<16xf32>
    %379 = vector.multi_reduction <add>, %372, %cst_125 [1] : vector<16x32xf32> to vector<16xf32>
    %380 = vector.shape_cast %379 : vector<16xf32> to vector<16x1xf32>
    %cst_126 = arith.constant 3.200000e+01 : f32
    %381 = vector.broadcast %cst_126 : f32 to vector<16x1xf32>
    %382 = arith.divf %380, %381 : vector<16x1xf32>
    %383 = vector.broadcast %382 : vector<16x1xf32> to vector<16x32xf32>
    %384 = arith.subf %372, %383 : vector<16x32xf32>
    %385 = arith.mulf %384, %384 : vector<16x32xf32>
    %cst_127 = arith.constant dense<0.000000e+00> : vector<16xf32>
    %386 = vector.multi_reduction <add>, %385, %cst_127 [1] : vector<16x32xf32> to vector<16xf32>
    %387 = vector.shape_cast %386 : vector<16xf32> to vector<16x1xf32>
    %cst_128 = arith.constant 3.200000e+01 : f32
    %388 = vector.broadcast %cst_128 : f32 to vector<16x1xf32>
    %389 = arith.divf %387, %388 : vector<16x1xf32>
    %cst_129 = arith.constant 9.99999974E-6 : f32
    %390 = vector.broadcast %cst_129 : f32 to vector<16x1xf32>
    %391 = arith.addf %389, %390 : vector<16x1xf32>
    %392 = math.rsqrt %391 : vector<16x1xf32>
    %393 = vector.broadcast %392 : vector<16x1xf32> to vector<16x32xf32>
    %394 = arith.mulf %384, %393 : vector<16x32xf32>
    %395 = vector.broadcast %375 : vector<1x32xf32> to vector<16x32xf32>
    %396 = arith.mulf %394, %395 : vector<16x32xf32>
    %397 = vector.broadcast %378 : vector<1x32xf32> to vector<16x32xf32>
    %398 = arith.addf %396, %397 : vector<16x32xf32>
    %399 = vector.broadcast %1 : vector<16x1xf32> to vector<16x32xf32>
    %400 = arith.mulf %398, %399 : vector<16x32xf32>
    %c2_i32 = arith.constant 2 : i32
    %c0_130 = arith.constant 0 : index
    %c0_131 = arith.constant 0 : index
    %401 = vector.load %arg18[%c0_130, %c0_131] : memref<16x32xf32, #tpu.memory_space<vmem>>, vector<16x32xf32>
    tpu.vector_store %arg18[%c0_130, %c0_131], %400 {strides = array<i32>} : memref<16x32xf32, #tpu.memory_space<vmem>>, vector<16x32xf32>,
    return
  }
}

</mosaic_0001>

<llo_original>
// kernel: encoder_forward.1
$region0: #{encoder_forward.1}
  #allocation0 [shape = 'u32[]', space=smem, size = 0x4, offset = 0x4, fixed_abs, tag = 'smem constant byte address 0x4 - core index']
  #allocation1 [shape = 'u32[144,128]{1,0:T(1,128)}', space=vmem, size = 0x12000, scoped, tag = 'internal scratch']
  %s0 = inlined_call_operand.vmem [shape: f32[16,8], index: 0, kind: input, shape index: {}]
  %s1 = inlined_call_operand.vmem [shape: f32[16,32], index: 1, kind: input, shape index: {}]
  %s2 = inlined_call_operand.vmem [shape: f32[2,1,8], index: 2, kind: input, shape index: {}]
  %s3 = inlined_call_operand.vmem [shape: f32[16,1], index: 3, kind: input, shape index: {}]
  %s4 = inlined_call_operand.vmem [shape: bf16[8,32], index: 4, kind: input, shape index: {}]
  %s5 = inlined_call_operand.vmem [shape: f32[1,32], index: 5, kind: input, shape index: {}]
  %s6 = inlined_call_operand.vmem [shape: bf16[2,32,96], index: 6, kind: input, shape index: {}]
  %s7 = inlined_call_operand.vmem [shape: f32[2,1,96], index: 7, kind: input, shape index: {}]
  %s8 = inlined_call_operand.vmem [shape: bf16[2,32,32], index: 8, kind: input, shape index: {}]
  %s9 = inlined_call_operand.vmem [shape: f32[2,1,32], index: 9, kind: input, shape index: {}]
  %s10 = inlined_call_operand.vmem [shape: f32[2,1,32], index: 10, kind: input, shape index: {}]
  %s11 = inlined_call_operand.vmem [shape: f32[2,1,32], index: 11, kind: input, shape index: {}]
  %s12 = inlined_call_operand.vmem [shape: bf16[2,32,64], index: 12, kind: input, shape index: {}]
  %s13 = inlined_call_operand.vmem [shape: f32[2,1,64], index: 13, kind: input, shape index: {}]
  %s14 = inlined_call_operand.vmem [shape: bf16[2,64,32], index: 14, kind: input, shape index: {}]
  %s15 = inlined_call_operand.vmem [shape: f32[2,1,32], index: 15, kind: input, shape index: {}]
  %s16 = inlined_call_operand.vmem [shape: f32[2,1,32], index: 16, kind: input, shape index: {}]
  %s17 = inlined_call_operand.vmem [shape: f32[2,1,32], index: 17, kind: input, shape index: {}]
  %s18 = inlined_call_operand.hbm [shape: f32[16,32], index: 18, kind: output, shape index: {}]
  %s19 = sld [smem:[#allocation0]]
  $region82: #{encoder_forward.1} parent=0
    _
  %s21 = ssub.s32 1, %s19
  %s22 = scalar_select 0, %s21, %s19
  $region1: #{encoder_forward.1} parent=0
    #allocation2 [shape = 'u8[8192]{0}', space=vmem, size = 0x2000, scoped, tag = 'output window, operand 0, single buffered']
    #allocation3 [shape = 's32[1]{0}', space=sflag, size = 0x4, scoped, tag = 'scoped memory for encoder_forward.1']
    %23 = vsyncpa [#allocation3], 0
    // Predicated region
    $region2: #{encoder_forward.1} parent=1 // pred_check
      _
    $region3: #{encoder_forward.1} parent=1 // pred_check_branch
      %25 = sbr.rel (0) target = $region5
    $region4: #{encoder_forward.1} parent=1 // pred_region
      _
    $region5: #{encoder_forward.1} parent=1 // pred_fallthru
      _
    // Predicated region
    $region6: #{encoder_forward.1} parent=1 // pred_check
      _
    $region7: #{encoder_forward.1} parent=1 // pred_check_branch
      %27 = sbr.rel (0) target = $region9
    $region8: #{encoder_forward.1} parent=1 // pred_region
      _
    $region9: #{encoder_forward.1} parent=1 // pred_fallthru
      _
    // Predicated region
    $region10: #{encoder_forward.1} parent=1 // pred_check
      _
    $region11: #{encoder_forward.1} parent=1 // pred_check_branch
      %29 = sbr.rel (0) target = $region13
    $region12: #{encoder_forward.1} parent=1 // pred_region
      _
    $region13: #{encoder_forward.1} parent=1 // pred_fallthru
      _
    // Predicated region
    $region14: #{encoder_forward.1} parent=1 // pred_check
      _
    $region15: #{encoder_forward.1} parent=1 // pred_check_branch
      %31 = sbr.rel (0) target = $region17
    $region16: #{encoder_forward.1} parent=1 // pred_region
      _
    $region17: #{encoder_forward.1} parent=1 // pred_fallthru
      _
    // Predicated region
    $region18: #{encoder_forward.1} parent=1 // pred_check
      _
    $region19: #{encoder_forward.1} parent=1 // pred_check_branch
      %33 = sbr.rel (0) target = $region21
    $region20: #{encoder_forward.1} parent=1 // pred_region
      _
    $region21: #{encoder_forward.1} parent=1 // pred_fallthru
      _
    // Predicated region
    $region22: #{encoder_forward.1} parent=1 // pred_check
      _
    $region23: #{encoder_forward.1} parent=1 // pred_check_branch
      %35 = sbr.rel (0) target = $region25
    $region24: #{encoder_forward.1} parent=1 // pred_region
      _
    $region25: #{encoder_forward.1} parent=1 // pred_fallthru
      _
    // Predicated region
    $region26: #{encoder_forward.1} parent=1 // pred_check
      _
    $region27: #{encoder_forward.1} parent=1 // pred_check_branch
      %37 = sbr.rel (0) target = $region29
    $region28: #{encoder_forward.1} parent=1 // pred_region
      _
    $region29: #{encoder_forward.1} parent=1 // pred_fallthru
      _
    // Predicated region
    $region30: #{encoder_forward.1} parent=1 // pred_check
      _
    $region31: #{encoder_forward.1} parent=1 // pred_check_branch
      %39 = sbr.rel (0) target = $region33
    $region32: #{encoder_forward.1} parent=1 // pred_region
      _
    $region33: #{encoder_forward.1} parent=1 // pred_fallthru
      _
    // Predicated region
    $region34: #{encoder_forward.1} parent=1 // pred_check
      _
    $region35: #{encoder_forward.1} parent=1 // pred_check_branch
      %41 = sbr.rel (0) target = $region37
    $region36: #{encoder_forward.1} parent=1 // pred_region
      _
    $region37: #{encoder_forward.1} parent=1 // pred_fallthru
      _
    // Predicated region
    $region38: #{encoder_forward.1} parent=1 // pred_check
      _
    $region39: #{encoder_forward.1} parent=1 // pred_check_branch
      %43 = sbr.rel (0) target = $region41
    $region40: #{encoder_forward.1} parent=1 // pred_region
      _
    $region41: #{encoder_forward.1} parent=1 // pred_fallthru
      _
    // Predicated region
    $region42: #{encoder_forward.1} parent=1 // pred_check
      _
    $region43: #{encoder_forward.1} parent=1 // pred_check_branch
      %45 = sbr.rel (0) target = $region45
    $region44: #{encoder_forward.1} parent=1 // pred_region
      _
    $region45: #{encoder_forward.1} parent=1 // pred_fallthru
      _
    // Predicated region
    $region46: #{encoder_forward.1} parent=1 // pred_check
      _
    $region47: #{encoder_forward.1} parent=1 // pred_check_branch
      %47 = sbr.rel (0) target = $region49
    $region48: #{encoder_forward.1} parent=1 // pred_region
      _
    $region49: #{encoder_forward.1} parent=1 // pred_fallthru
      _
    // Predicated region
    $region50: #{encoder_forward.1} parent=1 // pred_check
      _
    $region51: #{encoder_forward.1} parent=1 // pred_check_branch
      %49 = sbr.rel (0) target = $region53
    $region52: #{encoder_forward.1} parent=1 // pred_region
      _
    $region53: #{encoder_forward.1} parent=1 // pred_fallthru
      _
    // Predicated region
    $region54: #{encoder_forward.1} parent=1 // pred_check
      _
    $region55: #{encoder_forward.1} parent=1 // pred_check_branch
      %51 = sbr.rel (0) target = $region57
    $region56: #{encoder_forward.1} parent=1 // pred_region
      _
    $region57: #{encoder_forward.1} parent=1 // pred_fallthru
      _
    // Predicated region
    $region58: #{encoder_forward.1} parent=1 // pred_check
      _
    $region59: #{encoder_forward.1} parent=1 // pred_check_branch
      %53 = sbr.rel (0) target = $region61
    $region60: #{encoder_forward.1} parent=1 // pred_region
      _
    $region61: #{encoder_forward.1} parent=1 // pred_fallthru
      _
    // Predicated region
    $region62: #{encoder_forward.1} parent=1 // pred_check
      _
    $region63: #{encoder_forward.1} parent=1 // pred_check_branch
      %55 = sbr.rel (0) target = $region65
    $region64: #{encoder_forward.1} parent=1 // pred_region
      _
    $region65: #{encoder_forward.1} parent=1 // pred_fallthru
      _
    // Predicated region
    $region66: #{encoder_forward.1} parent=1 // pred_check
      _
    $region67: #{encoder_forward.1} parent=1 // pred_check_branch
      %57 = sbr.rel (0) target = $region69
    $region68: #{encoder_forward.1} parent=1 // pred_region
      _
    $region69: #{encoder_forward.1} parent=1 // pred_fallthru
      _
    // Predicated region
    $region70: #{encoder_forward.1} parent=1 // pred_check
      _
    $region71: #{encoder_forward.1} parent=1 // pred_check_branch
      %59 = sbr.rel (0) target = $region73
    $region72: #{encoder_forward.1} parent=1 // pred_region
      _
    $region73: #{encoder_forward.1} parent=1 // pred_fallthru
      _
    %v61 = vld [vmem:[%s2] sm:$0x1]
    %v62 = vld [vmem:[%s2 + $0x1] sm:$0x1]
    %v63 = vld [vmem:[%s3] sm:$0xff]
    %v64 = vld [vmem:[%s3 + $0x8] sm:$0xff]
    %v65 = vld [vmem:[%s0] sm:$0xff]
    %v66 = vld [vmem:[%s0 + $0x8] sm:$0xff]
    %v67 = vpack.c.bf16 %v66, %v65
    %v68 = vld [vmem:[%s4] sm:$0xf]
    %v69 = vld [vmem:[%s5] sm:$0x1]
    %v71 = vlaneseq
    %v72 = vshrl.u32 %v71, 7
    %v73 = vsub.s32 0, %v72
    %v74 = vrot.slane %v69, %v73
    %vm76 = vcmask 64512
    %v78 = vsel %vm76, %v67, 0
    %vm80 = vcmask 1043456
    %v82 = vsel %vm80, %v68, 0
    %84 = vmatprep.subr.bf16.mxu0 0
    %85 = vmatpush1.bf16.msra.mxu0 %v82
    %86 = vmatprep.subr.bf16.mxu0 0
    %87 = vmatpush1.bf16.msra.mxu0 0
    %88 = vmatprep.subr.bf16.mxu0 0
    %89 = vmatpush1.bf16.msra.mxu0 0
    %90 = vmatprep.subr.bf16.mxu0 0
    %91 = vmatpush1.bf16.msra.mxu0 0
    %92 = vmatprep.subr.bf16.mxu0 0
    %93 = vmatpush1.bf16.msra.mxu0 0
    %94 = vmatprep.subr.bf16.mxu0 0
    %95 = vmatpush1.bf16.msra.mxu0 0
    %96 = vmatprep.subr.bf16.mxu0 0
    %97 = vmatpush1.bf16.msra.mxu0 0
    %98 = vmatprep.subr.bf16.mxu0 0
    %99 = vmatpush1.bf16.msra.mxu0 0
    %100 = vmatprep.subr.bf16.mxu0 0
    %101 = vmatpush1.bf16.msra.mxu0 0
    %102 = vmatprep.subr.bf16.mxu0 0
    %103 = vmatpush1.bf16.msra.mxu0 0
    %104 = vmatprep.subr.bf16.mxu0 0
    %105 = vmatpush1.bf16.msra.mxu0 0
    %106 = vmatprep.subr.bf16.mxu0 0
    %107 = vmatpush1.bf16.msra.mxu0 0
    %108 = vmatprep.subr.bf16.mxu0 0
    %109 = vmatpush1.bf16.msra.mxu0 0
    %110 = vmatprep.subr.bf16.mxu0 0
    %111 = vmatpush1.bf16.msra.mxu0 0
    %112 = vmatprep.subr.bf16.mxu0 0
    %113 = vmatpush1.bf16.msra.mxu0 0
    %114 = vmatprep.subr.bf16.mxu0 0
    %115 = vmatpush1.bf16.msra.mxu0 0
    %116 = vmatprep.mubr.bf16.mxu0 0
    %117 = vmatmul.mubr.bf16.gmra.mrb[0].mxu0 %v78
    %v118 = vpop.f32.mrb[0].mxu0
    %v119 = vadd.f32 %v74, %v118
    %v120 = vpop.f32.mrb[0].mxu0
    %v121 = vpop.f32.mrb[0].mxu0
    %v122 = vadd.f32 %v74, %v121
    %v123 = vpop.f32.mrb[0].mxu0
    %124 = vdwg.mxu0
    %v125 = vld [vmem:[%s1] sm:$0xff]
    %v126 = vld [vmem:[%s1 + $0x8] sm:$0xff]
    %v127 = vadd.f32 %v119, %v125
    %v128 = vadd.f32 %v122, %v126
    %v129 = vpack.c.bf16 %v128, %v127
    %v130 = vld [vmem:[%s6] sm:$0xf]
    %v131 = vld [vmem:[%s6 + $0x4] sm:$0xf]
    %v132 = vld [vmem:[%s6 + $0x8] sm:$0xf]
    %v133 = vld [vmem:[%s6 + $0xc] sm:$0xf]
    %v134 = vld [vmem:[%s7] sm:$0x1]
    %v136 = vlaneseq
    %v137 = vshrl.u32 %v136, 7
    %v138 = vsub.s32 0, %v137
    %v139 = vrot.slane %v134, %v138
    %v145 = vunpack.c.l.b16 %v130
    %v146 = vunpack.c.l.b16 %v131
    %v147 = vunpack.c.l.b16 %v132
    %v148 = vunpack.c.l.b16 %v133
    %v149 = vpack.c.b16 %v146, %v145
    %v150 = vpack.c.b16 %v148, %v147
    %vm153 = vcmask 261120
    %v155 = vsel %vm153, %v129, 0
    %157 = vmatprep.subr.bf16.mxu0 0
    %158 = vmatpush1.bf16.msra.mxu0 %v149
    %159 = vmatprep.subr.bf16.mxu0 0
    %160 = vmatpush1.bf16.msra.mxu0 %v150
    %161 = vmatprep.subr.bf16.mxu0 0
    %162 = vmatpush1.bf16.msra.mxu0 0
    %163 = vmatprep.subr.bf16.mxu0 0
    %164 = vmatpush1.bf16.msra.mxu0 0
    %165 = vmatprep.subr.bf16.mxu0 0
    %166 = vmatpush1.bf16.msra.mxu0 0
    %167 = vmatprep.subr.bf16.mxu0 0
    %168 = vmatpush1.bf16.msra.mxu0 0
    %169 = vmatprep.subr.bf16.mxu0 0
    %170 = vmatpush1.bf16.msra.mxu0 0
    %171 = vmatprep.subr.bf16.mxu0 0
    %172 = vmatpush1.bf16.msra.mxu0 0
    %173 = vmatprep.subr.bf16.mxu0 0
    %174 = vmatpush1.bf16.msra.mxu0 0
    %175 = vmatprep.subr.bf16.mxu0 0
    %176 = vmatpush1.bf16.msra.mxu0 0
    %177 = vmatprep.subr.bf16.mxu0 0
    %178 = vmatpush1.bf16.msra.mxu0 0
    %179 = vmatprep.subr.bf16.mxu0 0
    %180 = vmatpush1.bf16.msra.mxu0 0
    %181 = vmatprep.subr.bf16.mxu0 0
    %182 = vmatpush1.bf16.msra.mxu0 0
    %183 = vmatprep.subr.bf16.mxu0 0
    %184 = vmatpush1.bf16.msra.mxu0 0
    %185 = vmatprep.subr.bf16.mxu0 0
    %186 = vmatpush1.bf16.msra.mxu0 0
    %187 = vmatprep.subr.bf16.mxu0 0
    %188 = vmatpush1.bf16.msra.mxu0 0
    %189 = vmatprep.mubr.bf16.mxu0 0
    %190 = vmatmul.mubr.bf16.gmra.mrb[0].mxu0 %v155
    %v191 = vpop.f32.mrb[0].mxu0
    %v192 = vadd.f32 %v139, %v191
    %v193 = vpop.f32.mrb[0].mxu0
    %v194 = vpop.f32.mrb[0].mxu0
    %v195 = vadd.f32 %v139, %v194
    %v196 = vpop.f32.mrb[0].mxu0
    %197 = vdwg.mxu0
    %v198 = vpack.c.bf16 %v192, %v192
    %v199 = vpack.c.bf16 %v195, %v195
    %201 = vrot.lane.b32.xlu0 %v198, 96
    %v202 = vpop.permute.xlu0 %201
    %v204 = vsel %vm76, %v198, 0
    %v207 = vsel %vm76, %v202, 0
    %209 = vmatprep.subr.bf16.mxu0 0
    %210 = vmatpush1.bf16.xpose.msra.mxu0 %v207
    %211 = vmatprep.subr.bf16.mxu0 0
    %212 = vmatpush1.bf16.xpose.msra.mxu0 0
    %213 = vmatprep.subr.bf16.mxu0 0
    %214 = vmatpush1.bf16.xpose.msra.mxu0 0
    %215 = vmatprep.subr.bf16.mxu0 0
    %216 = vmatpush1.bf16.xpose.msra.mxu0 0
    %217 = vmatprep.subr.bf16.mxu0 0
    %218 = vmatpush1.bf16.xpose.msra.mxu0 0
    %219 = vmatprep.subr.bf16.mxu0 0
    %220 = vmatpush1.bf16.xpose.msra.mxu0 0
    %221 = vmatprep.subr.bf16.mxu0 0
    %222 = vmatpush1.bf16.xpose.msra.mxu0 0
    %223 = vmatprep.subr.bf16.mxu0 0
    %224 = vmatpush1.bf16.xpose.msra.mxu0 0
    %225 = vmatprep.subr.bf16.mxu0 0
    %226 = vmatpush1.bf16.xpose.msra.mxu0 0
    %227 = vmatprep.subr.bf16.mxu0 0
    %228 = vmatpush1.bf16.xpose.msra.mxu0 0
    %229 = vmatprep.subr.bf16.mxu0 0
    %230 = vmatpush1.bf16.xpose.msra.mxu0 0
    %231 = vmatprep.subr.bf16.mxu0 0
    %232 = vmatpush1.bf16.xpose.msra.mxu0 0
    %233 = vmatprep.subr.bf16.mxu0 0
    %234 = vmatpush1.bf16.xpose.msra.mxu0 0
    %235 = vmatprep.subr.bf16.mxu0 0
    %236 = vmatpush1.bf16.xpose.msra.mxu0 0
    %237 = vmatprep.subr.bf16.mxu0 0
    %238 = vmatpush1.bf16.xpose.msra.mxu0 0
    %239 = vmatprep.subr.bf16.mxu0 0
    %240 = vmatpush1.bf16.xpose.msra.mxu0 0
    %241 = vmatprep.mubr.bf16.mxu0 0
    %242 = vmatmul.mubr.bf16.gmra.mrb[0].mxu0 %v204
    %v243 = vpop.f32.mrb[0].mxu0
    %v244 = vadd.f32 0.0, %v243
    %v245 = vpop.f32.mrb[0].mxu0
    %v246 = vpop.f32.mrb[0].mxu0
    %v247 = vpop.f32.mrb[0].mxu0
    %248 = vdwg.mxu0
    %250 = vrot.lane.b32.xlu0 %v199, 96
    %v251 = vpop.permute.xlu0 %250
    %v253 = vsel %vm76, %v199, 0
    %v256 = vsel %vm76, %v251, 0
    %258 = vmatprep.subr.bf16.mxu0 0
    %259 = vmatpush1.bf16.xpose.msra.mxu0 %v256
    %260 = vmatprep.subr.bf16.mxu0 0
    %261 = vmatpush1.bf16.xpose.msra.mxu0 0
    %262 = vmatprep.subr.bf16.mxu0 0
    %263 = vmatpush1.bf16.xpose.msra.mxu0 0
    %264 = vmatprep.subr.bf16.mxu0 0
    %265 = vmatpush1.bf16.xpose.msra.mxu0 0
    %266 = vmatprep.subr.bf16.mxu0 0
    %267 = vmatpush1.bf16.xpose.msra.mxu0 0
    %268 = vmatprep.subr.bf16.mxu0 0
    %269 = vmatpush1.bf16.xpose.msra.mxu0 0
    %270 = vmatprep.subr.bf16.mxu0 0
    %271 = vmatpush1.bf16.xpose.msra.mxu0 0
    %272 = vmatprep.subr.bf16.mxu0 0
    %273 = vmatpush1.bf16.xpose.msra.mxu0 0
    %274 = vmatprep.subr.bf16.mxu0 0
    %275 = vmatpush1.bf16.xpose.msra.mxu0 0
    %276 = vmatprep.subr.bf16.mxu0 0
    %277 = vmatpush1.bf16.xpose.msra.mxu0 0
    %278 = vmatprep.subr.bf16.mxu0 0
    %279 = vmatpush1.bf16.xpose.msra.mxu0 0
    %280 = vmatprep.subr.bf16.mxu0 0
    %281 = vmatpush1.bf16.xpose.msra.mxu0 0
    %282 = vmatprep.subr.bf16.mxu0 0
    %283 = vmatpush1.bf16.xpose.msra.mxu0 0
    %284 = vmatprep.subr.bf16.mxu0 0
    %285 = vmatpush1.bf16.xpose.msra.mxu0 0
    %286 = vmatprep.subr.bf16.mxu0 0
    %287 = vmatpush1.bf16.xpose.msra.mxu0 0
    %288 = vmatprep.subr.bf16.mxu0 0
    %289 = vmatpush1.bf16.xpose.msra.mxu0 0
    %290 = vmatprep.mubr.bf16.mxu0 0
    %291 = vmatmul.mubr.bf16.gmra.mrb[0].mxu0 %v253
    %v292 = vpop.f32.mrb[0].mxu0
    %v293 = vadd.f32 0.0, %v292
    %v294 = vpop.f32.mrb[0].mxu0
    %v295 = vpop.f32.mrb[0].mxu0
    %v296 = vpop.f32.mrb[0].mxu0
    %297 = vdwg.mxu0
    %v298 = vmul.f32 %v244, 0.35355338
    %v299 = vmul.f32 %v293, 0.35355338
    %v302 = vlaneseq
    %v303 = vshrl.u32 %v302, 7
    %v304 = vsub.s32 0, %v303
    %v305 = vrot.slane %v61, %v304
    %v306 = vlaneseq
    %v307 = vshrl.u32 %v306, 7
    %v308 = vsub.s32 0, %v307
    %v309 = vrot.slane %v62, %v308
    %v312 = vadd.f32 %v298, %v305
    %v313 = vadd.f32 %v299, %v309
    %v314 = vsel %vm76, %v312, -inf
    %315 = vmax.xlane.f32.xlu0 %v314
    %v316 = vpop.xlane.xlu0 %315
    %v317 = vsel %vm76, %v313, -inf
    %318 = vmax.xlane.f32.xlu0 %v317
    %v319 = vpop.xlane.xlu0 %318
    %v320 = vsub.f32 %v312, %v316
    %v321 = vsub.f32 %v313, %v319
    %v322 = vmul.f32 %v320, 1.442695
    %v323 = vpow.pop %v322
    %v324 = vmul.f32 %v321, 1.442695
    %v325 = vpow.pop %v324
    %v326 = vsel %vm76, %v323, 0.0
    %327 = vadd.xlane.f32.xlu0 %v326
    %v328 = vpop.xlane.xlu0 %327
    %v329 = vsel %vm76, %v325, 0.0
    %330 = vadd.xlane.f32.xlu0 %v329
    %v331 = vpop.xlane.xlu0 %330
    %v332 = vpack.c.bf16 %v323, %v323
    %v333 = vpack.c.bf16 %v325, %v325
    %334 = vrot.lane.b32.xlu0 %v198, 64
    %v335 = vpop.permute.xlu0 %334
    %v337 = vsel %vm76, %v332, 0
    %v340 = vsel %vm80, %v335, 0
    %342 = vmatprep.subr.bf16.mxu0 0
    %343 = vmatpush1.bf16.msra.mxu0 %v340
    %344 = vmatprep.subr.bf16.mxu0 0
    %345 = vmatpush1.bf16.msra.mxu0 0
    %346 = vmatprep.subr.bf16.mxu0 0
    %347 = vmatpush1.bf16.msra.mxu0 0
    %348 = vmatprep.subr.bf16.mxu0 0
    %349 = vmatpush1.bf16.msra.mxu0 0
    %350 = vmatprep.subr.bf16.mxu0 0
    %351 = vmatpush1.bf16.msra.mxu0 0
    %352 = vmatprep.subr.bf16.mxu0 0
    %353 = vmatpush1.bf16.msra.mxu0 0
    %354 = vmatprep.subr.bf16.mxu0 0
    %355 = vmatpush1.bf16.msra.mxu0 0
    %356 = vmatprep.subr.bf16.mxu0 0
    %357 = vmatpush1.bf16.msra.mxu0 0
    %358 = vmatprep.subr.bf16.mxu0 0
    %359 = vmatpush1.bf16.msra.mxu0 0
    %360 = vmatprep.subr.bf16.mxu0 0
    %361 = vmatpush1.bf16.msra.mxu0 0
    %362 = vmatprep.subr.bf16.mxu0 0
    %363 = vmatpush1.bf16.msra.mxu0 0
    %364 = vmatprep.subr.bf16.mxu0 0
    %365 = vmatpush1.bf16.msra.mxu0 0
    %366 = vmatprep.subr.bf16.mxu0 0
    %367 = vmatpush1.bf16.msra.mxu0 0
    %368 = vmatprep.subr.bf16.mxu0 0
    %369 = vmatpush1.bf16.msra.mxu0 0
    %370 = vmatprep.subr.bf16.mxu0 0
    %371 = vmatpush1.bf16.msra.mxu0 0
    %372 = vmatprep.subr.bf16.mxu0 0
    %373 = vmatpush1.bf16.msra.mxu0 0
    %374 = vmatprep.mubr.bf16.mxu0 0
    %375 = vmatmul.mubr.bf16.gmra.mrb[0].mxu0 %v337
    %v376 = vpop.f32.mrb[0].mxu0
    %v377 = vadd.f32 0.0, %v376
    %v378 = vpop.f32.mrb[0].mxu0
    %v379 = vpop.f32.mrb[0].mxu0
    %v380 = vpop.f32.mrb[0].mxu0
    %381 = vdwg.mxu0
    %382 = vrot.lane.b32.xlu0 %v199, 64
    %v383 = vpop.permute.xlu0 %382
    %v385 = vsel %vm76, %v333, 0
    %v388 = vsel %vm80, %v383, 0
    %390 = vmatprep.subr.bf16.mxu0 0
    %391 = vmatpush1.bf16.msra.mxu0 %v388
    %392 = vmatprep.subr.bf16.mxu0 0
    %393 = vmatpush1.bf16.msra.mxu0 0
    %394 = vmatprep.subr.bf16.mxu0 0
    %395 = vmatpush1.bf16.msra.mxu0 0
    %396 = vmatprep.subr.bf16.mxu0 0
    %397 = vmatpush1.bf16.msra.mxu0 0
    %398 = vmatprep.subr.bf16.mxu0 0
    %399 = vmatpush1.bf16.msra.mxu0 0
    %400 = vmatprep.subr.bf16.mxu0 0
    %401 = vmatpush1.bf16.msra.mxu0 0
    %402 = vmatprep.subr.bf16.mxu0 0
    %403 = vmatpush1.bf16.msra.mxu0 0
    %404 = vmatprep.subr.bf16.mxu0 0
    %405 = vmatpush1.bf16.msra.mxu0 0
    %406 = vmatprep.subr.bf16.mxu0 0
    %407 = vmatpush1.bf16.msra.mxu0 0
    %408 = vmatprep.subr.bf16.mxu0 0
    %409 = vmatpush1.bf16.msra.mxu0 0
    %410 = vmatprep.subr.bf16.mxu0 0
    %411 = vmatpush1.bf16.msra.mxu0 0
    %412 = vmatprep.subr.bf16.mxu0 0
    %413 = vmatpush1.bf16.msra.mxu0 0
    %414 = vmatprep.subr.bf16.mxu0 0
    %415 = vmatpush1.bf16.msra.mxu0 0
    %416 = vmatprep.subr.bf16.mxu0 0
    %417 = vmatpush1.bf16.msra.mxu0 0
    %418 = vmatprep.subr.bf16.mxu0 0
    %419 = vmatpush1.bf16.msra.mxu0 0
    %420 = vmatprep.subr.bf16.mxu0 0
    %421 = vmatpush1.bf16.msra.mxu0 0
    %422 = vmatprep.mubr.bf16.mxu0 0
    %423 = vmatmul.mubr.bf16.gmra.mrb[0].mxu0 %v385
    %v424 = vpop.f32.mrb[0].mxu0
    %v425 = vadd.f32 0.0, %v424
    %v426 = vpop.f32.mrb[0].mxu0
    %v427 = vpop.f32.mrb[0].mxu0
    %v428 = vpop.f32.mrb[0].mxu0
    %429 = vdwg.mxu0
    %v430 = vrcp.pop %v328
    %v431 = vrcp.pop %v331
    %v432 = vmul.f32 %v377, %v430
    %v433 = vmul.f32 %v425, %v431
    %434 = vrot.lane.b32.xlu0 %v198, 120
    %v435 = vpop.permute.xlu0 %434
    %436 = vrot.lane.b32.xlu0 %v198, 88
    %v437 = vpop.permute.xlu0 %436
    %v439 = vsel %vm76, %v435, 0
    %v442 = vsel %vm76, %v437, 0
    %444 = vmatprep.subr.bf16.mxu0 0
    %445 = vmatpush1.bf16.xpose.msra.mxu0 %v442
    %446 = vmatprep.subr.bf16.mxu0 0
    %447 = vmatpush1.bf16.xpose.msra.mxu0 0
    %448 = vmatprep.subr.bf16.mxu0 0
    %449 = vmatpush1.bf16.xpose.msra.mxu0 0
    %450 = vmatprep.subr.bf16.mxu0 0
    %451 = vmatpush1.bf16.xpose.msra.mxu0 0
    %452 = vmatprep.subr.bf16.mxu0 0
    %453 = vmatpush1.bf16.xpose.msra.mxu0 0
    %454 = vmatprep.subr.bf16.mxu0 0
    %455 = vmatpush1.bf16.xpose.msra.mxu0 0
    %456 = vmatprep.subr.bf16.mxu0 0
    %457 = vmatpush1.bf16.xpose.msra.mxu0 0
    %458 = vmatprep.subr.bf16.mxu0 0
    %459 = vmatpush1.bf16.xpose.msra.mxu0 0
    %460 = vmatprep.subr.bf16.mxu0 0
    %461 = vmatpush1.bf16.xpose.msra.mxu0 0
    %462 = vmatprep.subr.bf16.mxu0 0
    %463 = vmatpush1.bf16.xpose.msra.mxu0 0
    %464 = vmatprep.subr.bf16.mxu0 0
    %465 = vmatpush1.bf16.xpose.msra.mxu0 0
    %466 = vmatprep.subr.bf16.mxu0 0
    %467 = vmatpush1.bf16.xpose.msra.mxu0 0
    %468 = vmatprep.subr.bf16.mxu0 0
    %469 = vmatpush1.bf16.xpose.msra.mxu0 0
    %470 = vmatprep.subr.bf16.mxu0 0
    %471 = vmatpush1.bf16.xpose.msra.mxu0 0
    %472 = vmatprep.subr.bf16.mxu0 0
    %473 = vmatpush1.bf16.xpose.msra.mxu0 0
    %474 = vmatprep.subr.bf16.mxu0 0
    %475 = vmatpush1.bf16.xpose.msra.mxu0 0
    %476 = vmatprep.mubr.bf16.mxu0 0
    %477 = vmatmul.mubr.bf16.gmra.mrb[0].mxu0 %v439
    %v478 = vpop.f32.mrb[0].mxu0
    %v479 = vadd.f32 0.0, %v478
    %v480 = vpop.f32.mrb[0].mxu0
    %v481 = vpop.f32.mrb[0].mxu0
    %v482 = vpop.f32.mrb[0].mxu0
    %483 = vdwg.mxu0
    %484 = vrot.lane.b32.xlu0 %v199, 120
    %v485 = vpop.permute.xlu0 %484
    %486 = vrot.lane.b32.xlu0 %v199, 88
    %v487 = vpop.permute.xlu0 %486
    %v489 = vsel %vm76, %v485, 0
    %v492 = vsel %vm76, %v487, 0
    %494 = vmatprep.subr.bf16.mxu0 0
    %495 = vmatpush1.bf16.xpose.msra.mxu0 %v492
    %496 = vmatprep.subr.bf16.mxu0 0
    %497 = vmatpush1.bf16.xpose.msra.mxu0 0
    %498 = vmatprep.subr.bf16.mxu0 0
    %499 = vmatpush1.bf16.xpose.msra.mxu0 0
    %500 = vmatprep.subr.bf16.mxu0 0
    %501 = vmatpush1.bf16.xpose.msra.mxu0 0
    %502 = vmatprep.subr.bf16.mxu0 0
    %503 = vmatpush1.bf16.xpose.msra.mxu0 0
    %504 = vmatprep.subr.bf16.mxu0 0
    %505 = vmatpush1.bf16.xpose.msra.mxu0 0
    %506 = vmatprep.subr.bf16.mxu0 0
    %507 = vmatpush1.bf16.xpose.msra.mxu0 0
    %508 = vmatprep.subr.bf16.mxu0 0
    %509 = vmatpush1.bf16.xpose.msra.mxu0 0
    %510 = vmatprep.subr.bf16.mxu0 0
    %511 = vmatpush1.bf16.xpose.msra.mxu0 0
    %512 = vmatprep.subr.bf16.mxu0 0
    %513 = vmatpush1.bf16.xpose.msra.mxu0 0
    %514 = vmatprep.subr.bf16.mxu0 0
    %515 = vmatpush1.bf16.xpose.msra.mxu0 0
    %516 = vmatprep.subr.bf16.mxu0 0
    %517 = vmatpush1.bf16.xpose.msra.mxu0 0
    %518 = vmatprep.subr.bf16.mxu0 0
    %519 = vmatpush1.bf16.xpose.msra.mxu0 0
    %520 = vmatprep.subr.bf16.mxu0 0
    %521 = vmatpush1.bf16.xpose.msra.mxu0 0
    %522 = vmatprep.subr.bf16.mxu0 0
    %523 = vmatpush1.bf16.xpose.msra.mxu0 0
    %524 = vmatprep.subr.bf16.mxu0 0
    %525 = vmatpush1.bf16.xpose.msra.mxu0 0
    %526 = vmatprep.mubr.bf16.mxu0 0
    %527 = vmatmul.mubr.bf16.gmra.mrb[0].mxu0 %v489
    %v528 = vpop.f32.mrb[0].mxu0
    %v529 = vadd.f32 0.0, %v528
    %v530 = vpop.f32.mrb[0].mxu0
    %v531 = vpop.f32.mrb[0].mxu0
    %v532 = vpop.f32.mrb[0].mxu0
    %533 = vdwg.mxu0
    %v534 = vmul.f32 %v479, 0.35355338
    %v535 = vmul.f32 %v529, 0.35355338
    %v536 = vadd.f32 %v534, %v305
    %v537 = vadd.f32 %v535, %v309
    %v538 = vsel %vm76, %v536, -inf
    %539 = vmax.xlane.f32.xlu0 %v538
    %v540 = vpop.xlane.xlu0 %539
    %v541 = vsel %vm76, %v537, -inf
    %542 = vmax.xlane.f32.xlu0 %v541
    %v543 = vpop.xlane.xlu0 %542
    %v544 = vsub.f32 %v536, %v540
    %v545 = vsub.f32 %v537, %v543
    %v546 = vmul.f32 %v544, 1.442695
    %v547 = vpow.pop %v546
    %v548 = vmul.f32 %v545, 1.442695
    %v549 = vpow.pop %v548
    %v550 = vsel %vm76, %v547, 0.0
    %551 = vadd.xlane.f32.xlu0 %v550
    %v552 = vpop.xlane.xlu0 %551
    %v553 = vsel %vm76, %v549, 0.0
    %554 = vadd.xlane.f32.xlu0 %v553
    %v555 = vpop.xlane.xlu0 %554
    %v556 = vpack.c.bf16 %v547, %v547
    %v557 = vpack.c.bf16 %v549, %v549
    %558 = vrot.lane.b32.xlu0 %v198, 56
    %v559 = vpop.permute.xlu0 %558
    %v561 = vsel %vm76, %v556, 0
    %v564 = vsel %vm80, %v559, 0
    %566 = vmatprep.subr.bf16.mxu0 0
    %567 = vmatpush1.bf16.msra.mxu0 %v564
    %568 = vmatprep.subr.bf16.mxu0 0
    %569 = vmatpush1.bf16.msra.mxu0 0
    %570 = vmatprep.subr.bf16.mxu0 0
    %571 = vmatpush1.bf16.msra.mxu0 0
    %572 = vmatprep.subr.bf16.mxu0 0
    %573 = vmatpush1.bf16.msra.mxu0 0
    %574 = vmatprep.subr.bf16.mxu0 0
    %575 = vmatpush1.bf16.msra.mxu0 0
    %576 = vmatprep.subr.bf16.mxu0 0
    %577 = vmatpush1.bf16.msra.mxu0 0
    %578 = vmatprep.subr.bf16.mxu0 0
    %579 = vmatpush1.bf16.msra.mxu0 0
    %580 = vmatprep.subr.bf16.mxu0 0
    %581 = vmatpush1.bf16.msra.mxu0 0
    %582 = vmatprep.subr.bf16.mxu0 0
    %583 = vmatpush1.bf16.msra.mxu0 0
    %584 = vmatprep.subr.bf16.mxu0 0
    %585 = vmatpush1.bf16.msra.mxu0 0
    %586 = vmatprep.subr.bf16.mxu0 0
    %587 = vmatpush1.bf16.msra.mxu0 0
    %588 = vmatprep.subr.bf16.mxu0 0
    %589 = vmatpush1.bf16.msra.mxu0 0
    %590 = vmatprep.subr.bf16.mxu0 0
    %591 = vmatpush1.bf16.msra.mxu0 0
    %592 = vmatprep.subr.bf16.mxu0 0
    %593 = vmatpush1.bf16.msra.mxu0 0
    %594 = vmatprep.subr.bf16.mxu0 0
    %595 = vmatpush1.bf16.msra.mxu0 0
    %596 = vmatprep.subr.bf16.mxu0 0
    %597 = vmatpush1.bf16.msra.mxu0 0
    %598 = vmatprep.mubr.bf16.mxu0 0
    %599 = vmatmul.mubr.bf16.gmra.mrb[0].mxu0 %v561
    %v600 = vpop.f32.mrb[0].mxu0
    %v601 = vadd.f32 0.0, %v600
    %v602 = vpop.f32.mrb[0].mxu0
    %v603 = vpop.f32.mrb[0].mxu0
    %v604 = vpop.f32.mrb[0].mxu0
    %605 = vdwg.mxu0
    %606 = vrot.lane.b32.xlu0 %v199, 56
    %v607 = vpop.permute.xlu0 %606
    %v609 = vsel %vm76, %v557, 0
    %v612 = vsel %vm80, %v607, 0
    %614 = vmatprep.subr.bf16.mxu0 0
    %615 = vmatpush1.bf16.msra.mxu0 %v612
    %616 = vmatprep.subr.bf16.mxu0 0
    %617 = vmatpush1.bf16.msra.mxu0 0
    %618 = vmatprep.subr.bf16.mxu0 0
    %619 = vmatpush1.bf16.msra.mxu0 0
    %620 = vmatprep.subr.bf16.mxu0 0
    %621 = vmatpush1.bf16.msra.mxu0 0
    %622 = vmatprep.subr.bf16.mxu0 0
    %623 = vmatpush1.bf16.msra.mxu0 0
    %624 = vmatprep.subr.bf16.mxu0 0
    %625 = vmatpush1.bf16.msra.mxu0 0
    %626 = vmatprep.subr.bf16.mxu0 0
    %627 = vmatpush1.bf16.msra.mxu0 0
    %628 = vmatprep.subr.bf16.mxu0 0
    %629 = vmatpush1.bf16.msra.mxu0 0
    %630 = vmatprep.subr.bf16.mxu0 0
    %631 = vmatpush1.bf16.msra.mxu0 0
    %632 = vmatprep.subr.bf16.mxu0 0
    %633 = vmatpush1.bf16.msra.mxu0 0
    %634 = vmatprep.subr.bf16.mxu0 0
    %635 = vmatpush1.bf16.msra.mxu0 0
    %636 = vmatprep.subr.bf16.mxu0 0
    %637 = vmatpush1.bf16.msra.mxu0 0
    %638 = vmatprep.subr.bf16.mxu0 0
    %639 = vmatpush1.bf16.msra.mxu0 0
    %640 = vmatprep.subr.bf16.mxu0 0
    %641 = vmatpush1.bf16.msra.mxu0 0
    %642 = vmatprep.subr.bf16.mxu0 0
    %643 = vmatpush1.bf16.msra.mxu0 0
    %644 = vmatprep.subr.bf16.mxu0 0
    %645 = vmatpush1.bf16.msra.mxu0 0
    %646 = vmatprep.mubr.bf16.mxu0 0
    %647 = vmatmul.mubr.bf16.gmra.mrb[0].mxu0 %v609
    %v648 = vpop.f32.mrb[0].mxu0
    %v649 = vadd.f32 0.0, %v648
    %v650 = vpop.f32.mrb[0].mxu0
    %v651 = vpop.f32.mrb[0].mxu0
    %v652 = vpop.f32.mrb[0].mxu0
    %653 = vdwg.mxu0
    %v654 = vrcp.pop %v552
    %v655 = vrcp.pop %v555
    %v656 = vmul.f32 %v601, %v654
    %v657 = vmul.f32 %v649, %v655
    %658 = vrot.lane.b32.xlu0 %v198, 112
    %v659 = vpop.permute.xlu0 %658
    %660 = vrot.lane.b32.xlu0 %v198, 80
    %v661 = vpop.permute.xlu0 %660
    %v663 = vsel %vm76, %v659, 0
    %v666 = vsel %vm76, %v661, 0
    %668 = vmatprep.subr.bf16.mxu0 0
    %669 = vmatpush1.bf16.xpose.msra.mxu0 %v666
    %670 = vmatprep.subr.bf16.mxu0 0
    %671 = vmatpush1.bf16.xpose.msra.mxu0 0
    %672 = vmatprep.subr.bf16.mxu0 0
    %673 = vmatpush1.bf16.xpose.msra.mxu0 0
    %674 = vmatprep.subr.bf16.mxu0 0
    %675 = vmatpush1.bf16.xpose.msra.mxu0 0
    %676 = vmatprep.subr.bf16.mxu0 0
    %677 = vmatpush1.bf16.xpose.msra.mxu0 0
    %678 = vmatprep.subr.bf16.mxu0 0
    %679 = vmatpush1.bf16.xpose.msra.mxu0 0
    %680 = vmatprep.subr.bf16.mxu0 0
    %681 = vmatpush1.bf16.xpose.msra.mxu0 0
    %682 = vmatprep.subr.bf16.mxu0 0
    %683 = vmatpush1.bf16.xpose.msra.mxu0 0
    %684 = vmatprep.subr.bf16.mxu0 0
    %685 = vmatpush1.bf16.xpose.msra.mxu0 0
    %686 = vmatprep.subr.bf16.mxu0 0
    %687 = vmatpush1.bf16.xpose.msra.mxu0 0
    %688 = vmatprep.subr.bf16.mxu0 0
    %689 = vmatpush1.bf16.xpose.msra.mxu0 0
    %690 = vmatprep.subr.bf16.mxu0 0
    %691 = vmatpush1.bf16.xpose.msra.mxu0 0
    %692 = vmatprep.subr.bf16.mxu0 0
    %693 = vmatpush1.bf16.xpose.msra.mxu0 0
    %694 = vmatprep.subr.bf16.mxu0 0
    %695 = vmatpush1.bf16.xpose.msra.mxu0 0
    %696 = vmatprep.subr.bf16.mxu0 0
    %697 = vmatpush1.bf16.xpose.msra.mxu0 0
    %698 = vmatprep.subr.bf16.mxu0 0
    %699 = vmatpush1.bf16.xpose.msra.mxu0 0
    %700 = vmatprep.mubr.bf16.mxu0 0
    %701 = vmatmul.mubr.bf16.gmra.mrb[0].mxu0 %v663
    %v702 = vpop.f32.mrb[0].mxu0
    %v703 = vadd.f32 0.0, %v702
    %v704 = vpop.f32.mrb[0].mxu0
    %v705 = vpop.f32.mrb[0].mxu0
    %v706 = vpop.f32.mrb[0].mxu0
    %707 = vdwg.mxu0
    %708 = vrot.lane.b32.xlu0 %v199, 112
    %v709 = vpop.permute.xlu0 %708
    %710 = vrot.lane.b32.xlu0 %v199, 80
    %v711 = vpop.permute.xlu0 %710
    %v713 = vsel %vm76, %v709, 0
    %v716 = vsel %vm76, %v711, 0
    %718 = vmatprep.subr.bf16.mxu0 0
    %719 = vmatpush1.bf16.xpose.msra.mxu0 %v716
    %720 = vmatprep.subr.bf16.mxu0 0
    %721 = vmatpush1.bf16.xpose.msra.mxu0 0
    %722 = vmatprep.subr.bf16.mxu0 0
    %723 = vmatpush1.bf16.xpose.msra.mxu0 0
    %724 = vmatprep.subr.bf16.mxu0 0
    %725 = vmatpush1.bf16.xpose.msra.mxu0 0
    %726 = vmatprep.subr.bf16.mxu0 0
    %727 = vmatpush1.bf16.xpose.msra.mxu0 0
    %728 = vmatprep.subr.bf16.mxu0 0
    %729 = vmatpush1.bf16.xpose.msra.mxu0 0
    %730 = vmatprep.subr.bf16.mxu0 0
    %731 = vmatpush1.bf16.xpose.msra.mxu0 0
    %732 = vmatprep.subr.bf16.mxu0 0
    %733 = vmatpush1.bf16.xpose.msra.mxu0 0
    %734 = vmatprep.subr.bf16.mxu0 0
    %735 = vmatpush1.bf16.xpose.msra.mxu0 0
    %736 = vmatprep.subr.bf16.mxu0 0
    %737 = vmatpush1.bf16.xpose.msra.mxu0 0
    %738 = vmatprep.subr.bf16.mxu0 0
    %739 = vmatpush1.bf16.xpose.msra.mxu0 0
    %740 = vmatprep.subr.bf16.mxu0 0
    %741 = vmatpush1.bf16.xpose.msra.mxu0 0
    %742 = vmatprep.subr.bf16.mxu0 0
    %743 = vmatpush1.bf16.xpose.msra.mxu0 0
    %744 = vmatprep.subr.bf16.mxu0 0
    %745 = vmatpush1.bf16.xpose.msra.mxu0 0
    %746 = vmatprep.subr.bf16.mxu0 0
    %747 = vmatpush1.bf16.xpose.msra.mxu0 0
    %748 = vmatprep.subr.bf16.mxu0 0
    %749 = vmatpush1.bf16.xpose.msra.mxu0 0
    %750 = vmatprep.mubr.bf16.mxu0 0
    %751 = vmatmul.mubr.bf16.gmra.mrb[0].mxu0 %v713
    %v752 = vpop.f32.mrb[0].mxu0
    %v753 = vadd.f32 0.0, %v752
    %v754 = vpop.f32.mrb[0].mxu0
    %v755 = vpop.f32.mrb[0].mxu0
    %v756 = vpop.f32.mrb[0].mxu0
    %757 = vdwg.mxu0
    %v758 = vmul.f32 %v703, 0.35355338
    %v759 = vmul.f32 %v753, 0.35355338
    %v760 = vadd.f32 %v758, %v305
    %v761 = vadd.f32 %v759, %v309
    %v762 = vsel %vm76, %v760, -inf
    %763 = vmax.xlane.f32.xlu0 %v762
    %v764 = vpop.xlane.xlu0 %763
    %v765 = vsel %vm76, %v761, -inf
    %766 = vmax.xlane.f32.xlu0 %v765
    %v767 = vpop.xlane.xlu0 %766
    %v768 = vsub.f32 %v760, %v764
    %v769 = vsub.f32 %v761, %v767
    %v770 = vmul.f32 %v768, 1.442695
    %v771 = vpow.pop %v770
    %v772 = vmul.f32 %v769, 1.442695
    %v773 = vpow.pop %v772
    %v774 = vsel %vm76, %v771, 0.0
    %775 = vadd.xlane.f32.xlu0 %v774
    %v776 = vpop.xlane.xlu0 %775
    %v777 = vsel %vm76, %v773, 0.0
    %778 = vadd.xlane.f32.xlu0 %v777
    %v779 = vpop.xlane.xlu0 %778
    %v780 = vpack.c.bf16 %v771, %v771
    %v781 = vpack.c.bf16 %v773, %v773
    %782 = vrot.lane.b32.xlu0 %v198, 48
    %v783 = vpop.permute.xlu0 %782
    %v785 = vsel %vm76, %v780, 0
    %v788 = vsel %vm80, %v783, 0
    %790 = vmatprep.subr.bf16.mxu0 0
    %791 = vmatpush1.bf16.msra.mxu0 %v788
    %792 = vmatprep.subr.bf16.mxu0 0
    %793 = vmatpush1.bf16.msra.mxu0 0
    %794 = vmatprep.subr.bf16.mxu0 0
    %795 = vmatpush1.bf16.msra.mxu0 0
    %796 = vmatprep.subr.bf16.mxu0 0
    %797 = vmatpush1.bf16.msra.mxu0 0
    %798 = vmatprep.subr.bf16.mxu0 0
    %799 = vmatpush1.bf16.msra.mxu0 0
    %800 = vmatprep.subr.bf16.mxu0 0
    %801 = vmatpush1.bf16.msra.mxu0 0
    %802 = vmatprep.subr.bf16.mxu0 0
    %803 = vmatpush1.bf16.msra.mxu0 0
    %804 = vmatprep.subr.bf16.mxu0 0
    %805 = vmatpush1.bf16.msra.mxu0 0
    %806 = vmatprep.subr.bf16.mxu0 0
    %807 = vmatpush1.bf16.msra.mxu0 0
    %808 = vmatprep.subr.bf16.mxu0 0
    %809 = vmatpush1.bf16.msra.mxu0 0
    %810 = vmatprep.subr.bf16.mxu0 0
    %811 = vmatpush1.bf16.msra.mxu0 0
    %812 = vmatprep.subr.bf16.mxu0 0
    %813 = vmatpush1.bf16.msra.mxu0 0
    %814 = vmatprep.subr.bf16.mxu0 0
    %815 = vmatpush1.bf16.msra.mxu0 0
    %816 = vmatprep.subr.bf16.mxu0 0
    %817 = vmatpush1.bf16.msra.mxu0 0
    %818 = vmatprep.subr.bf16.mxu0 0
    %819 = vmatpush1.bf16.msra.mxu0 0
    %820 = vmatprep.subr.bf16.mxu0 0
    %821 = vmatpush1.bf16.msra.mxu0 0
    %822 = vmatprep.mubr.bf16.mxu0 0
    %823 = vmatmul.mubr.bf16.gmra.mrb[0].mxu0 %v785
    %v824 = vpop.f32.mrb[0].mxu0
    %v825 = vadd.f32 0.0, %v824
    %v826 = vpop.f32.mrb[0].mxu0
    %v827 = vpop.f32.mrb[0].mxu0
    %v828 = vpop.f32.mrb[0].mxu0
    %829 = vdwg.mxu0
    %830 = vrot.lane.b32.xlu0 %v199, 48
    %v831 = vpop.permute.xlu0 %830
    %v833 = vsel %vm76, %v781, 0
    %v836 = vsel %vm80, %v831, 0
    %838 = vmatprep.subr.bf16.mxu0 0
    %839 = vmatpush1.bf16.msra.mxu0 %v836
    %840 = vmatprep.subr.bf16.mxu0 0
    %841 = vmatpush1.bf16.msra.mxu0 0
    %842 = vmatprep.subr.bf16.mxu0 0
    %843 = vmatpush1.bf16.msra.mxu0 0
    %844 = vmatprep.subr.bf16.mxu0 0
    %845 = vmatpush1.bf16.msra.mxu0 0
    %846 = vmatprep.subr.bf16.mxu0 0
    %847 = vmatpush1.bf16.msra.mxu0 0
    %848 = vmatprep.subr.bf16.mxu0 0
    %849 = vmatpush1.bf16.msra.mxu0 0
    %850 = vmatprep.subr.bf16.mxu0 0
    %851 = vmatpush1.bf16.msra.mxu0 0
    %852 = vmatprep.subr.bf16.mxu0 0
    %853 = vmatpush1.bf16.msra.mxu0 0
    %854 = vmatprep.subr.bf16.mxu0 0
    %855 = vmatpush1.bf16.msra.mxu0 0
    %856 = vmatprep.subr.bf16.mxu0 0
    %857 = vmatpush1.bf16.msra.mxu0 0
    %858 = vmatprep.subr.bf16.mxu0 0
    %859 = vmatpush1.bf16.msra.mxu0 0
    %860 = vmatprep.subr.bf16.mxu0 0
    %861 = vmatpush1.bf16.msra.mxu0 0
    %862 = vmatprep.subr.bf16.mxu0 0
    %863 = vmatpush1.bf16.msra.mxu0 0
    %864 = vmatprep.subr.bf16.mxu0 0
    %865 = vmatpush1.bf16.msra.mxu0 0
    %866 = vmatprep.subr.bf16.mxu0 0
    %867 = vmatpush1.bf16.msra.mxu0 0
    %868 = vmatprep.subr.bf16.mxu0 0
    %869 = vmatpush1.bf16.msra.mxu0 0
    %870 = vmatprep.mubr.bf16.mxu0 0
    %871 = vmatmul.mubr.bf16.gmra.mrb[0].mxu0 %v833
    %v872 = vpop.f32.mrb[0].mxu0
    %v873 = vadd.f32 0.0, %v872
    %v874 = vpop.f32.mrb[0].mxu0
    %v875 = vpop.f32.mrb[0].mxu0
    %v876 = vpop.f32.mrb[0].mxu0
    %877 = vdwg.mxu0
    %v878 = vrcp.pop %v776
    %v879 = vrcp.pop %v779
    %v880 = vmul.f32 %v825, %v878
    %v881 = vmul.f32 %v873, %v879
    %882 = vrot.lane.b32.xlu0 %v198, 104
    %v883 = vpop.permute.xlu0 %882
    %884 = vrot.lane.b32.xlu0 %v198, 72
    %v885 = vpop.permute.xlu0 %884
    %v887 = vsel %vm76, %v883, 0
    %v890 = vsel %vm76, %v885, 0
    %892 = vmatprep.subr.bf16.mxu0 0
    %893 = vmatpush1.bf16.xpose.msra.mxu0 %v890
    %894 = vmatprep.subr.bf16.mxu0 0
    %895 = vmatpush1.bf16.xpose.msra.mxu0 0
    %896 = vmatprep.subr.bf16.mxu0 0
    %897 = vmatpush1.bf16.xpose.msra.mxu0 0
    %898 = vmatprep.subr.bf16.mxu0 0
    %899 = vmatpush1.bf16.xpose.msra.mxu0 0
    %900 = vmatprep.subr.bf16.mxu0 0
    %901 = vmatpush1.bf16.xpose.msra.mxu0 0
    %902 = vmatprep.subr.bf16.mxu0 0
    %903 = vmatpush1.bf16.xpose.msra.mxu0 0
    %904 = vmatprep.subr.bf16.mxu0 0
    %905 = vmatpush1.bf16.xpose.msra.mxu0 0
    %906 = vmatprep.subr.bf16.mxu0 0
    %907 = vmatpush1.bf16.xpose.msra.mxu0 0
    %908 = vmatprep.subr.bf16.mxu0 0
    %909 = vmatpush1.bf16.xpose.msra.mxu0 0
    %910 = vmatprep.subr.bf16.mxu0 0
    %911 = vmatpush1.bf16.xpose.msra.mxu0 0
    %912 = vmatprep.subr.bf16.mxu0 0
    %913 = vmatpush1.bf16.xpose.msra.mxu0 0
    %914 = vmatprep.subr.bf16.mxu0 0
    %915 = vmatpush1.bf16.xpose.msra.mxu0 0
    %916 = vmatprep.subr.bf16.mxu0 0
    %917 = vmatpush1.bf16.xpose.msra.mxu0 0
    %918 = vmatprep.subr.bf16.mxu0 0
    %919 = vmatpush1.bf16.xpose.msra.mxu0 0
    %920 = vmatprep.subr.bf16.mxu0 0
    %921 = vmatpush1.bf16.xpose.msra.mxu0 0
    %922 = vmatprep.subr.bf16.mxu0 0
    %923 = vmatpush1.bf16.xpose.msra.mxu0 0
    %924 = vmatprep.mubr.bf16.mxu0 0
    %925 = vmatmul.mubr.bf16.gmra.mrb[0].mxu0 %v887
    %v926 = vpop.f32.mrb[0].mxu0
    %v927 = vadd.f32 0.0, %v926
    %v928 = vpop.f32.mrb[0].mxu0
    %v929 = vpop.f32.mrb[0].mxu0
    %v930 = vpop.f32.mrb[0].mxu0
    %931 = vdwg.mxu0
    %932 = vrot.lane.b32.xlu0 %v199, 104
    %v933 = vpop.permute.xlu0 %932
    %934 = vrot.lane.b32.xlu0 %v199, 72
    %v935 = vpop.permute.xlu0 %934
    %v937 = vsel %vm76, %v933, 0
    %v940 = vsel %vm76, %v935, 0
    %942 = vmatprep.subr.bf16.mxu0 0
    %943 = vmatpush1.bf16.xpose.msra.mxu0 %v940
    %944 = vmatprep.subr.bf16.mxu0 0
    %945 = vmatpush1.bf16.xpose.msra.mxu0 0
    %946 = vmatprep.subr.bf16.mxu0 0
    %947 = vmatpush1.bf16.xpose.msra.mxu0 0
    %948 = vmatprep.subr.bf16.mxu0 0
    %949 = vmatpush1.bf16.xpose.msra.mxu0 0
    %950 = vmatprep.subr.bf16.mxu0 0
    %951 = vmatpush1.bf16.xpose.msra.mxu0 0
    %952 = vmatprep.subr.bf16.mxu0 0
    %953 = vmatpush1.bf16.xpose.msra.mxu0 0
    %954 = vmatprep.subr.bf16.mxu0 0
    %955 = vmatpush1.bf16.xpose.msra.mxu0 0
    %956 = vmatprep.subr.bf16.mxu0 0
    %957 = vmatpush1.bf16.xpose.msra.mxu0 0
    %958 = vmatprep.subr.bf16.mxu0 0
    %959 = vmatpush1.bf16.xpose.msra.mxu0 0
    %960 = vmatprep.subr.bf16.mxu0 0
    %961 = vmatpush1.bf16.xpose.msra.mxu0 0
    %962 = vmatprep.subr.bf16.mxu0 0
    %963 = vmatpush1.bf16.xpose.msra.mxu0 0
    %964 = vmatprep.subr.bf16.mxu0 0
    %965 = vmatpush1.bf16.xpose.msra.mxu0 0
    %966 = vmatprep.subr.bf16.mxu0 0
    %967 = vmatpush1.bf16.xpose.msra.mxu0 0
    %968 = vmatprep.subr.bf16.mxu0 0
    %969 = vmatpush1.bf16.xpose.msra.mxu0 0
    %970 = vmatprep.subr.bf16.mxu0 0
    %971 = vmatpush1.bf16.xpose.msra.mxu0 0
    %972 = vmatprep.subr.bf16.mxu0 0
    %973 = vmatpush1.bf16.xpose.msra.mxu0 0
    %974 = vmatprep.mubr.bf16.mxu0 0
    %975 = vmatmul.mubr.bf16.gmra.mrb[0].mxu0 %v937
    %v976 = vpop.f32.mrb[0].mxu0
    %v977 = vadd.f32 0.0, %v976
    %v978 = vpop.f32.mrb[0].mxu0
    %v979 = vpop.f32.mrb[0].mxu0
    %v980 = vpop.f32.mrb[0].mxu0
    %981 = vdwg.mxu0
    %v982 = vmul.f32 %v927, 0.35355338
    %v983 = vmul.f32 %v977, 0.35355338
    %v984 = vadd.f32 %v982, %v305
    %v985 = vadd.f32 %v983, %v309
    %v986 = vsel %vm76, %v984, -inf
    %987 = vmax.xlane.f32.xlu0 %v986
    %v988 = vpop.xlane.xlu0 %987
    %v989 = vsel %vm76, %v985, -inf
    %990 = vmax.xlane.f32.xlu0 %v989
    %v991 = vpop.xlane.xlu0 %990
    %v992 = vsub.f32 %v984, %v988
    %v993 = vsub.f32 %v985, %v991
    %v994 = vmul.f32 %v992, 1.442695
    %v995 = vpow.pop %v994
    %v996 = vmul.f32 %v993, 1.442695
    %v997 = vpow.pop %v996
    %v998 = vsel %vm76, %v995, 0.0
    %999 = vadd.xlane.f32.xlu0 %v998
    %v1000 = vpop.xlane.xlu0 %999
    %v1001 = vsel %vm76, %v997, 0.0
    %1002 = vadd.xlane.f32.xlu0 %v1001
    %v1003 = vpop.xlane.xlu0 %1002
    %v1004 = vpack.c.bf16 %v995, %v995
    %v1005 = vpack.c.bf16 %v997, %v997
    %1006 = vrot.lane.b32.xlu0 %v198, 40
    %v1007 = vpop.permute.xlu0 %1006
    %v1009 = vsel %vm76, %v1004, 0
    %v1012 = vsel %vm80, %v1007, 0
    %1014 = vmatprep.subr.bf16.mxu0 0
    %1015 = vmatpush1.bf16.msra.mxu0 %v1012
    %1016 = vmatprep.subr.bf16.mxu0 0
    %1017 = vmatpush1.bf16.msra.mxu0 0
    %1018 = vmatprep.subr.bf16.mxu0 0
    %1019 = vmatpush1.bf16.msra.mxu0 0
    %1020 = vmatprep.subr.bf16.mxu0 0
    %1021 = vmatpush1.bf16.msra.mxu0 0
    %1022 = vmatprep.subr.bf16.mxu0 0
    %1023 = vmatpush1.bf16.msra.mxu0 0
    %1024 = vmatprep.subr.bf16.mxu0 0
    %1025 = vmatpush1.bf16.msra.mxu0 0
    %1026 = vmatprep.subr.bf16.mxu0 0
    %1027 = vmatpush1.bf16.msra.mxu0 0
    %1028 = vmatprep.subr.bf16.mxu0 0
    %1029 = vmatpush1.bf16.msra.mxu0 0
    %1030 = vmatprep.subr.bf16.mxu0 0
    %1031 = vmatpush1.bf16.msra.mxu0 0
    %1032 = vmatprep.subr.bf16.mxu0 0
    %1033 = vmatpush1.bf16.msra.mxu0 0
    %1034 = vmatprep.subr.bf16.mxu0 0
    %1035 = vmatpush1.bf16.msra.mxu0 0
    %1036 = vmatprep.subr.bf16.mxu0 0
    %1037 = vmatpush1.bf16.msra.mxu0 0
    %1038 = vmatprep.subr.bf16.mxu0 0
    %1039 = vmatpush1.bf16.msra.mxu0 0
    %1040 = vmatprep.subr.bf16.mxu0 0
    %1041 = vmatpush1.bf16.msra.mxu0 0
    %1042 = vmatprep.subr.bf16.mxu0 0
    %1043 = vmatpush1.bf16.msra.mxu0 0
    %1044 = vmatprep.subr.bf16.mxu0 0
    %1045 = vmatpush1.bf16.msra.mxu0 0
    %1046 = vmatprep.mubr.bf16.mxu0 0
    %1047 = vmatmul.mubr.bf16.gmra.mrb[0].mxu0 %v1009
    %v1048 = vpop.f32.mrb[0].mxu0
    %v1049 = vadd.f32 0.0, %v1048
    %v1050 = vpop.f32.mrb[0].mxu0
    %v1051 = vpop.f32.mrb[0].mxu0
    %v1052 = vpop.f32.mrb[0].mxu0
    %1053 = vdwg.mxu0
    %1054 = vrot.lane.b32.xlu0 %v199, 40
    %v1055 = vpop.permute.xlu0 %1054
    %v1057 = vsel %vm76, %v1005, 0
    %v1060 = vsel %vm80, %v1055, 0
    %1062 = vmatprep.subr.bf16.mxu0 0
    %1063 = vmatpush1.bf16.msra.mxu0 %v1060
    %1064 = vmatprep.subr.bf16.mxu0 0
    %1065 = vmatpush1.bf16.msra.mxu0 0
    %1066 = vmatprep.subr.bf16.mxu0 0
    %1067 = vmatpush1.bf16.msra.mxu0 0
    %1068 = vmatprep.subr.bf16.mxu0 0
    %1069 = vmatpush1.bf16.msra.mxu0 0
    %1070 = vmatprep.subr.bf16.mxu0 0
    %1071 = vmatpush1.bf16.msra.mxu0 0
    %1072 = vmatprep.subr.bf16.mxu0 0
    %1073 = vmatpush1.bf16.msra.mxu0 0
    %1074 = vmatprep.subr.bf16.mxu0 0
    %1075 = vmatpush1.bf16.msra.mxu0 0
    %1076 = vmatprep.subr.bf16.mxu0 0
    %1077 = vmatpush1.bf16.msra.mxu0 0
    %1078 = vmatprep.subr.bf16.mxu0 0
    %1079 = vmatpush1.bf16.msra.mxu0 0
    %1080 = vmatprep.subr.bf16.mxu0 0
    %1081 = vmatpush1.bf16.msra.mxu0 0
    %1082 = vmatprep.subr.bf16.mxu0 0
    %1083 = vmatpush1.bf16.msra.mxu0 0
    %1084 = vmatprep.subr.bf16.mxu0 0
    %1085 = vmatpush1.bf16.msra.mxu0 0
    %1086 = vmatprep.subr.bf16.mxu0 0
    %1087 = vmatpush1.bf16.msra.mxu0 0
    %1088 = vmatprep.subr.bf16.mxu0 0
    %1089 = vmatpush1.bf16.msra.mxu0 0
    %1090 = vmatprep.subr.bf16.mxu0 0
    %1091 = vmatpush1.bf16.msra.mxu0 0
    %1092 = vmatprep.subr.bf16.mxu0 0
    %1093 = vmatpush1.bf16.msra.mxu0 0
    %1094 = vmatprep.mubr.bf16.mxu0 0
    %1095 = vmatmul.mubr.bf16.gmra.mrb[0].mxu0 %v1057
    %v1096 = vpop.f32.mrb[0].mxu0
    %v1097 = vadd.f32 0.0, %v1096
    %v1098 = vpop.f32.mrb[0].mxu0
    %v1099 = vpop.f32.mrb[0].mxu0
    %v1100 = vpop.f32.mrb[0].mxu0
    %1101 = vdwg.mxu0
    %v1102 = vrcp.pop %v1000
    %v1103 = vrcp.pop %v1003
    %v1104 = vmul.f32 %v1049, %v1102
    %v1105 = vmul.f32 %v1097, %v1103
    %1108 = vrot.lane.b32.xlu0 %v656, 8
    %v1109 = vpop.permute.xlu0 %1108
    %1110 = vrot.lane.b32.xlu0 %v657, 8
    %v1111 = vpop.permute.xlu0 %1110
    %1116 = vrot.lane.b32.xlu0 %v880, 16
    %v1117 = vpop.permute.xlu0 %1116
    %1118 = vrot.lane.b32.xlu0 %v881, 16
    %v1119 = vpop.permute.xlu0 %1118
    %1124 = vrot.lane.b32.xlu0 %v1104, 24
    %v1125 = vpop.permute.xlu0 %1124
    %1126 = vrot.lane.b32.xlu0 %v1105, 24
    %v1127 = vpop.permute.xlu0 %1126
    %v1130 = vsel %vm76, %v432, %v1109
    %v1131 = vsel %vm76, %v433, %v1111
    %vm1132 = vcmask 130048
    %v1133 = vsel %vm1132, %v1130, %v1117
    %v1134 = vsel %vm1132, %v1131, %v1119
    %vm1135 = vcmask 195584
    %v1136 = vsel %vm1135, %v1133, %v1125
    %v1137 = vsel %vm1135, %v1134, %v1127
    %v1138 = vpack.c.bf16 %v1137, %v1136
    %v1139 = vld [vmem:[%s8] sm:$0xf]
    %v1140 = vld [vmem:[%s8 + $0x4] sm:$0xf]
    %v1141 = vld [vmem:[%s8 + $0x8] sm:$0xf]
    %v1142 = vld [vmem:[%s8 + $0xc] sm:$0xf]
    %v1143 = vld [vmem:[%s9] sm:$0x1]
    %v1145 = vlaneseq
    %v1146 = vshrl.u32 %v1145, 7
    %v1147 = vsub.s32 0, %v1146
    %v1148 = vrot.slane %v1143, %v1147
    %v1154 = vunpack.c.l.b16 %v1139
    %v1155 = vunpack.c.l.b16 %v1140
    %v1156 = vunpack.c.l.b16 %v1141
    %v1157 = vunpack.c.l.b16 %v1142
    %v1158 = vpack.c.b16 %v1155, %v1154
    %v1159 = vpack.c.b16 %v1157, %v1156
    %v1163 = vsel %vm153, %v1138, 0
    %1165 = vmatprep.subr.bf16.mxu0 0
    %1166 = vmatpush1.bf16.msra.mxu0 %v1158
    %1167 = vmatprep.subr.bf16.mxu0 0
    %1168 = vmatpush1.bf16.msra.mxu0 %v1159
    %1169 = vmatprep.subr.bf16.mxu0 0
    %1170 = vmatpush1.bf16.msra.mxu0 0
    %1171 = vmatprep.subr.bf16.mxu0 0
    %1172 = vmatpush1.bf16.msra.mxu0 0
    %1173 = vmatprep.subr.bf16.mxu0 0
    %1174 = vmatpush1.bf16.msra.mxu0 0
    %1175 = vmatprep.subr.bf16.mxu0 0
    %1176 = vmatpush1.bf16.msra.mxu0 0
    %1177 = vmatprep.subr.bf16.mxu0 0
    %1178 = vmatpush1.bf16.msra.mxu0 0
    %1179 = vmatprep.subr.bf16.mxu0 0
    %1180 = vmatpush1.bf16.msra.mxu0 0
    %1181 = vmatprep.subr.bf16.mxu0 0
    %1182 = vmatpush1.bf16.msra.mxu0 0
    %1183 = vmatprep.subr.bf16.mxu0 0
    %1184 = vmatpush1.bf16.msra.mxu0 0
    %1185 = vmatprep.subr.bf16.mxu0 0
    %1186 = vmatpush1.bf16.msra.mxu0 0
    %1187 = vmatprep.subr.bf16.mxu0 0
    %1188 = vmatpush1.bf16.msra.mxu0 0
    %1189 = vmatprep.subr.bf16.mxu0 0
    %1190 = vmatpush1.bf16.msra.mxu0 0
    %1191 = vmatprep.subr.bf16.mxu0 0
    %1192 = vmatpush1.bf16.msra.mxu0 0
    %1193 = vmatprep.subr.bf16.mxu0 0
    %1194 = vmatpush1.bf16.msra.mxu0 0
    %1195 = vmatprep.subr.bf16.mxu0 0
    %1196 = vmatpush1.bf16.msra.mxu0 0
    %1197 = vmatprep.mubr.bf16.mxu0 0
    %1198 = vmatmul.mubr.bf16.gmra.mrb[0].mxu0 %v1163
    %v1199 = vpop.f32.mrb[0].mxu0
    %v1200 = vadd.f32 %v1148, %v1199
    %v1201 = vpop.f32.mrb[0].mxu0
    %v1202 = vpop.f32.mrb[0].mxu0
    %v1203 = vadd.f32 %v1148, %v1202
    %v1204 = vpop.f32.mrb[0].mxu0
    %1205 = vdwg.mxu0
    %v1206 = vadd.f32 %v1200, %v127
    %v1207 = vadd.f32 %v1203, %v128
    %v1208 = vld [vmem:[%s10] sm:$0x1]
    %v1209 = vld [vmem:[%s11] sm:$0x1]
    %v1210 = vsel %vm153, %v1206, 0.0
    %1211 = vadd.xlane.f32.xlu0 %v1210
    %v1212 = vpop.xlane.xlu0 %1211
    %v1213 = vsel %vm153, %v1207, 0.0
    %1214 = vadd.xlane.f32.xlu0 %v1213
    %v1215 = vpop.xlane.xlu0 %1214
    %v1216 = vrcp.pop 32.0
    %v1217 = vmul.f32 %v1212, %v1216
    %v1218 = vmul.f32 %v1215, %v1216
    %v1219 = vsub.f32 %v1206, %v1217
    %v1220 = vsub.f32 %v1207, %v1218
    %v1221 = vmul.f32 %v1219, %v1219
    %v1222 = vmul.f32 %v1220, %v1220
    %v1223 = vsel %vm153, %v1221, 0.0
    %1224 = vadd.xlane.f32.xlu0 %v1223
    %v1225 = vpop.xlane.xlu0 %1224
    %v1226 = vsel %vm153, %v1222, 0.0
    %1227 = vadd.xlane.f32.xlu0 %v1226
    %v1228 = vpop.xlane.xlu0 %1227
    %v1229 = vmul.f32 %v1225, %v1216
    %v1230 = vmul.f32 %v1228, %v1216
    %v1231 = vadd.f32 %v1229, 1e-05
    %v1232 = vadd.f32 %v1230, 1e-05
    %v1233 = vrsqrt.pop %v1231
    %v1234 = vrsqrt.pop %v1232
    %v1235 = vmul.f32 %v1219, %v1233
    %v1236 = vmul.f32 %v1220, %v1234
    %v1238 = vlaneseq
    %v1239 = vshrl.u32 %v1238, 7
    %v1240 = vsub.s32 0, %v1239
    %v1241 = vrot.slane %v1208, %v1240
    %v1243 = vmul.f32 %v1235, %v1241
    %v1244 = vmul.f32 %v1236, %v1241
    %v1246 = vlaneseq
    %v1247 = vshrl.u32 %v1246, 7
    %v1248 = vsub.s32 0, %v1247
    %v1249 = vrot.slane %v1209, %v1248
    %v1251 = vadd.f32 %v1243, %v1249
    %v1252 = vadd.f32 %v1244, %v1249
    %1254 = vset.pattern.permute.xlu0 0
    %1255 = vperm.xlu0 %1254, %v63
    %v1256 = vpop.permute.xlu0 %1255
    %1259 = vset.pattern.permute.xlu0 0
    %1260 = vperm.xlu0 %1259, %v64
    %v1261 = vpop.permute.xlu0 %1260
    %v1263 = vmul.f32 %v1251, %v1256
    %v1264 = vmul.f32 %v1252, %v1261
    %v1265 = vpack.c.bf16 %v1264, %v1263
    %v1266 = vld [vmem:[%s12] sm:$0xf]
    %v1267 = vld [vmem:[%s12 + $0x4] sm:$0xf]
    %v1268 = vld [vmem:[%s12 + $0x8] sm:$0xf]
    %v1269 = vld [vmem:[%s12 + $0xc] sm:$0xf]
    %v1270 = vld [vmem:[%s13] sm:$0x1]
    %v1272 = vlaneseq
    %v1273 = vshrl.u32 %v1272, 7
    %v1274 = vsub.s32 0, %v1273
    %v1275 = vrot.slane %v1270, %v1274
    %v1281 = vunpack.c.l.b16 %v1266
    %v1282 = vunpack.c.l.b16 %v1267
    %v1283 = vunpack.c.l.b16 %v1268
    %v1284 = vunpack.c.l.b16 %v1269
    %v1285 = vpack.c.b16 %v1282, %v1281
    %v1286 = vpack.c.b16 %v1284, %v1283
    %v1290 = vsel %vm153, %v1265, 0
    %1292 = vmatprep.subr.bf16.mxu0 0
    %1293 = vmatpush1.bf16.msra.mxu0 %v1285
    %1294 = vmatprep.subr.bf16.mxu0 0
    %1295 = vmatpush1.bf16.msra.mxu0 %v1286
    %1296 = vmatprep.subr.bf16.mxu0 0
    %1297 = vmatpush1.bf16.msra.mxu0 0
    %1298 = vmatprep.subr.bf16.mxu0 0
    %1299 = vmatpush1.bf16.msra.mxu0 0
    %1300 = vmatprep.subr.bf16.mxu0 0
    %1301 = vmatpush1.bf16.msra.mxu0 0
    %1302 = vmatprep.subr.bf16.mxu0 0
    %1303 = vmatpush1.bf16.msra.mxu0 0
    %1304 = vmatprep.subr.bf16.mxu0 0
    %1305 = vmatpush1.bf16.msra.mxu0 0
    %1306 = vmatprep.subr.bf16.mxu0 0
    %1307 = vmatpush1.bf16.msra.mxu0 0
    %1308 = vmatprep.subr.bf16.mxu0 0
    %1309 = vmatpush1.bf16.msra.mxu0 0
    %1310 = vmatprep.subr.bf16.mxu0 0
    %1311 = vmatpush1.bf16.msra.mxu0 0
    %1312 = vmatprep.subr.bf16.mxu0 0
    %1313 = vmatpush1.bf16.msra.mxu0 0
    %1314 = vmatprep.subr.bf16.mxu0 0
    %1315 = vmatpush1.bf16.msra.mxu0 0
    %1316 = vmatprep.subr.bf16.mxu0 0
    %1317 = vmatpush1.bf16.msra.mxu0 0
    %1318 = vmatprep.subr.bf16.mxu0 0
    %1319 = vmatpush1.bf16.msra.mxu0 0
    %1320 = vmatprep.subr.bf16.mxu0 0
    %1321 = vmatpush1.bf16.msra.mxu0 0
    %1322 = vmatprep.subr.bf16.mxu0 0
    %1323 = vmatpush1.bf16.msra.mxu0 0
    %1324 = vmatprep.mubr.bf16.mxu0 0
    %1325 = vmatmul.mubr.bf16.gmra.mrb[0].mxu0 %v1290
    %v1326 = vpop.f32.mrb[0].mxu0
    %v1327 = vadd.f32 %v1275, %v1326
    %v1328 = vpop.f32.mrb[0].mxu0
    %v1329 = vpop.f32.mrb[0].mxu0
    %v1330 = vadd.f32 %v1275, %v1329
    %v1331 = vpop.f32.mrb[0].mxu0
    %1332 = vdwg.mxu0
    %v1333 = vmax.f32 %v1327, 0.0
    %v1334 = vmax.f32 %v1330, 0.0
    %v1335 = vpack.c.bf16 %v1334, %v1333
    %v1336 = vld [vmem:[%s14] sm:$0xf]
    %v1337 = vld [vmem:[%s14 + $0x4] sm:$0xf]
    %v1338 = vld [vmem:[%s14 + $0x8] sm:$0xf]
    %v1339 = vld [vmem:[%s14 + $0xc] sm:$0xf]
    %v1340 = vld [vmem:[%s14 + $0x10] sm:$0xf]
    %v1341 = vld [vmem:[%s14 + $0x14] sm:$0xf]
    %v1342 = vld [vmem:[%s14 + $0x18] sm:$0xf]
    %v1343 = vld [vmem:[%s14 + $0x1c] sm:$0xf]
    %v1344 = vld [vmem:[%s15] sm:$0x1]
    %v1346 = vlaneseq
    %v1347 = vshrl.u32 %v1346, 7
    %v1348 = vsub.s32 0, %v1347
    %v1349 = vrot.slane %v1344, %v1348
    %v1359 = vunpack.c.l.b16 %v1336
    %v1360 = vunpack.c.l.b16 %v1337
    %v1361 = vunpack.c.l.b16 %v1338
    %v1362 = vunpack.c.l.b16 %v1339
    %v1363 = vunpack.c.l.b16 %v1340
    %v1364 = vunpack.c.l.b16 %v1341
    %v1365 = vunpack.c.l.b16 %v1342
    %v1366 = vunpack.c.l.b16 %v1343
    %v1367 = vpack.c.b16 %v1360, %v1359
    %v1368 = vpack.c.b16 %v1362, %v1361
    %v1369 = vpack.c.b16 %v1364, %v1363
    %v1370 = vpack.c.b16 %v1366, %v1365
    %vm1375 = vcmask 523264
    %v1377 = vsel %vm1375, %v1335, 0
    %1379 = vmatprep.subr.bf16.mxu0 0
    %1380 = vmatpush1.bf16.msra.mxu0 %v1367
    %1381 = vmatprep.subr.bf16.mxu0 0
    %1382 = vmatpush1.bf16.msra.mxu0 %v1368
    %1383 = vmatprep.subr.bf16.mxu0 0
    %1384 = vmatpush1.bf16.msra.mxu0 %v1369
    %1385 = vmatprep.subr.bf16.mxu0 0
    %1386 = vmatpush1.bf16.msra.mxu0 %v1370
    %1387 = vmatprep.subr.bf16.mxu0 0
    %1388 = vmatpush1.bf16.msra.mxu0 0
    %1389 = vmatprep.subr.bf16.mxu0 0
    %1390 = vmatpush1.bf16.msra.mxu0 0
    %1391 = vmatprep.subr.bf16.mxu0 0
    %1392 = vmatpush1.bf16.msra.mxu0 0
    %1393 = vmatprep.subr.bf16.mxu0 0
    %1394 = vmatpush1.bf16.msra.mxu0 0
    %1395 = vmatprep.subr.bf16.mxu0 0
    %1396 = vmatpush1.bf16.msra.mxu0 0
    %1397 = vmatprep.subr.bf16.mxu0 0
    %1398 = vmatpush1.bf16.msra.mxu0 0
    %1399 = vmatprep.subr.bf16.mxu0 0
    %1400 = vmatpush1.bf16.msra.mxu0 0
    %1401 = vmatprep.subr.bf16.mxu0 0
    %1402 = vmatpush1.bf16.msra.mxu0 0
    %1403 = vmatprep.subr.bf16.mxu0 0
    %1404 = vmatpush1.bf16.msra.mxu0 0
    %1405 = vmatprep.subr.bf16.mxu0 0
    %1406 = vmatpush1.bf16.msra.mxu0 0
    %1407 = vmatprep.subr.bf16.mxu0 0
    %1408 = vmatpush1.bf16.msra.mxu0 0
    %1409 = vmatprep.subr.bf16.mxu0 0
    %1410 = vmatpush1.bf16.msra.mxu0 0
    %1411 = vmatprep.mubr.bf16.mxu0 0
    %1412 = vmatmul.mubr.bf16.gmra.mrb[0].mxu0 %v1377
    %v1413 = vpop.f32.mrb[0].mxu0
    %v1414 = vadd.f32 %v1349, %v1413
    %v1415 = vpop.f32.mrb[0].mxu0
    %v1416 = vpop.f32.mrb[0].mxu0
    %v1417 = vadd.f32 %v1349, %v1416
    %v1418 = vpop.f32.mrb[0].mxu0
    %1419 = vdwg.mxu0
    %v1420 = vadd.f32 %v1414, %v1263
    %v1421 = vadd.f32 %v1417, %v1264
    %v1422 = vld [vmem:[%s16] sm:$0x1]
    %v1423 = vld [vmem:[%s17] sm:$0x1]
    %v1424 = vsel %vm153, %v1420, 0.0
    %1425 = vadd.xlane.f32.xlu0 %v1424
    %v1426 = vpop.xlane.xlu0 %1425
    %v1427 = vsel %vm153, %v1421, 0.0
    %1428 = vadd.xlane.f32.xlu0 %v1427
    %v1429 = vpop.xlane.xlu0 %1428
    %v1430 = vmul.f32 %v1426, %v1216
    %v1431 = vmul.f32 %v1429, %v1216
    %v1432 = vsub.f32 %v1420, %v1430
    %v1433 = vsub.f32 %v1421, %v1431
    %v1434 = vmul.f32 %v1432, %v1432
    %v1435 = vmul.f32 %v1433, %v1433
    %v1436 = vsel %vm153, %v1434, 0.0
    %1437 = vadd.xlane.f32.xlu0 %v1436
    %v1438 = vpop.xlane.xlu0 %1437
    %v1439 = vsel %vm153, %v1435, 0.0
    %1440 = vadd.xlane.f32.xlu0 %v1439
    %v1441 = vpop.xlane.xlu0 %1440
    %v1442 = vmul.f32 %v1438, %v1216
    %v1443 = vmul.f32 %v1441, %v1216
    %v1444 = vadd.f32 %v1442, 1e-05
    %v1445 = vadd.f32 %v1443, 1e-05
    %v1446 = vrsqrt.pop %v1444
    %v1447 = vrsqrt.pop %v1445
    %v1448 = vmul.f32 %v1432, %v1446
    %v1449 = vmul.f32 %v1433, %v1447
    %v1451 = vlaneseq
    %v1452 = vshrl.u32 %v1451, 7
    %v1453 = vsub.s32 0, %v1452
    %v1454 = vrot.slane %v1422, %v1453
    %v1456 = vmul.f32 %v1448, %v1454
    %v1457 = vmul.f32 %v1449, %v1454
    %v1459 = vlaneseq
    %v1460 = vshrl.u32 %v1459, 7
    %v1461 = vsub.s32 0, %v1460
    %v1462 = vrot.slane %v1423, %v1461
    %v1464 = vadd.f32 %v1456, %v1462
    %v1465 = vadd.f32 %v1457, %v1462
    %v1466 = vmul.f32 %v1464, %v1256
    %v1467 = vmul.f32 %v1465, %v1261
    %v1468 = vpack.c.bf16 %v1467, %v1466
    %s1469 = scalar_lea.vmem %s6, 16
    %v1470 = vld [vmem:[%s1469] sm:$0xf]
    %v1471 = vld [vmem:[%s1469 + $0x4] sm:$0xf]
    %v1472 = vld [vmem:[%s1469 + $0x8] sm:$0xf]
    %v1473 = vld [vmem:[%s1469 + $0xc] sm:$0xf]
    %s1474 = scalar_lea.vmem %s7, 1
    %v1475 = vld [vmem:[%s1474] sm:$0x1]
    %v1477 = vlaneseq
    %v1478 = vshrl.u32 %v1477, 7
    %v1479 = vsub.s32 0, %v1478
    %v1480 = vrot.slane %v1475, %v1479
    %v1486 = vunpack.c.l.b16 %v1470
    %v1487 = vunpack.c.l.b16 %v1471
    %v1488 = vunpack.c.l.b16 %v1472
    %v1489 = vunpack.c.l.b16 %v1473
    %v1490 = vpack.c.b16 %v1487, %v1486
    %v1491 = vpack.c.b16 %v1489, %v1488
    %v1495 = vsel %vm153, %v1468, 0
    %1497 = vmatprep.subr.bf16.mxu0 0
    %1498 = vmatpush1.bf16.msra.mxu0 %v1490
    %1499 = vmatprep.subr.bf16.mxu0 0
    %1500 = vmatpush1.bf16.msra.mxu0 %v1491
    %1501 = vmatprep.subr.bf16.mxu0 0
    %1502 = vmatpush1.bf16.msra.mxu0 0
    %1503 = vmatprep.subr.bf16.mxu0 0
    %1504 = vmatpush1.bf16.msra.mxu0 0
    %1505 = vmatprep.subr.bf16.mxu0 0
    %1506 = vmatpush1.bf16.msra.mxu0 0
    %1507 = vmatprep.subr.bf16.mxu0 0
    %1508 = vmatpush1.bf16.msra.mxu0 0
    %1509 = vmatprep.subr.bf16.mxu0 0
    %1510 = vmatpush1.bf16.msra.mxu0 0
    %1511 = vmatprep.subr.bf16.mxu0 0
    %1512 = vmatpush1.bf16.msra.mxu0 0
    %1513 = vmatprep.subr.bf16.mxu0 0
    %1514 = vmatpush1.bf16.msra.mxu0 0
    %1515 = vmatprep.subr.bf16.mxu0 0
    %1516 = vmatpush1.bf16.msra.mxu0 0
    %1517 = vmatprep.subr.bf16.mxu0 0
    %1518 = vmatpush1.bf16.msra.mxu0 0
    %1519 = vmatprep.subr.bf16.mxu0 0
    %1520 = vmatpush1.bf16.msra.mxu0 0
    %1521 = vmatprep.subr.bf16.mxu0 0
    %1522 = vmatpush1.bf16.msra.mxu0 0
    %1523 = vmatprep.subr.bf16.mxu0 0
    %1524 = vmatpush1.bf16.msra.mxu0 0
    %1525 = vmatprep.subr.bf16.mxu0 0
    %1526 = vmatpush1.bf16.msra.mxu0 0
    %1527 = vmatprep.subr.bf16.mxu0 0
    %1528 = vmatpush1.bf16.msra.mxu0 0
    %1529 = vmatprep.mubr.bf16.mxu0 0
    %1530 = vmatmul.mubr.bf16.gmra.mrb[0].mxu0 %v1495
    %v1531 = vpop.f32.mrb[0].mxu0
    %v1532 = vadd.f32 %v1480, %v1531
    %v1533 = vpop.f32.mrb[0].mxu0
    %v1534 = vpop.f32.mrb[0].mxu0
    %v1535 = vadd.f32 %v1480, %v1534
    %v1536 = vpop.f32.mrb[0].mxu0
    %1537 = vdwg.mxu0
    %v1538 = vpack.c.bf16 %v1532, %v1532
    %v1539 = vpack.c.bf16 %v1535, %v1535
    %1541 = vrot.lane.b32.xlu0 %v1538, 96
    %v1542 = vpop.permute.xlu0 %1541
    %v1544 = vsel %vm76, %v1538, 0
    %v1547 = vsel %vm76, %v1542, 0
    %1549 = vmatprep.subr.bf16.mxu0 0
    %1550 = vmatpush1.bf16.xpose.msra.mxu0 %v1547
    %1551 = vmatprep.subr.bf16.mxu0 0
    %1552 = vmatpush1.bf16.xpose.msra.mxu0 0
    %1553 = vmatprep.subr.bf16.mxu0 0
    %1554 = vmatpush1.bf16.xpose.msra.mxu0 0
    %1555 = vmatprep.subr.bf16.mxu0 0
    %1556 = vmatpush1.bf16.xpose.msra.mxu0 0
    %1557 = vmatprep.subr.bf16.mxu0 0
    %1558 = vmatpush1.bf16.xpose.msra.mxu0 0
    %1559 = vmatprep.subr.bf16.mxu0 0
    %1560 = vmatpush1.bf16.xpose.msra.mxu0 0
    %1561 = vmatprep.subr.bf16.mxu0 0
    %1562 = vmatpush1.bf16.xpose.msra.mxu0 0
    %1563 = vmatprep.subr.bf16.mxu0 0
    %1564 = vmatpush1.bf16.xpose.msra.mxu0 0
    %1565 = vmatprep.subr.bf16.mxu0 0
    %1566 = vmatpush1.bf16.xpose.msra.mxu0 0
    %1567 = vmatprep.subr.bf16.mxu0 0
    %1568 = vmatpush1.bf16.xpose.msra.mxu0 0
    %1569 = vmatprep.subr.bf16.mxu0 0
    %1570 = vmatpush1.bf16.xpose.msra.mxu0 0
    %1571 = vmatprep.subr.bf16.mxu0 0
    %1572 = vmatpush1.bf16.xpose.msra.mxu0 0
    %1573 = vmatprep.subr.bf16.mxu0 0
    %1574 = vmatpush1.bf16.xpose.msra.mxu0 0
    %1575 = vmatprep.subr.bf16.mxu0 0
    %1576 = vmatpush1.bf16.xpose.msra.mxu0 0
    %1577 = vmatprep.subr.bf16.mxu0 0
    %1578 = vmatpush1.bf16.xpose.msra.mxu0 0
    %1579 = vmatprep.subr.bf16.mxu0 0
    %1580 = vmatpush1.bf16.xpose.msra.mxu0 0
    %1581 = vmatprep.mubr.bf16.mxu0 0
    %1582 = vmatmul.mubr.bf16.gmra.mrb[0].mxu0 %v1544
    %v1583 = vpop.f32.mrb[0].mxu0
    %v1584 = vadd.f32 0.0, %v1583
    %v1585 = vpop.f32.mrb[0].mxu0
    %v1586 = vpop.f32.mrb[0].mxu0
    %v1587 = vpop.f32.mrb[0].mxu0
    %1588 = vdwg.mxu0
    %1590 = vrot.lane.b32.xlu0 %v1539, 96
    %v1591 = vpop.permute.xlu0 %1590
    %v1593 = vsel %vm76, %v1539, 0
    %v1596 = vsel %vm76, %v1591, 0
    %1598 = vmatprep.subr.bf16.mxu0 0
    %1599 = vmatpush1.bf16.xpose.msra.mxu0 %v1596
    %1600 = vmatprep.subr.bf16.mxu0 0
    %1601 = vmatpush1.bf16.xpose.msra.mxu0 0
    %1602 = vmatprep.subr.bf16.mxu0 0
    %1603 = vmatpush1.bf16.xpose.msra.mxu0 0
    %1604 = vmatprep.subr.bf16.mxu0 0
    %1605 = vmatpush1.bf16.xpose.msra.mxu0 0
    %1606 = vmatprep.subr.bf16.mxu0 0
    %1607 = vmatpush1.bf16.xpose.msra.mxu0 0
    %1608 = vmatprep.subr.bf16.mxu0 0
    %1609 = vmatpush1.bf16.xpose.msra.mxu0 0
    %1610 = vmatprep.subr.bf16.mxu0 0
    %1611 = vmatpush1.bf16.xpose.msra.mxu0 0
    %1612 = vmatprep.subr.bf16.mxu0 0
    %1613 = vmatpush1.bf16.xpose.msra.mxu0 0
    %1614 = vmatprep.subr.bf16.mxu0 0
    %1615 = vmatpush1.bf16.xpose.msra.mxu0 0
    %1616 = vmatprep.subr.bf16.mxu0 0
    %1617 = vmatpush1.bf16.xpose.msra.mxu0 0
    %1618 = vmatprep.subr.bf16.mxu0 0
    %1619 = vmatpush1.bf16.xpose.msra.mxu0 0
    %1620 = vmatprep.subr.bf16.mxu0 0
    %1621 = vmatpush1.bf16.xpose.msra.mxu0 0
    %1622 = vmatprep.subr.bf16.mxu0 0
    %1623 = vmatpush1.bf16.xpose.msra.mxu0 0
    %1624 = vmatprep.subr.bf16.mxu0 0
    %1625 = vmatpush1.bf16.xpose.msra.mxu0 0
    %1626 = vmatprep.subr.bf16.mxu0 0
    %1627 = vmatpush1.bf16.xpose.msra.mxu0 0
    %1628 = vmatprep.subr.bf16.mxu0 0
    %1629 = vmatpush1.bf16.xpose.msra.mxu0 0
    %1630 = vmatprep.mubr.bf16.mxu0 0
    %1631 = vmatmul.mubr.bf16.gmra.mrb[0].mxu0 %v1593
    %v1632 = vpop.f32.mrb[0].mxu0
    %v1633 = vadd.f32 0.0, %v1632
    %v1634 = vpop.f32.mrb[0].mxu0
    %v1635 = vpop.f32.mrb[0].mxu0
    %v1636 = vpop.f32.mrb[0].mxu0
    %1637 = vdwg.mxu0
    %v1638 = vmul.f32 %v1584, 0.35355338
    %v1639 = vmul.f32 %v1633, 0.35355338
    %v1640 = vadd.f32 %v1638, %v305
    %v1641 = vadd.f32 %v1639, %v309
    %v1642 = vsel %vm76, %v1640, -inf
    %1643 = vmax.xlane.f32.xlu0 %v1642
    %v1644 = vpop.xlane.xlu0 %1643
    %v1645 = vsel %vm76, %v1641, -inf
    %1646 = vmax.xlane.f32.xlu0 %v1645
    %v1647 = vpop.xlane.xlu0 %1646
    %v1648 = vsub.f32 %v1640, %v1644
    %v1649 = vsub.f32 %v1641, %v1647
    %v1650 = vmul.f32 %v1648, 1.442695
    %v1651 = vpow.pop %v1650
    %v1652 = vmul.f32 %v1649, 1.442695
    %v1653 = vpow.pop %v1652
    %v1654 = vsel %vm76, %v1651, 0.0
    %1655 = vadd.xlane.f32.xlu0 %v1654
    %v1656 = vpop.xlane.xlu0 %1655
    %v1657 = vsel %vm76, %v1653, 0.0
    %1658 = vadd.xlane.f32.xlu0 %v1657
    %v1659 = vpop.xlane.xlu0 %1658
    %v1660 = vpack.c.bf16 %v1651, %v1651
    %v1661 = vpack.c.bf16 %v1653, %v1653
    %1662 = vrot.lane.b32.xlu0 %v1538, 64
    %v1663 = vpop.permute.xlu0 %1662
    %v1665 = vsel %vm76, %v1660, 0
    %v1668 = vsel %vm80, %v1663, 0
    %1670 = vmatprep.subr.bf16.mxu0 0
    %1671 = vmatpush1.bf16.msra.mxu0 %v1668
    %1672 = vmatprep.subr.bf16.mxu0 0
    %1673 = vmatpush1.bf16.msra.mxu0 0
    %1674 = vmatprep.subr.bf16.mxu0 0
    %1675 = vmatpush1.bf16.msra.mxu0 0
    %1676 = vmatprep.subr.bf16.mxu0 0
    %1677 = vmatpush1.bf16.msra.mxu0 0
    %1678 = vmatprep.subr.bf16.mxu0 0
    %1679 = vmatpush1.bf16.msra.mxu0 0
    %1680 = vmatprep.subr.bf16.mxu0 0
    %1681 = vmatpush1.bf16.msra.mxu0 0
    %1682 = vmatprep.subr.bf16.mxu0 0
    %1683 = vmatpush1.bf16.msra.mxu0 0
    %1684 = vmatprep.subr.bf16.mxu0 0
    %1685 = vmatpush1.bf16.msra.mxu0 0
    %1686 = vmatprep.subr.bf16.mxu0 0
    %1687 = vmatpush1.bf16.msra.mxu0 0
    %1688 = vmatprep.subr.bf16.mxu0 0
    %1689 = vmatpush1.bf16.msra.mxu0 0
    %1690 = vmatprep.subr.bf16.mxu0 0
    %1691 = vmatpush1.bf16.msra.mxu0 0
    %1692 = vmatprep.subr.bf16.mxu0 0
    %1693 = vmatpush1.bf16.msra.mxu0 0
    %1694 = vmatprep.subr.bf16.mxu0 0
    %1695 = vmatpush1.bf16.msra.mxu0 0
    %1696 = vmatprep.subr.bf16.mxu0 0
    %1697 = vmatpush1.bf16.msra.mxu0 0
    %1698 = vmatprep.subr.bf16.mxu0 0
    %1699 = vmatpush1.bf16.msra.mxu0 0
    %1700 = vmatprep.subr.bf16.mxu0 0
    %1701 = vmatpush1.bf16.msra.mxu0 0
    %1702 = vmatprep.mubr.bf16.mxu0 0
    %1703 = vmatmul.mubr.bf16.gmra.mrb[0].mxu0 %v1665
    %v1704 = vpop.f32.mrb[0].mxu0
    %v1705 = vadd.f32 0.0, %v1704
    %v1706 = vpop.f32.mrb[0].mxu0
    %v1707 = vpop.f32.mrb[0].mxu0
    %v1708 = vpop.f32.mrb[0].mxu0
    %1709 = vdwg.mxu0
    %1710 = vrot.lane.b32.xlu0 %v1539, 64
    %v1711 = vpop.permute.xlu0 %1710
    %v1713 = vsel %vm76, %v1661, 0
    %v1716 = vsel %vm80, %v1711, 0
    %1718 = vmatprep.subr.bf16.mxu0 0
    %1719 = vmatpush1.bf16.msra.mxu0 %v1716
    %1720 = vmatprep.subr.bf16.mxu0 0
    %1721 = vmatpush1.bf16.msra.mxu0 0
    %1722 = vmatprep.subr.bf16.mxu0 0
    %1723 = vmatpush1.bf16.msra.mxu0 0
    %1724 = vmatprep.subr.bf16.mxu0 0
    %1725 = vmatpush1.bf16.msra.mxu0 0
    %1726 = vmatprep.subr.bf16.mxu0 0
    %1727 = vmatpush1.bf16.msra.mxu0 0
    %1728 = vmatprep.subr.bf16.mxu0 0
    %1729 = vmatpush1.bf16.msra.mxu0 0
    %1730 = vmatprep.subr.bf16.mxu0 0
    %1731 = vmatpush1.bf16.msra.mxu0 0
    %1732 = vmatprep.subr.bf16.mxu0 0
    %1733 = vmatpush1.bf16.msra.mxu0 0
    %1734 = vmatprep.subr.bf16.mxu0 0
    %1735 = vmatpush1.bf16.msra.mxu0 0
    %1736 = vmatprep.subr.bf16.mxu0 0
    %1737 = vmatpush1.bf16.msra.mxu0 0
    %1738 = vmatprep.subr.bf16.mxu0 0
    %1739 = vmatpush1.bf16.msra.mxu0 0
    %1740 = vmatprep.subr.bf16.mxu0 0
    %1741 = vmatpush1.bf16.msra.mxu0 0
    %1742 = vmatprep.subr.bf16.mxu0 0
    %1743 = vmatpush1.bf16.msra.mxu0 0
    %1744 = vmatprep.subr.bf16.mxu0 0
    %1745 = vmatpush1.bf16.msra.mxu0 0
    %1746 = vmatprep.subr.bf16.mxu0 0
    %1747 = vmatpush1.bf16.msra.mxu0 0
    %1748 = vmatprep.subr.bf16.mxu0 0
    %1749 = vmatpush1.bf16.msra.mxu0 0
    %1750 = vmatprep.mubr.bf16.mxu0 0
    %1751 = vmatmul.mubr.bf16.gmra.mrb[0].mxu0 %v1713
    %v1752 = vpop.f32.mrb[0].mxu0
    %v1753 = vadd.f32 0.0, %v1752
    %v1754 = vpop.f32.mrb[0].mxu0
    %v1755 = vpop.f32.mrb[0].mxu0
    %v1756 = vpop.f32.mrb[0].mxu0
    %1757 = vdwg.mxu0
    %v1758 = vrcp.pop %v1656
    %v1759 = vrcp.pop %v1659
    %v1760 = vmul.f32 %v1705, %v1758
    %v1761 = vmul.f32 %v1753, %v1759
    %1762 = vrot.lane.b32.xlu0 %v1538, 120
    %v1763 = vpop.permute.xlu0 %1762
    %1764 = vrot.lane.b32.xlu0 %v1538, 88
    %v1765 = vpop.permute.xlu0 %1764
    %v1767 = vsel %vm76, %v1763, 0
    %v1770 = vsel %vm76, %v1765, 0
    %1772 = vmatprep.subr.bf16.mxu0 0
    %1773 = vmatpush1.bf16.xpose.msra.mxu0 %v1770
    %1774 = vmatprep.subr.bf16.mxu0 0
    %1775 = vmatpush1.bf16.xpose.msra.mxu0 0
    %1776 = vmatprep.subr.bf16.mxu0 0
    %1777 = vmatpush1.bf16.xpose.msra.mxu0 0
    %1778 = vmatprep.subr.bf16.mxu0 0
    %1779 = vmatpush1.bf16.xpose.msra.mxu0 0
    %1780 = vmatprep.subr.bf16.mxu0 0
    %1781 = vmatpush1.bf16.xpose.msra.mxu0 0
    %1782 = vmatprep.subr.bf16.mxu0 0
    %1783 = vmatpush1.bf16.xpose.msra.mxu0 0
    %1784 = vmatprep.subr.bf16.mxu0 0
    %1785 = vmatpush1.bf16.xpose.msra.mxu0 0
    %1786 = vmatprep.subr.bf16.mxu0 0
    %1787 = vmatpush1.bf16.xpose.msra.mxu0 0
    %1788 = vmatprep.subr.bf16.mxu0 0
    %1789 = vmatpush1.bf16.xpose.msra.mxu0 0
    %1790 = vmatprep.subr.bf16.mxu0 0
    %1791 = vmatpush1.bf16.xpose.msra.mxu0 0
    %1792 = vmatprep.subr.bf16.mxu0 0
    %1793 = vmatpush1.bf16.xpose.msra.mxu0 0
    %1794 = vmatprep.subr.bf16.mxu0 0
    %1795 = vmatpush1.bf16.xpose.msra.mxu0 0
    %1796 = vmatprep.subr.bf16.mxu0 0
    %1797 = vmatpush1.bf16.xpose.msra.mxu0 0
    %1798 = vmatprep.subr.bf16.mxu0 0
    %1799 = vmatpush1.bf16.xpose.msra.mxu0 0
    %1800 = vmatprep.subr.bf16.mxu0 0
    %1801 = vmatpush1.bf16.xpose.msra.mxu0 0
    %1802 = vmatprep.subr.bf16.mxu0 0
    %1803 = vmatpush1.bf16.xpose.msra.mxu0 0
    %1804 = vmatprep.mubr.bf16.mxu0 0
    %1805 = vmatmul.mubr.bf16.gmra.mrb[0].mxu0 %v1767
    %v1806 = vpop.f32.mrb[0].mxu0
    %v1807 = vadd.f32 0.0, %v1806
    %v1808 = vpop.f32.mrb[0].mxu0
    %v1809 = vpop.f32.mrb[0].mxu0
    %v1810 = vpop.f32.mrb[0].mxu0
    %1811 = vdwg.mxu0
    %1812 = vrot.lane.b32.xlu0 %v1539, 120
    %v1813 = vpop.permute.xlu0 %1812
    %1814 = vrot.lane.b32.xlu0 %v1539, 88
    %v1815 = vpop.permute.xlu0 %1814
    %v1817 = vsel %vm76, %v1813, 0
    %v1820 = vsel %vm76, %v1815, 0
    %1822 = vmatprep.subr.bf16.mxu0 0
    %1823 = vmatpush1.bf16.xpose.msra.mxu0 %v1820
    %1824 = vmatprep.subr.bf16.mxu0 0
    %1825 = vmatpush1.bf16.xpose.msra.mxu0 0
    %1826 = vmatprep.subr.bf16.mxu0 0
    %1827 = vmatpush1.bf16.xpose.msra.mxu0 0
    %1828 = vmatprep.subr.bf16.mxu0 0
    %1829 = vmatpush1.bf16.xpose.msra.mxu0 0
    %1830 = vmatprep.subr.bf16.mxu0 0
    %1831 = vmatpush1.bf16.xpose.msra.mxu0 0
    %1832 = vmatprep.subr.bf16.mxu0 0
    %1833 = vmatpush1.bf16.xpose.msra.mxu0 0
    %1834 = vmatprep.subr.bf16.mxu0 0
    %1835 = vmatpush1.bf16.xpose.msra.mxu0 0
    %1836 = vmatprep.subr.bf16.mxu0 0
    %1837 = vmatpush1.bf16.xpose.msra.mxu0 0
    %1838 = vmatprep.subr.bf16.mxu0 0
    %1839 = vmatpush1.bf16.xpose.msra.mxu0 0
    %1840 = vmatprep.subr.bf16.mxu0 0
    %1841 = vmatpush1.bf16.xpose.msra.mxu0 0
    %1842 = vmatprep.subr.bf16.mxu0 0
    %1843 = vmatpush1.bf16.xpose.msra.mxu0 0
    %1844 = vmatprep.subr.bf16.mxu0 0
    %1845 = vmatpush1.bf16.xpose.msra.mxu0 0
    %1846 = vmatprep.subr.bf16.mxu0 0
    %1847 = vmatpush1.bf16.xpose.msra.mxu0 0
    %1848 = vmatprep.subr.bf16.mxu0 0
    %1849 = vmatpush1.bf16.xpose.msra.mxu0 0
    %1850 = vmatprep.subr.bf16.mxu0 0
    %1851 = vmatpush1.bf16.xpose.msra.mxu0 0
    %1852 = vmatprep.subr.bf16.mxu0 0
    %1853 = vmatpush1.bf16.xpose.msra.mxu0 0
    %1854 = vmatprep.mubr.bf16.mxu0 0
    %1855 = vmatmul.mubr.bf16.gmra.mrb[0].mxu0 %v1817
    %v1856 = vpop.f32.mrb[0].mxu0
    %v1857 = vadd.f32 0.0, %v1856
    %v1858 = vpop.f32.mrb[0].mxu0
    %v1859 = vpop.f32.mrb[0].mxu0
    %v1860 = vpop.f32.mrb[0].mxu0
    %1861 = vdwg.mxu0
    %v1862 = vmul.f32 %v1807, 0.35355338
    %v1863 = vmul.f32 %v1857, 0.35355338
    %v1864 = vadd.f32 %v1862, %v305
    %v1865 = vadd.f32 %v1863, %v309
    %v1866 = vsel %vm76, %v1864, -inf
    %1867 = vmax.xlane.f32.xlu0 %v1866
    %v1868 = vpop.xlane.xlu0 %1867
    %v1869 = vsel %vm76, %v1865, -inf
    %1870 = vmax.xlane.f32.xlu0 %v1869
    %v1871 = vpop.xlane.xlu0 %1870
    %v1872 = vsub.f32 %v1864, %v1868
    %v1873 = vsub.f32 %v1865, %v1871
    %v1874 = vmul.f32 %v1872, 1.442695
    %v1875 = vpow.pop %v1874
    %v1876 = vmul.f32 %v1873, 1.442695
    %v1877 = vpow.pop %v1876
    %v1878 = vsel %vm76, %v1875, 0.0
    %1879 = vadd.xlane.f32.xlu0 %v1878
    %v1880 = vpop.xlane.xlu0 %1879
    %v1881 = vsel %vm76, %v1877, 0.0
    %1882 = vadd.xlane.f32.xlu0 %v1881
    %v1883 = vpop.xlane.xlu0 %1882
    %v1884 = vpack.c.bf16 %v1875, %v1875
    %v1885 = vpack.c.bf16 %v1877, %v1877
    %1886 = vrot.lane.b32.xlu0 %v1538, 56
    %v1887 = vpop.permute.xlu0 %1886
    %v1889 = vsel %vm76, %v1884, 0
    %v1892 = vsel %vm80, %v1887, 0
    %1894 = vmatprep.subr.bf16.mxu0 0
    %1895 = vmatpush1.bf16.msra.mxu0 %v1892
    %1896 = vmatprep.subr.bf16.mxu0 0
    %1897 = vmatpush1.bf16.msra.mxu0 0
    %1898 = vmatprep.subr.bf16.mxu0 0
    %1899 = vmatpush1.bf16.msra.mxu0 0
    %1900 = vmatprep.subr.bf16.mxu0 0
    %1901 = vmatpush1.bf16.msra.mxu0 0
    %1902 = vmatprep.subr.bf16.mxu0 0
    %1903 = vmatpush1.bf16.msra.mxu0 0
    %1904 = vmatprep.subr.bf16.mxu0 0
    %1905 = vmatpush1.bf16.msra.mxu0 0
    %1906 = vmatprep.subr.bf16.mxu0 0
    %1907 = vmatpush1.bf16.msra.mxu0 0
    %1908 = vmatprep.subr.bf16.mxu0 0
    %1909 = vmatpush1.bf16.msra.mxu0 0
    %1910 = vmatprep.subr.bf16.mxu0 0
    %1911 = vmatpush1.bf16.msra.mxu0 0
    %1912 = vmatprep.subr.bf16.mxu0 0
    %1913 = vmatpush1.bf16.msra.mxu0 0
    %1914 = vmatprep.subr.bf16.mxu0 0
    %1915 = vmatpush1.bf16.msra.mxu0 0
    %1916 = vmatprep.subr.bf16.mxu0 0
    %1917 = vmatpush1.bf16.msra.mxu0 0
    %1918 = vmatprep.subr.bf16.mxu0 0
    %1919 = vmatpush1.bf16.msra.mxu0 0
    %1920 = vmatprep.subr.bf16.mxu0 0
    %1921 = vmatpush1.bf16.msra.mxu0 0
    %1922 = vmatprep.subr.bf16.mxu0 0
    %1923 = vmatpush1.bf16.msra.mxu0 0
    %1924 = vmatprep.subr.bf16.mxu0 0
    %1925 = vmatpush1.bf16.msra.mxu0 0
    %1926 = vmatprep.mubr.bf16.mxu0 0
    %1927 = vmatmul.mubr.bf16.gmra.mrb[0].mxu0 %v1889
    %v1928 = vpop.f32.mrb[0].mxu0
    %v1929 = vadd.f32 0.0, %v1928
    %v1930 = vpop.f32.mrb[0].mxu0
    %v1931 = vpop.f32.mrb[0].mxu0
    %v1932 = vpop.f32.mrb[0].mxu0
    %1933 = vdwg.mxu0
    %1934 = vrot.lane.b32.xlu0 %v1539, 56
    %v1935 = vpop.permute.xlu0 %1934
    %v1937 = vsel %vm76, %v1885, 0
    %v1940 = vsel %vm80, %v1935, 0
    %1942 = vmatprep.subr.bf16.mxu0 0
    %1943 = vmatpush1.bf16.msra.mxu0 %v1940
    %1944 = vmatprep.subr.bf16.mxu0 0
    %1945 = vmatpush1.bf16.msra.mxu0 0
    %1946 = vmatprep.subr.bf16.mxu0 0
    %1947 = vmatpush1.bf16.msra.mxu0 0
    %1948 = vmatprep.subr.bf16.mxu0 0
    %1949 = vmatpush1.bf16.msra.mxu0 0
    %1950 = vmatprep.subr.bf16.mxu0 0
    %1951 = vmatpush1.bf16.msra.mxu0 0
    %1952 = vmatprep.subr.bf16.mxu0 0
    %1953 = vmatpush1.bf16.msra.mxu0 0
    %1954 = vmatprep.subr.bf16.mxu0 0
    %1955 = vmatpush1.bf16.msra.mxu0 0
    %1956 = vmatprep.subr.bf16.mxu0 0
    %1957 = vmatpush1.bf16.msra.mxu0 0
    %1958 = vmatprep.subr.bf16.mxu0 0
    %1959 = vmatpush1.bf16.msra.mxu0 0
    %1960 = vmatprep.subr.bf16.mxu0 0
    %1961 = vmatpush1.bf16.msra.mxu0 0
    %1962 = vmatprep.subr.bf16.mxu0 0
    %1963 = vmatpush1.bf16.msra.mxu0 0
    %1964 = vmatprep.subr.bf16.mxu0 0
    %1965 = vmatpush1.bf16.msra.mxu0 0
    %1966 = vmatprep.subr.bf16.mxu0 0
    %1967 = vmatpush1.bf16.msra.mxu0 0
    %1968 = vmatprep.subr.bf16.mxu0 0
    %1969 = vmatpush1.bf16.msra.mxu0 0
    %1970 = vmatprep.subr.bf16.mxu0 0
    %1971 = vmatpush1.bf16.msra.mxu0 0
    %1972 = vmatprep.subr.bf16.mxu0 0
    %1973 = vmatpush1.bf16.msra.mxu0 0
    %1974 = vmatprep.mubr.bf16.mxu0 0
    %1975 = vmatmul.mubr.bf16.gmra.mrb[0].mxu0 %v1937
    %v1976 = vpop.f32.mrb[0].mxu0
    %v1977 = vadd.f32 0.0, %v1976
    %v1978 = vpop.f32.mrb[0].mxu0
    %v1979 = vpop.f32.mrb[0].mxu0
    %v1980 = vpop.f32.mrb[0].mxu0
    %1981 = vdwg.mxu0
    %v1982 = vrcp.pop %v1880
    %v1983 = vrcp.pop %v1883
    %v1984 = vmul.f32 %v1929, %v1982
    %v1985 = vmul.f32 %v1977, %v1983
    %1986 = vrot.lane.b32.xlu0 %v1538, 112
    %v1987 = vpop.permute.xlu0 %1986
    %1988 = vrot.lane.b32.xlu0 %v1538, 80
    %v1989 = vpop.permute.xlu0 %1988
    %v1991 = vsel %vm76, %v1987, 0
    %v1994 = vsel %vm76, %v1989, 0
    %1996 = vmatprep.subr.bf16.mxu0 0
    %1997 = vmatpush1.bf16.xpose.msra.mxu0 %v1994
    %1998 = vmatprep.subr.bf16.mxu0 0
    %1999 = vmatpush1.bf16.xpose.msra.mxu0 0
    %2000 = vmatprep.subr.bf16.mxu0 0
    %2001 = vmatpush1.bf16.xpose.msra.mxu0 0
    %2002 = vmatprep.subr.bf16.mxu0 0
    %2003 = vmatpush1.bf16.xpose.msra.mxu0 0
    %2004 = vmatprep.subr.bf16.mxu0 0
    %2005 = vmatpush1.bf16.xpose.msra.mxu0 0
    %2006 = vmatprep.subr.bf16.mxu0 0
    %2007 = vmatpush1.bf16.xpose.msra.mxu0 0
    %2008 = vmatprep.subr.bf16.mxu0 0
    %2009 = vmatpush1.bf16.xpose.msra.mxu0 0
    %2010 = vmatprep.subr.bf16.mxu0 0
    %2011 = vmatpush1.bf16.xpose.msra.mxu0 0
    %2012 = vmatprep.subr.bf16.mxu0 0
    %2013 = vmatpush1.bf16.xpose.msra.mxu0 0
    %2014 = vmatprep.subr.bf16.mxu0 0
    %2015 = vmatpush1.bf16.xpose.msra.mxu0 0
    %2016 = vmatprep.subr.bf16.mxu0 0
    %2017 = vmatpush1.bf16.xpose.msra.mxu0 0
    %2018 = vmatprep.subr.bf16.mxu0 0
    %2019 = vmatpush1.bf16.xpose.msra.mxu0 0
    %2020 = vmatprep.subr.bf16.mxu0 0
    %2021 = vmatpush1.bf16.xpose.msra.mxu0 0
    %2022 = vmatprep.subr.bf16.mxu0 0
    %2023 = vmatpush1.bf16.xpose.msra.mxu0 0
    %2024 = vmatprep.subr.bf16.mxu0 0
    %2025 = vmatpush1.bf16.xpose.msra.mxu0 0
    %2026 = vmatprep.subr.bf16.mxu0 0
    %2027 = vmatpush1.bf16.xpose.msra.mxu0 0
    %2028 = vmatprep.mubr.bf16.mxu0 0
    %2029 = vmatmul.mubr.bf16.gmra.mrb[0].mxu0 %v1991
    %v2030 = vpop.f32.mrb[0].mxu0
    %v2031 = vadd.f32 0.0, %v2030
    %v2032 = vpop.f32.mrb[0].mxu0
    %v2033 = vpop.f32.mrb[0].mxu0
    %v2034 = vpop.f32.mrb[0].mxu0
    %2035 = vdwg.mxu0
    %2036 = vrot.lane.b32.xlu0 %v1539, 112
    %v2037 = vpop.permute.xlu0 %2036
    %2038 = vrot.lane.b32.xlu0 %v1539, 80
    %v2039 = vpop.permute.xlu0 %2038
    %v2041 = vsel %vm76, %v2037, 0
    %v2044 = vsel %vm76, %v2039, 0
    %2046 = vmatprep.subr.bf16.mxu0 0
    %2047 = vmatpush1.bf16.xpose.msra.mxu0 %v2044
    %2048 = vmatprep.subr.bf16.mxu0 0
    %2049 = vmatpush1.bf16.xpose.msra.mxu0 0
    %2050 = vmatprep.subr.bf16.mxu0 0
    %2051 = vmatpush1.bf16.xpose.msra.mxu0 0
    %2052 = vmatprep.subr.bf16.mxu0 0
    %2053 = vmatpush1.bf16.xpose.msra.mxu0 0
    %2054 = vmatprep.subr.bf16.mxu0 0
    %2055 = vmatpush1.bf16.xpose.msra.mxu0 0
    %2056 = vmatprep.subr.bf16.mxu0 0
    %2057 = vmatpush1.bf16.xpose.msra.mxu0 0
    %2058 = vmatprep.subr.bf16.mxu0 0
    %2059 = vmatpush1.bf16.xpose.msra.mxu0 0
    %2060 = vmatprep.subr.bf16.mxu0 0
    %2061 = vmatpush1.bf16.xpose.msra.mxu0 0
    %2062 = vmatprep.subr.bf16.mxu0 0
    %2063 = vmatpush1.bf16.xpose.msra.mxu0 0
    %2064 = vmatprep.subr.bf16.mxu0 0
    %2065 = vmatpush1.bf16.xpose.msra.mxu0 0
    %2066 = vmatprep.subr.bf16.mxu0 0
    %2067 = vmatpush1.bf16.xpose.msra.mxu0 0
    %2068 = vmatprep.subr.bf16.mxu0 0
    %2069 = vmatpush1.bf16.xpose.msra.mxu0 0
    %2070 = vmatprep.subr.bf16.mxu0 0
    %2071 = vmatpush1.bf16.xpose.msra.mxu0 0
    %2072 = vmatprep.subr.bf16.mxu0 0
    %2073 = vmatpush1.bf16.xpose.msra.mxu0 0
    %2074 = vmatprep.subr.bf16.mxu0 0
    %2075 = vmatpush1.bf16.xpose.msra.mxu0 0
    %2076 = vmatprep.subr.bf16.mxu0 0
    %2077 = vmatpush1.bf16.xpose.msra.mxu0 0
    %2078 = vmatprep.mubr.bf16.mxu0 0
    %2079 = vmatmul.mubr.bf16.gmra.mrb[0].mxu0 %v2041
    %v2080 = vpop.f32.mrb[0].mxu0
    %v2081 = vadd.f32 0.0, %v2080
    %v2082 = vpop.f32.mrb[0].mxu0
    %v2083 = vpop.f32.mrb[0].mxu0
    %v2084 = vpop.f32.mrb[0].mxu0
    %2085 = vdwg.mxu0
    %v2086 = vmul.f32 %v2031, 0.35355338
    %v2087 = vmul.f32 %v2081, 0.35355338
    %v2088 = vadd.f32 %v2086, %v305
    %v2089 = vadd.f32 %v2087, %v309
    %v2090 = vsel %vm76, %v2088, -inf
    %2091 = vmax.xlane.f32.xlu0 %v2090
    %v2092 = vpop.xlane.xlu0 %2091
    %v2093 = vsel %vm76, %v2089, -inf
    %2094 = vmax.xlane.f32.xlu0 %v2093
    %v2095 = vpop.xlane.xlu0 %2094
    %v2096 = vsub.f32 %v2088, %v2092
    %v2097 = vsub.f32 %v2089, %v2095
    %v2098 = vmul.f32 %v2096, 1.442695
    %v2099 = vpow.pop %v2098
    %v2100 = vmul.f32 %v2097, 1.442695
    %v2101 = vpow.pop %v2100
    %v2102 = vsel %vm76, %v2099, 0.0
    %2103 = vadd.xlane.f32.xlu0 %v2102
    %v2104 = vpop.xlane.xlu0 %2103
    %v2105 = vsel %vm76, %v2101, 0.0
    %2106 = vadd.xlane.f32.xlu0 %v2105
    %v2107 = vpop.xlane.xlu0 %2106
    %v2108 = vpack.c.bf16 %v2099, %v2099
    %v2109 = vpack.c.bf16 %v2101, %v2101
    %2110 = vrot.lane.b32.xlu0 %v1538, 48
    %v2111 = vpop.permute.xlu0 %2110
    %v2113 = vsel %vm76, %v2108, 0
    %v2116 = vsel %vm80, %v2111, 0
    %2118 = vmatprep.subr.bf16.mxu0 0
    %2119 = vmatpush1.bf16.msra.mxu0 %v2116
    %2120 = vmatprep.subr.bf16.mxu0 0
    %2121 = vmatpush1.bf16.msra.mxu0 0
    %2122 = vmatprep.subr.bf16.mxu0 0
    %2123 = vmatpush1.bf16.msra.mxu0 0
    %2124 = vmatprep.subr.bf16.mxu0 0
    %2125 = vmatpush1.bf16.msra.mxu0 0
    %2126 = vmatprep.subr.bf16.mxu0 0
    %2127 = vmatpush1.bf16.msra.mxu0 0
    %2128 = vmatprep.subr.bf16.mxu0 0
    %2129 = vmatpush1.bf16.msra.mxu0 0
    %2130 = vmatprep.subr.bf16.mxu0 0
    %2131 = vmatpush1.bf16.msra.mxu0 0
    %2132 = vmatprep.subr.bf16.mxu0 0
    %2133 = vmatpush1.bf16.msra.mxu0 0
    %2134 = vmatprep.subr.bf16.mxu0 0
    %2135 = vmatpush1.bf16.msra.mxu0 0
    %2136 = vmatprep.subr.bf16.mxu0 0
    %2137 = vmatpush1.bf16.msra.mxu0 0
    %2138 = vmatprep.subr.bf16.mxu0 0
    %2139 = vmatpush1.bf16.msra.mxu0 0
    %2140 = vmatprep.subr.bf16.mxu0 0
    %2141 = vmatpush1.bf16.msra.mxu0 0
    %2142 = vmatprep.subr.bf16.mxu0 0
    %2143 = vmatpush1.bf16.msra.mxu0 0
    %2144 = vmatprep.subr.bf16.mxu0 0
    %2145 = vmatpush1.bf16.msra.mxu0 0
    %2146 = vmatprep.subr.bf16.mxu0 0
    %2147 = vmatpush1.bf16.msra.mxu0 0
    %2148 = vmatprep.subr.bf16.mxu0 0
    %2149 = vmatpush1.bf16.msra.mxu0 0
    %2150 = vmatprep.mubr.bf16.mxu0 0
    %2151 = vmatmul.mubr.bf16.gmra.mrb[0].mxu0 %v2113
    %v2152 = vpop.f32.mrb[0].mxu0
    %v2153 = vadd.f32 0.0, %v2152
    %v2154 = vpop.f32.mrb[0].mxu0
    %v2155 = vpop.f32.mrb[0].mxu0
    %v2156 = vpop.f32.mrb[0].mxu0
    %2157 = vdwg.mxu0
    %2158 = vrot.lane.b32.xlu0 %v1539, 48
    %v2159 = vpop.permute.xlu0 %2158
    %v2161 = vsel %vm76, %v2109, 0
    %v2164 = vsel %vm80, %v2159, 0
    %2166 = vmatprep.subr.bf16.mxu0 0
    %2167 = vmatpush1.bf16.msra.mxu0 %v2164
    %2168 = vmatprep.subr.bf16.mxu0 0
    %2169 = vmatpush1.bf16.msra.mxu0 0
    %2170 = vmatprep.subr.bf16.mxu0 0
    %2171 = vmatpush1.bf16.msra.mxu0 0
    %2172 = vmatprep.subr.bf16.mxu0 0
    %2173 = vmatpush1.bf16.msra.mxu0 0
    %2174 = vmatprep.subr.bf16.mxu0 0
    %2175 = vmatpush1.bf16.msra.mxu0 0
    %2176 = vmatprep.subr.bf16.mxu0 0
    %2177 = vmatpush1.bf16.msra.mxu0 0
    %2178 = vmatprep.subr.bf16.mxu0 0
    %2179 = vmatpush1.bf16.msra.mxu0 0
    %2180 = vmatprep.subr.bf16.mxu0 0
    %2181 = vmatpush1.bf16.msra.mxu0 0
    %2182 = vmatprep.subr.bf16.mxu0 0
    %2183 = vmatpush1.bf16.msra.mxu0 0
    %2184 = vmatprep.subr.bf16.mxu0 0
    %2185 = vmatpush1.bf16.msra.mxu0 0
    %2186 = vmatprep.subr.bf16.mxu0 0
    %2187 = vmatpush1.bf16.msra.mxu0 0
    %2188 = vmatprep.subr.bf16.mxu0 0
    %2189 = vmatpush1.bf16.msra.mxu0 0
    %2190 = vmatprep.subr.bf16.mxu0 0
    %2191 = vmatpush1.bf16.msra.mxu0 0
    %2192 = vmatprep.subr.bf16.mxu0 0
    %2193 = vmatpush1.bf16.msra.mxu0 0
    %2194 = vmatprep.subr.bf16.mxu0 0
    %2195 = vmatpush1.bf16.msra.mxu0 0
    %2196 = vmatprep.subr.bf16.mxu0 0
    %2197 = vmatpush1.bf16.msra.mxu0 0
    %2198 = vmatprep.mubr.bf16.mxu0 0
    %2199 = vmatmul.mubr.bf16.gmra.mrb[0].mxu0 %v2161
    %v2200 = vpop.f32.mrb[0].mxu0
    %v2201 = vadd.f32 0.0, %v2200
    %v2202 = vpop.f32.mrb[0].mxu0
    %v2203 = vpop.f32.mrb[0].mxu0
    %v2204 = vpop.f32.mrb[0].mxu0
    %2205 = vdwg.mxu0
    %v2206 = vrcp.pop %v2104
    %v2207 = vrcp.pop %v2107
    %v2208 = vmul.f32 %v2153, %v2206
    %v2209 = vmul.f32 %v2201, %v2207
    %2210 = vrot.lane.b32.xlu0 %v1538, 104
    %v2211 = vpop.permute.xlu0 %2210
    %2212 = vrot.lane.b32.xlu0 %v1538, 72
    %v2213 = vpop.permute.xlu0 %2212
    %v2215 = vsel %vm76, %v2211, 0
    %v2218 = vsel %vm76, %v2213, 0
    %2220 = vmatprep.subr.bf16.mxu0 0
    %2221 = vmatpush1.bf16.xpose.msra.mxu0 %v2218
    %2222 = vmatprep.subr.bf16.mxu0 0
    %2223 = vmatpush1.bf16.xpose.msra.mxu0 0
    %2224 = vmatprep.subr.bf16.mxu0 0
    %2225 = vmatpush1.bf16.xpose.msra.mxu0 0
    %2226 = vmatprep.subr.bf16.mxu0 0
    %2227 = vmatpush1.bf16.xpose.msra.mxu0 0
    %2228 = vmatprep.subr.bf16.mxu0 0
    %2229 = vmatpush1.bf16.xpose.msra.mxu0 0
    %2230 = vmatprep.subr.bf16.mxu0 0
    %2231 = vmatpush1.bf16.xpose.msra.mxu0 0
    %2232 = vmatprep.subr.bf16.mxu0 0
    %2233 = vmatpush1.bf16.xpose.msra.mxu0 0
    %2234 = vmatprep.subr.bf16.mxu0 0
    %2235 = vmatpush1.bf16.xpose.msra.mxu0 0
    %2236 = vmatprep.subr.bf16.mxu0 0
    %2237 = vmatpush1.bf16.xpose.msra.mxu0 0
    %2238 = vmatprep.subr.bf16.mxu0 0
    %2239 = vmatpush1.bf16.xpose.msra.mxu0 0
    %2240 = vmatprep.subr.bf16.mxu0 0
    %2241 = vmatpush1.bf16.xpose.msra.mxu0 0
    %2242 = vmatprep.subr.bf16.mxu0 0
    %2243 = vmatpush1.bf16.xpose.msra.mxu0 0
    %2244 = vmatprep.subr.bf16.mxu0 0
    %2245 = vmatpush1.bf16.xpose.msra.mxu0 0
    %2246 = vmatprep.subr.bf16.mxu0 0
    %2247 = vmatpush1.bf16.xpose.msra.mxu0 0
    %2248 = vmatprep.subr.bf16.mxu0 0
    %2249 = vmatpush1.bf16.xpose.msra.mxu0 0
    %2250 = vmatprep.subr.bf16.mxu0 0
    %2251 = vmatpush1.bf16.xpose.msra.mxu0 0
    %2252 = vmatprep.mubr.bf16.mxu0 0
    %2253 = vmatmul.mubr.bf16.gmra.mrb[0].mxu0 %v2215
    %v2254 = vpop.f32.mrb[0].mxu0
    %v2255 = vadd.f32 0.0, %v2254
    %v2256 = vpop.f32.mrb[0].mxu0
    %v2257 = vpop.f32.mrb[0].mxu0
    %v2258 = vpop.f32.mrb[0].mxu0
    %2259 = vdwg.mxu0
    %2260 = vrot.lane.b32.xlu0 %v1539, 104
    %v2261 = vpop.permute.xlu0 %2260
    %2262 = vrot.lane.b32.xlu0 %v1539, 72
    %v2263 = vpop.permute.xlu0 %2262
    %v2265 = vsel %vm76, %v2261, 0
    %v2268 = vsel %vm76, %v2263, 0
    %2270 = vmatprep.subr.bf16.mxu0 0
    %2271 = vmatpush1.bf16.xpose.msra.mxu0 %v2268
    %2272 = vmatprep.subr.bf16.mxu0 0
    %2273 = vmatpush1.bf16.xpose.msra.mxu0 0
    %2274 = vmatprep.subr.bf16.mxu0 0
    %2275 = vmatpush1.bf16.xpose.msra.mxu0 0
    %2276 = vmatprep.subr.bf16.mxu0 0
    %2277 = vmatpush1.bf16.xpose.msra.mxu0 0
    %2278 = vmatprep.subr.bf16.mxu0 0
    %2279 = vmatpush1.bf16.xpose.msra.mxu0 0
    %2280 = vmatprep.subr.bf16.mxu0 0
    %2281 = vmatpush1.bf16.xpose.msra.mxu0 0
    %2282 = vmatprep.subr.bf16.mxu0 0
    %2283 = vmatpush1.bf16.xpose.msra.mxu0 0
    %2284 = vmatprep.subr.bf16.mxu0 0
    %2285 = vmatpush1.bf16.xpose.msra.mxu0 0
    %2286 = vmatprep.subr.bf16.mxu0 0
    %2287 = vmatpush1.bf16.xpose.msra.mxu0 0
    %2288 = vmatprep.subr.bf16.mxu0 0
    %2289 = vmatpush1.bf16.xpose.msra.mxu0 0
    %2290 = vmatprep.subr.bf16.mxu0 0
    %2291 = vmatpush1.bf16.xpose.msra.mxu0 0
    %2292 = vmatprep.subr.bf16.mxu0 0
    %2293 = vmatpush1.bf16.xpose.msra.mxu0 0
    %2294 = vmatprep.subr.bf16.mxu0 0
    %2295 = vmatpush1.bf16.xpose.msra.mxu0 0
    %2296 = vmatprep.subr.bf16.mxu0 0
    %2297 = vmatpush1.bf16.xpose.msra.mxu0 0
    %2298 = vmatprep.subr.bf16.mxu0 0
    %2299 = vmatpush1.bf16.xpose.msra.mxu0 0
    %2300 = vmatprep.subr.bf16.mxu0 0
    %2301 = vmatpush1.bf16.xpose.msra.mxu0 0
    %2302 = vmatprep.mubr.bf16.mxu0 0
    %2303 = vmatmul.mubr.bf16.gmra.mrb[0].mxu0 %v2265
    %v2304 = vpop.f32.mrb[0].mxu0
    %v2305 = vadd.f32 0.0, %v2304
    %v2306 = vpop.f32.mrb[0].mxu0
    %v2307 = vpop.f32.mrb[0].mxu0
    %v2308 = vpop.f32.mrb[0].mxu0
    %2309 = vdwg.mxu0
    %v2310 = vmul.f32 %v2255, 0.35355338
    %v2311 = vmul.f32 %v2305, 0.35355338
    %v2312 = vadd.f32 %v2310, %v305
    %v2313 = vadd.f32 %v2311, %v309
    %v2314 = vsel %vm76, %v2312, -inf
    %2315 = vmax.xlane.f32.xlu0 %v2314
    %v2316 = vpop.xlane.xlu0 %2315
    %v2317 = vsel %vm76, %v2313, -inf
    %2318 = vmax.xlane.f32.xlu0 %v2317
    %v2319 = vpop.xlane.xlu0 %2318
    %v2320 = vsub.f32 %v2312, %v2316
    %v2321 = vsub.f32 %v2313, %v2319
    %v2322 = vmul.f32 %v2320, 1.442695
    %v2323 = vpow.pop %v2322
    %v2324 = vmul.f32 %v2321, 1.442695
    %v2325 = vpow.pop %v2324
    %v2326 = vsel %vm76, %v2323, 0.0
    %2327 = vadd.xlane.f32.xlu0 %v2326
    %v2328 = vpop.xlane.xlu0 %2327
    %v2329 = vsel %vm76, %v2325, 0.0
    %2330 = vadd.xlane.f32.xlu0 %v2329
    %v2331 = vpop.xlane.xlu0 %2330
    %v2332 = vpack.c.bf16 %v2323, %v2323
    %v2333 = vpack.c.bf16 %v2325, %v2325
    %2334 = vrot.lane.b32.xlu0 %v1538, 40
    %v2335 = vpop.permute.xlu0 %2334
    %v2337 = vsel %vm76, %v2332, 0
    %v2340 = vsel %vm80, %v2335, 0
    %2342 = vmatprep.subr.bf16.mxu0 0
    %2343 = vmatpush1.bf16.msra.mxu0 %v2340
    %2344 = vmatprep.subr.bf16.mxu0 0
    %2345 = vmatpush1.bf16.msra.mxu0 0
    %2346 = vmatprep.subr.bf16.mxu0 0
    %2347 = vmatpush1.bf16.msra.mxu0 0
    %2348 = vmatprep.subr.bf16.mxu0 0
    %2349 = vmatpush1.bf16.msra.mxu0 0
    %2350 = vmatprep.subr.bf16.mxu0 0
    %2351 = vmatpush1.bf16.msra.mxu0 0
    %2352 = vmatprep.subr.bf16.mxu0 0
    %2353 = vmatpush1.bf16.msra.mxu0 0
    %2354 = vmatprep.subr.bf16.mxu0 0
    %2355 = vmatpush1.bf16.msra.mxu0 0
    %2356 = vmatprep.subr.bf16.mxu0 0
    %2357 = vmatpush1.bf16.msra.mxu0 0
    %2358 = vmatprep.subr.bf16.mxu0 0
    %2359 = vmatpush1.bf16.msra.mxu0 0
    %2360 = vmatprep.subr.bf16.mxu0 0
    %2361 = vmatpush1.bf16.msra.mxu0 0
    %2362 = vmatprep.subr.bf16.mxu0 0
    %2363 = vmatpush1.bf16.msra.mxu0 0
    %2364 = vmatprep.subr.bf16.mxu0 0
    %2365 = vmatpush1.bf16.msra.mxu0 0
    %2366 = vmatprep.subr.bf16.mxu0 0
    %2367 = vmatpush1.bf16.msra.mxu0 0
    %2368 = vmatprep.subr.bf16.mxu0 0
    %2369 = vmatpush1.bf16.msra.mxu0 0
    %2370 = vmatprep.subr.bf16.mxu0 0
    %2371 = vmatpush1.bf16.msra.mxu0 0
    %2372 = vmatprep.subr.bf16.mxu0 0
    %2373 = vmatpush1.bf16.msra.mxu0 0
    %2374 = vmatprep.mubr.bf16.mxu0 0
    %2375 = vmatmul.mubr.bf16.gmra.mrb[0].mxu0 %v2337
    %v2376 = vpop.f32.mrb[0].mxu0
    %v2377 = vadd.f32 0.0, %v2376
    %v2378 = vpop.f32.mrb[0].mxu0
    %v2379 = vpop.f32.mrb[0].mxu0
    %v2380 = vpop.f32.mrb[0].mxu0
    %2381 = vdwg.mxu0
    %2382 = vrot.lane.b32.xlu0 %v1539, 40
    %v2383 = vpop.permute.xlu0 %2382
    %v2385 = vsel %vm76, %v2333, 0
    %v2388 = vsel %vm80, %v2383, 0
    %2390 = vmatprep.subr.bf16.mxu0 0
    %2391 = vmatpush1.bf16.msra.mxu0 %v2388
    %2392 = vmatprep.subr.bf16.mxu0 0
    %2393 = vmatpush1.bf16.msra.mxu0 0
    %2394 = vmatprep.subr.bf16.mxu0 0
    %2395 = vmatpush1.bf16.msra.mxu0 0
    %2396 = vmatprep.subr.bf16.mxu0 0
    %2397 = vmatpush1.bf16.msra.mxu0 0
    %2398 = vmatprep.subr.bf16.mxu0 0
    %2399 = vmatpush1.bf16.msra.mxu0 0
    %2400 = vmatprep.subr.bf16.mxu0 0
    %2401 = vmatpush1.bf16.msra.mxu0 0
    %2402 = vmatprep.subr.bf16.mxu0 0
    %2403 = vmatpush1.bf16.msra.mxu0 0
    %2404 = vmatprep.subr.bf16.mxu0 0
    %2405 = vmatpush1.bf16.msra.mxu0 0
    %2406 = vmatprep.subr.bf16.mxu0 0
    %2407 = vmatpush1.bf16.msra.mxu0 0
    %2408 = vmatprep.subr.bf16.mxu0 0
    %2409 = vmatpush1.bf16.msra.mxu0 0
    %2410 = vmatprep.subr.bf16.mxu0 0
    %2411 = vmatpush1.bf16.msra.mxu0 0
    %2412 = vmatprep.subr.bf16.mxu0 0
    %2413 = vmatpush1.bf16.msra.mxu0 0
    %2414 = vmatprep.subr.bf16.mxu0 0
    %2415 = vmatpush1.bf16.msra.mxu0 0
    %2416 = vmatprep.subr.bf16.mxu0 0
    %2417 = vmatpush1.bf16.msra.mxu0 0
    %2418 = vmatprep.subr.bf16.mxu0 0
    %2419 = vmatpush1.bf16.msra.mxu0 0
    %2420 = vmatprep.subr.bf16.mxu0 0
    %2421 = vmatpush1.bf16.msra.mxu0 0
    %2422 = vmatprep.mubr.bf16.mxu0 0
    %2423 = vmatmul.mubr.bf16.gmra.mrb[0].mxu0 %v2385
    %v2424 = vpop.f32.mrb[0].mxu0
    %v2425 = vadd.f32 0.0, %v2424
    %v2426 = vpop.f32.mrb[0].mxu0
    %v2427 = vpop.f32.mrb[0].mxu0
    %v2428 = vpop.f32.mrb[0].mxu0
    %2429 = vdwg.mxu0
    %v2430 = vrcp.pop %v2328
    %v2431 = vrcp.pop %v2331
    %v2432 = vmul.f32 %v2377, %v2430
    %v2433 = vmul.f32 %v2425, %v2431
    %2436 = vrot.lane.b32.xlu0 %v1984, 8
    %v2437 = vpop.permute.xlu0 %2436
    %2438 = vrot.lane.b32.xlu0 %v1985, 8
    %v2439 = vpop.permute.xlu0 %2438
    %2444 = vrot.lane.b32.xlu0 %v2208, 16
    %v2445 = vpop.permute.xlu0 %2444
    %2446 = vrot.lane.b32.xlu0 %v2209, 16
    %v2447 = vpop.permute.xlu0 %2446
    %2452 = vrot.lane.b32.xlu0 %v2432, 24
    %v2453 = vpop.permute.xlu0 %2452
    %2454 = vrot.lane.b32.xlu0 %v2433, 24
    %v2455 = vpop.permute.xlu0 %2454
    %v2458 = vsel %vm76, %v1760, %v2437
    %v2459 = vsel %vm76, %v1761, %v2439
    %v2460 = vsel %vm1132, %v2458, %v2445
    %v2461 = vsel %vm1132, %v2459, %v2447
    %v2462 = vsel %vm1135, %v2460, %v2453
    %v2463 = vsel %vm1135, %v2461, %v2455
    %v2464 = vpack.c.bf16 %v2463, %v2462
    %s2465 = scalar_lea.vmem %s8, 16
    %v2466 = vld [vmem:[%s2465] sm:$0xf]
    %v2467 = vld [vmem:[%s2465 + $0x4] sm:$0xf]
    %v2468 = vld [vmem:[%s2465 + $0x8] sm:$0xf]
    %v2469 = vld [vmem:[%s2465 + $0xc] sm:$0xf]
    %s2470 = scalar_lea.vmem %s9, 1
    %v2471 = vld [vmem:[%s2470] sm:$0x1]
    %v2473 = vlaneseq
    %v2474 = vshrl.u32 %v2473, 7
    %v2475 = vsub.s32 0, %v2474
    %v2476 = vrot.slane %v2471, %v2475
    %v2482 = vunpack.c.l.b16 %v2466
    %v2483 = vunpack.c.l.b16 %v2467
    %v2484 = vunpack.c.l.b16 %v2468
    %v2485 = vunpack.c.l.b16 %v2469
    %v2486 = vpack.c.b16 %v2483, %v2482
    %v2487 = vpack.c.b16 %v2485, %v2484
    %v2491 = vsel %vm153, %v2464, 0
    %2493 = vmatprep.subr.bf16.mxu0 0
    %2494 = vmatpush1.bf16.msra.mxu0 %v2486
    %2495 = vmatprep.subr.bf16.mxu0 0
    %2496 = vmatpush1.bf16.msra.mxu0 %v2487
    %2497 = vmatprep.subr.bf16.mxu0 0
    %2498 = vmatpush1.bf16.msra.mxu0 0
    %2499 = vmatprep.subr.bf16.mxu0 0
    %2500 = vmatpush1.bf16.msra.mxu0 0
    %2501 = vmatprep.subr.bf16.mxu0 0
    %2502 = vmatpush1.bf16.msra.mxu0 0
    %2503 = vmatprep.subr.bf16.mxu0 0
    %2504 = vmatpush1.bf16.msra.mxu0 0
    %2505 = vmatprep.subr.bf16.mxu0 0
    %2506 = vmatpush1.bf16.msra.mxu0 0
    %2507 = vmatprep.subr.bf16.mxu0 0
    %2508 = vmatpush1.bf16.msra.mxu0 0
    %2509 = vmatprep.subr.bf16.mxu0 0
    %2510 = vmatpush1.bf16.msra.mxu0 0
    %2511 = vmatprep.subr.bf16.mxu0 0
    %2512 = vmatpush1.bf16.msra.mxu0 0
    %2513 = vmatprep.subr.bf16.mxu0 0
    %2514 = vmatpush1.bf16.msra.mxu0 0
    %2515 = vmatprep.subr.bf16.mxu0 0
    %2516 = vmatpush1.bf16.msra.mxu0 0
    %2517 = vmatprep.subr.bf16.mxu0 0
    %2518 = vmatpush1.bf16.msra.mxu0 0
    %2519 = vmatprep.subr.bf16.mxu0 0
    %2520 = vmatpush1.bf16.msra.mxu0 0
    %2521 = vmatprep.subr.bf16.mxu0 0
    %2522 = vmatpush1.bf16.msra.mxu0 0
    %2523 = vmatprep.subr.bf16.mxu0 0
    %2524 = vmatpush1.bf16.msra.mxu0 0
    %2525 = vmatprep.mubr.bf16.mxu0 0
    %2526 = vmatmul.mubr.bf16.gmra.mrb[0].mxu0 %v2491
    %v2527 = vpop.f32.mrb[0].mxu0
    %v2528 = vadd.f32 %v2476, %v2527
    %v2529 = vpop.f32.mrb[0].mxu0
    %v2530 = vpop.f32.mrb[0].mxu0
    %v2531 = vadd.f32 %v2476, %v2530
    %v2532 = vpop.f32.mrb[0].mxu0
    %2533 = vdwg.mxu0
    %v2534 = vadd.f32 %v2528, %v1466
    %v2535 = vadd.f32 %v2531, %v1467
    %s2536 = scalar_lea.vmem %s10, 1
    %v2537 = vld [vmem:[%s2536] sm:$0x1]
    %s2538 = scalar_lea.vmem %s11, 1
    %v2539 = vld [vmem:[%s2538] sm:$0x1]
    %v2540 = vsel %vm153, %v2534, 0.0
    %2541 = vadd.xlane.f32.xlu0 %v2540
    %v2542 = vpop.xlane.xlu0 %2541
    %v2543 = vsel %vm153, %v2535, 0.0
    %2544 = vadd.xlane.f32.xlu0 %v2543
    %v2545 = vpop.xlane.xlu0 %2544
    %v2546 = vmul.f32 %v2542, %v1216
    %v2547 = vmul.f32 %v2545, %v1216
    %v2548 = vsub.f32 %v2534, %v2546
    %v2549 = vsub.f32 %v2535, %v2547
    %v2550 = vmul.f32 %v2548, %v2548
    %v2551 = vmul.f32 %v2549, %v2549
    %v2552 = vsel %vm153, %v2550, 0.0
    %2553 = vadd.xlane.f32.xlu0 %v2552
    %v2554 = vpop.xlane.xlu0 %2553
    %v2555 = vsel %vm153, %v2551, 0.0
    %2556 = vadd.xlane.f32.xlu0 %v2555
    %v2557 = vpop.xlane.xlu0 %2556
    %v2558 = vmul.f32 %v2554, %v1216
    %v2559 = vmul.f32 %v2557, %v1216
    %v2560 = vadd.f32 %v2558, 1e-05
    %v2561 = vadd.f32 %v2559, 1e-05
    %v2562 = vrsqrt.pop %v2560
    %v2563 = vrsqrt.pop %v2561
    %v2564 = vmul.f32 %v2548, %v2562
    %v2565 = vmul.f32 %v2549, %v2563
    %v2567 = vlaneseq
    %v2568 = vshrl.u32 %v2567, 7
    %v2569 = vsub.s32 0, %v2568
    %v2570 = vrot.slane %v2537, %v2569
    %v2572 = vmul.f32 %v2564, %v2570
    %v2573 = vmul.f32 %v2565, %v2570
    %v2575 = vlaneseq
    %v2576 = vshrl.u32 %v2575, 7
    %v2577 = vsub.s32 0, %v2576
    %v2578 = vrot.slane %v2539, %v2577
    %v2580 = vadd.f32 %v2572, %v2578
    %v2581 = vadd.f32 %v2573, %v2578
    %v2582 = vmul.f32 %v2580, %v1256
    %v2583 = vmul.f32 %v2581, %v1261
    %v2584 = vpack.c.bf16 %v2583, %v2582
    %s2585 = scalar_lea.vmem %s12, 16
    %v2586 = vld [vmem:[%s2585] sm:$0xf]
    %v2587 = vld [vmem:[%s2585 + $0x4] sm:$0xf]
    %v2588 = vld [vmem:[%s2585 + $0x8] sm:$0xf]
    %v2589 = vld [vmem:[%s2585 + $0xc] sm:$0xf]
    %s2590 = scalar_lea.vmem %s13, 1
    %v2591 = vld [vmem:[%s2590] sm:$0x1]
    %v2593 = vlaneseq
    %v2594 = vshrl.u32 %v2593, 7
    %v2595 = vsub.s32 0, %v2594
    %v2596 = vrot.slane %v2591, %v2595
    %v2602 = vunpack.c.l.b16 %v2586
    %v2603 = vunpack.c.l.b16 %v2587
    %v2604 = vunpack.c.l.b16 %v2588
    %v2605 = vunpack.c.l.b16 %v2589
    %v2606 = vpack.c.b16 %v2603, %v2602
    %v2607 = vpack.c.b16 %v2605, %v2604
    %v2611 = vsel %vm153, %v2584, 0
    %2613 = vmatprep.subr.bf16.mxu0 0
    %2614 = vmatpush1.bf16.msra.mxu0 %v2606
    %2615 = vmatprep.subr.bf16.mxu0 0
    %2616 = vmatpush1.bf16.msra.mxu0 %v2607
    %2617 = vmatprep.subr.bf16.mxu0 0
    %2618 = vmatpush1.bf16.msra.mxu0 0
    %2619 = vmatprep.subr.bf16.mxu0 0
    %2620 = vmatpush1.bf16.msra.mxu0 0
    %2621 = vmatprep.subr.bf16.mxu0 0
    %2622 = vmatpush1.bf16.msra.mxu0 0
    %2623 = vmatprep.subr.bf16.mxu0 0
    %2624 = vmatpush1.bf16.msra.mxu0 0
    %2625 = vmatprep.subr.bf16.mxu0 0
    %2626 = vmatpush1.bf16.msra.mxu0 0
    %2627 = vmatprep.subr.bf16.mxu0 0
    %2628 = vmatpush1.bf16.msra.mxu0 0
    %2629 = vmatprep.subr.bf16.mxu0 0
    %2630 = vmatpush1.bf16.msra.mxu0 0
    %2631 = vmatprep.subr.bf16.mxu0 0
    %2632 = vmatpush1.bf16.msra.mxu0 0
    %2633 = vmatprep.subr.bf16.mxu0 0
    %2634 = vmatpush1.bf16.msra.mxu0 0
    %2635 = vmatprep.subr.bf16.mxu0 0
    %2636 = vmatpush1.bf16.msra.mxu0 0
    %2637 = vmatprep.subr.bf16.mxu0 0
    %2638 = vmatpush1.bf16.msra.mxu0 0
    %2639 = vmatprep.subr.bf16.mxu0 0
    %2640 = vmatpush1.bf16.msra.mxu0 0
    %2641 = vmatprep.subr.bf16.mxu0 0
    %2642 = vmatpush1.bf16.msra.mxu0 0
    %2643 = vmatprep.subr.bf16.mxu0 0
    %2644 = vmatpush1.bf16.msra.mxu0 0
    %2645 = vmatprep.mubr.bf16.mxu0 0
    %2646 = vmatmul.mubr.bf16.gmra.mrb[0].mxu0 %v2611
    %v2647 = vpop.f32.mrb[0].mxu0
    %v2648 = vadd.f32 %v2596, %v2647
    %v2649 = vpop.f32.mrb[0].mxu0
    %v2650 = vpop.f32.mrb[0].mxu0
    %v2651 = vadd.f32 %v2596, %v2650
    %v2652 = vpop.f32.mrb[0].mxu0
    %2653 = vdwg.mxu0
    %v2654 = vmax.f32 %v2648, 0.0
    %v2655 = vmax.f32 %v2651, 0.0
    %v2656 = vpack.c.bf16 %v2655, %v2654
    %s2657 = scalar_lea.vmem %s14, 32
    %v2658 = vld [vmem:[%s2657] sm:$0xf]
    %v2659 = vld [vmem:[%s2657 + $0x4] sm:$0xf]
    %v2660 = vld [vmem:[%s2657 + $0x8] sm:$0xf]
    %v2661 = vld [vmem:[%s2657 + $0xc] sm:$0xf]
    %v2662 = vld [vmem:[%s2657 + $0x10] sm:$0xf]
    %v2663 = vld [vmem:[%s2657 + $0x14] sm:$0xf]
    %v2664 = vld [vmem:[%s2657 + $0x18] sm:$0xf]
    %v2665 = vld [vmem:[%s2657 + $0x1c] sm:$0xf]
    %s2666 = scalar_lea.vmem %s15, 1
    %v2667 = vld [vmem:[%s2666] sm:$0x1]
    %v2669 = vlaneseq
    %v2670 = vshrl.u32 %v2669, 7
    %v2671 = vsub.s32 0, %v2670
    %v2672 = vrot.slane %v2667, %v2671
    %v2682 = vunpack.c.l.b16 %v2658
    %v2683 = vunpack.c.l.b16 %v2659
    %v2684 = vunpack.c.l.b16 %v2660
    %v2685 = vunpack.c.l.b16 %v2661
    %v2686 = vunpack.c.l.b16 %v2662
    %v2687 = vunpack.c.l.b16 %v2663
    %v2688 = vunpack.c.l.b16 %v2664
    %v2689 = vunpack.c.l.b16 %v2665
    %v2690 = vpack.c.b16 %v2683, %v2682
    %v2691 = vpack.c.b16 %v2685, %v2684
    %v2692 = vpack.c.b16 %v2687, %v2686
    %v2693 = vpack.c.b16 %v2689, %v2688
    %v2699 = vsel %vm1375, %v2656, 0
    %2701 = vmatprep.subr.bf16.mxu0 0
    %2702 = vmatpush1.bf16.msra.mxu0 %v2690
    %2703 = vmatprep.subr.bf16.mxu0 0
    %2704 = vmatpush1.bf16.msra.mxu0 %v2691
    %2705 = vmatprep.subr.bf16.mxu0 0
    %2706 = vmatpush1.bf16.msra.mxu0 %v2692
    %2707 = vmatprep.subr.bf16.mxu0 0
    %2708 = vmatpush1.bf16.msra.mxu0 %v2693
    %2709 = vmatprep.subr.bf16.mxu0 0
    %2710 = vmatpush1.bf16.msra.mxu0 0
    %2711 = vmatprep.subr.bf16.mxu0 0
    %2712 = vmatpush1.bf16.msra.mxu0 0
    %2713 = vmatprep.subr.bf16.mxu0 0
    %2714 = vmatpush1.bf16.msra.mxu0 0
    %2715 = vmatprep.subr.bf16.mxu0 0
    %2716 = vmatpush1.bf16.msra.mxu0 0
    %2717 = vmatprep.subr.bf16.mxu0 0
    %2718 = vmatpush1.bf16.msra.mxu0 0
    %2719 = vmatprep.subr.bf16.mxu0 0
    %2720 = vmatpush1.bf16.msra.mxu0 0
    %2721 = vmatprep.subr.bf16.mxu0 0
    %2722 = vmatpush1.bf16.msra.mxu0 0
    %2723 = vmatprep.subr.bf16.mxu0 0
    %2724 = vmatpush1.bf16.msra.mxu0 0
    %2725 = vmatprep.subr.bf16.mxu0 0
    %2726 = vmatpush1.bf16.msra.mxu0 0
    %2727 = vmatprep.subr.bf16.mxu0 0
    %2728 = vmatpush1.bf16.msra.mxu0 0
    %2729 = vmatprep.subr.bf16.mxu0 0
    %2730 = vmatpush1.bf16.msra.mxu0 0
    %2731 = vmatprep.subr.bf16.mxu0 0
    %2732 = vmatpush1.bf16.msra.mxu0 0
    %2733 = vmatprep.mubr.bf16.mxu0 0
    %2734 = vmatmul.mubr.bf16.gmra.mrb[0].mxu0 %v2699
    %v2735 = vpop.f32.mrb[0].mxu0
    %v2736 = vadd.f32 %v2672, %v2735
    %v2737 = vpop.f32.mrb[0].mxu0
    %v2738 = vpop.f32.mrb[0].mxu0
    %v2739 = vadd.f32 %v2672, %v2738
    %v2740 = vpop.f32.mrb[0].mxu0
    %2741 = vdwg.mxu0
    %v2742 = vadd.f32 %v2736, %v2582
    %v2743 = vadd.f32 %v2739, %v2583
    %s2744 = scalar_lea.vmem %s16, 1
    %v2745 = vld [vmem:[%s2744] sm:$0x1]
    %s2746 = scalar_lea.vmem %s17, 1
    %v2747 = vld [vmem:[%s2746] sm:$0x1]
    %v2748 = vsel %vm153, %v2742, 0.0
    %2749 = vadd.xlane.f32.xlu0 %v2748
    %v2750 = vpop.xlane.xlu0 %2749
    %v2751 = vsel %vm153, %v2743, 0.0
    %2752 = vadd.xlane.f32.xlu0 %v2751
    %v2753 = vpop.xlane.xlu0 %2752
    %v2754 = vmul.f32 %v2750, %v1216
    %v2755 = vmul.f32 %v2753, %v1216
    %v2756 = vsub.f32 %v2742, %v2754
    %v2757 = vsub.f32 %v2743, %v2755
    %v2758 = vmul.f32 %v2756, %v2756
    %v2759 = vmul.f32 %v2757, %v2757
    %v2760 = vsel %vm153, %v2758, 0.0
    %2761 = vadd.xlane.f32.xlu0 %v2760
    %v2762 = vpop.xlane.xlu0 %2761
    %v2763 = vsel %vm153, %v2759, 0.0
    %2764 = vadd.xlane.f32.xlu0 %v2763
    %v2765 = vpop.xlane.xlu0 %2764
    %v2766 = vmul.f32 %v2762, %v1216
    %v2767 = vmul.f32 %v2765, %v1216
    %v2768 = vadd.f32 %v2766, 1e-05
    %v2769 = vadd.f32 %v2767, 1e-05
    %v2770 = vrsqrt.pop %v2768
    %v2771 = vrsqrt.pop %v2769
    %v2772 = vmul.f32 %v2756, %v2770
    %v2773 = vmul.f32 %v2757, %v2771
    %v2775 = vlaneseq
    %v2776 = vshrl.u32 %v2775, 7
    %v2777 = vsub.s32 0, %v2776
    %v2778 = vrot.slane %v2745, %v2777
    %v2780 = vmul.f32 %v2772, %v2778
    %v2781 = vmul.f32 %v2773, %v2778
    %v2783 = vlaneseq
    %v2784 = vshrl.u32 %v2783, 7
    %v2785 = vsub.s32 0, %v2784
    %v2786 = vrot.slane %v2747, %v2785
    %v2788 = vadd.f32 %v2780, %v2786
    %v2789 = vadd.f32 %v2781, %v2786
    %v2790 = vmul.f32 %v2788, %v1256
    %v2791 = vmul.f32 %v2789, %v1261
    %2792 = vst.msk [vmem:[#allocation2] sm:$0xff] %vm153, %v2790
    %2793 = vst.msk [vmem:[#allocation2 + $0x8] sm:$0xff] %vm153, %v2791
    // Predicated region
    $region74: #{encoder_forward.1} parent=1 // pred_check
      _
    $region75: #{encoder_forward.1} parent=1 // pred_check_branch
      %2795 = sbr.rel (0) target = $region77
    $region76: #{encoder_forward.1} parent=1 // pred_region
      %s2797 = ssub.s32 256, 256
      %2798 = vsyncadd [#allocation3], %s2797
      %s2799 = sshll.u32 [#allocation2], 4
      %s2800 = int_to_ptr.vmem [resolvable:$true] %s2799
      %2805 = dma.vmem_to_hbm [thread:$0]  %s2800, 256, %s18, [#allocation3], 128, 128, 8
    $region77: #{encoder_forward.1} parent=1 // pred_fallthru
      _
    // Predicated region
    $region78: #{encoder_forward.1} parent=1 // pred_check
      _
    $region79: #{encoder_forward.1} parent=1 // pred_check_branch
      %2807 = sbr.rel (0) target = $region81
    $region80: #{encoder_forward.1} parent=1 // pred_region
      %2808 = dma.done [#allocation3], 256
    $region81: #{encoder_forward.1} parent=1 // pred_fallthru
      _
    %2809 = vsyncpa [#allocation3], 1

</llo_original>
